<compile_context>
chip_gen: v7x
topology: tpu7x:2x2x1
jax: 0.10.0
libtpu: 0.0.40
codegen_flags: <defaults>
</compile_context>

<pallas_src>
import functools

import jax
import jax.numpy as jnp
from jax.experimental import pallas as pl
from jax.experimental.pallas import tpu as pltpu

_PAD = 128     # zero border (columns) around flattened activations; >= any tap
               # shift (W + 1) and keeps the valid region lane-tile aligned.
_EPS = 1e-5    # nn.BatchNorm2d default


# --------------------------- fused Pallas kernel ---------------------------

def _up_fused_kernel(xup_ref, mask_ref, w1_ref, b1_ref, wA_ref, wB_ref,
                     gA_ref, btA_ref, gB_ref, btB_ref,
                     o_ref, buf_ref, *, W, M):
    """Entire Up.forward on VMEM-resident, lane-dense [C, M = N*H*W] activations."""

    def conv_taps(src_ref, w_ref, offsets, mask_ids=None):
        # sum over taps:  w_ref[t] @ (spatially shifted, optionally masked src)
        acc = None
        for t, (dy, dx) in enumerate(offsets):
            tap = src_ref[:, pl.ds(_PAD + dy * W + dx, M)]
            if mask_ids is not None:
                tap = tap * mask_ref[mask_ids[t]]
            p = jnp.dot(w_ref[t], tap, preferred_element_type=jnp.float32)
            acc = p if acc is None else acc + p
        return acc

    def bn_relu(acc, g_ref, b_ref):
        # training-mode BatchNorm2d (biased batch variance over N*H*W) + ReLU
        mean = jnp.mean(acc, axis=1, keepdims=True)
        var = jnp.mean(jnp.square(acc - mean), axis=1, keepdims=True)
        scale = g_ref[...] * jax.lax.rsqrt(var + _EPS)
        return jnp.maximum((acc - mean) * scale + b_ref[...], 0.0)

    # Zero the scratch once; only its border columns must stay zero afterwards.
    buf_ref[...] = jnp.zeros_like(buf_ref)

    # ---- stage 1: Conv2d(k=2, no pad) on upsampled x1, +bias, ReLU, ZeroPad2d.
    # Per-tap masks are unnecessary here: any position whose taps would cross a
    # row/image boundary lies in the ZeroPad2d frame and is zeroed by mask 9.
    acc1 = conv_taps(xup_ref, w1_ref, [(0, 0), (0, 1), (1, 0), (1, 1)])
    z = jnp.maximum(acc1 + b1_ref[...], 0.0) * mask_ref[9]
    buf_ref[:, pl.ds(_PAD, M)] = z

    # ---- stage 2: Conv2d(k=3, pad=1) -> BatchNorm -> ReLU
    offs3 = [(dy, dx) for dy in (-1, 0, 1) for dx in (-1, 0, 1)]
    accA = conv_taps(buf_ref, wA_ref, offs3, mask_ids=list(range(9)))
    a = bn_relu(accA, gA_ref, btA_ref)          # conv bias cancels under batch BN
    buf_ref[:, pl.ds(_PAD, M)] = a

    # ---- stage 3: Conv2d(k=3, pad=1) -> BatchNorm -> ReLU
    accB = conv_taps(buf_ref, wB_ref, offs3, mask_ids=list(range(9)))
    o_ref[...] = bn_relu(accB, gB_ref, btB_ref)


# ------------------------------ Up.forward ------------------------------

def up_forward(params, x1_nchw, x2_nchw):
    N, C_in, H1, W1 = x1_nchw.shape
    H2, W2 = x2_nchw.shape[2], x2_nchw.shape[3]
    C1 = params["w1"].shape[0]       # conv1 out == DoubleConv mid channels
    C_out = params["wB"].shape[0]
    # TODO(synk): general ZeroPad2d offsets (diffY/diffX != 1) need per-stage tap
    # re-indexing; the canonical UNet `Up` (even spatial sizes) always hits 1.
    assert H2 == 2 * H1 and W2 == 2 * W1, "fused kernel assumes x2 spatial = 2 * x1 spatial"
    H, W = H2, W2
    M = N * H * W

    # ----- tiny layout prep in XLA (one pass over KB-sized tensors) -----
    # nearest 2x upsample -> channel-major flattened [C_in, M] with zero borders
    x = jnp.transpose(x1_nchw, (1, 0, 2, 3))                      # [C_in, N, H1, W1]
    x = jnp.repeat(jnp.repeat(x, 2, axis=2), 2, axis=3)           # [C_in, N, H, W]
    xup = jnp.pad(x.reshape(C_in, M), ((0, 0), (_PAD, _PAD)))     # [C_in, M + 2*_PAD]

    # 0/1 masks: rows 0..8 = 3x3 tap validity (conv zero padding + image
    # boundaries of the flattened layout); row 9 = stage-1 ZeroPad2d keep region.
    ho = jnp.tile(jnp.repeat(jnp.arange(H), W), N)
    wo = jnp.tile(jnp.arange(W), N * H)
    rows = [((ho + dy >= 0) & (ho + dy < H) & (wo + dx >= 0) & (wo + dx < W))
            for dy in (-1, 0, 1) for dx in (-1, 0, 1)]
    rows.append((ho < H - 1) & (wo < W - 1))
    masks = jnp.stack(rows).astype(jnp.float32).reshape(len(rows), 1, M)

    # weights in tap-major [kh*kw, C_out, C_in] layout; per-channel vectors as columns
    w1 = jnp.transpose(params["w1"], (2, 3, 0, 1)).reshape(4, C1, C_in)
    wA = jnp.transpose(params["wA"], (2, 3, 0, 1)).reshape(9, C1, C1)
    wB = jnp.transpose(params["wB"], (2, 3, 0, 1)).reshape(9, C_out, C1)
    col = lambda v: v.reshape(-1, 1)
    # NOTE: params["bA"] / params["bB"] are intentionally unused: a conv bias that
    # feeds training-mode BatchNorm cancels exactly in the mean subtraction.

    args = (xup, masks, w1, col(params["b1"]), wA, wB,
            col(params["gA"]), col(params["btA"]),
            col(params["gB"]), col(params["btB"]))
    full_spec = lambda a: pl.BlockSpec(a.shape, lambda i, n=a.ndim: (0,) * n)

    out = pl.pallas_call(
        functools.partial(_up_fused_kernel, W=W, M=M),
        out_shape=jax.ShapeDtypeStruct((C_out, M), jnp.float32),   # lane-dense output
        grid=(1,),
        in_specs=[full_spec(a) for a in args],
        out_specs=pl.BlockSpec((C_out, M), lambda i: (0, 0)),
        scratch_shapes=[pltpu.VMEM((C1, M + 2 * _PAD), jnp.float32)],
        compiler_params=pltpu.CompilerParams(dimension_semantics=("arbitrary",)),
    )(*args)

    return jnp.transpose(out.reshape(C_out, N, H, W), (1, 0, 2, 3))   # -> NCHW


# ------------------------------ params / main ------------------------------

def init_params(key, in_ch, out_ch):
    def conv_init(k, co, ci, kh, kw):
        fan_in = ci * kh * kw
        bound = 1.0 / (fan_in ** 0.5)
        kw_, kb = jax.random.split(k)
        w = jax.random.uniform(kw_, (co, ci, kh, kw), jnp.float32, -bound, bound)
        b = jax.random.uniform(kb, (co,), jnp.float32, -bound, bound)
        return w, b

    ks = jax.random.split(key, 3)
    w1, b1 = conv_init(ks[0], out_ch, in_ch, 2, 2)
    wA, bA = conv_init(ks[1], out_ch, out_ch, 3, 3)
    wB, bB = conv_init(ks[2], out_ch, out_ch, 3, 3)
    return dict(
        w1=w1, b1=b1,
        # bA/bB mirror the PyTorch parameters but are mathematically inert here
        # (they cancel under the training-mode BatchNorm that follows each conv).
        wA=wA, bA=bA, gA=jnp.ones((out_ch,), jnp.float32), btA=jnp.zeros((out_ch,), jnp.float32),
        wB=wB, bB=bB, gB=jnp.ones((out_ch,), jnp.float32), btB=jnp.zeros((out_ch,), jnp.float32),
    )


if __name__ == "__main__":
    in_channels, out_channels = 8, 8
    key = jax.random.PRNGKey(0)
    k1, k2, kp = jax.random.split(key, 3)

    # x1 is the low-res feature map to upsample; x2 only supplies the target H, W.
    x1 = jax.random.normal(k1, (2, in_channels, 8, 8), jnp.float32)     # NCHW
    x2 = jax.random.normal(k2, (2, out_channels, 16, 16), jnp.float32)  # NCHW

    params = init_params(kp, in_channels, out_channels)

    out = jax.jit(up_forward)(params, x1, x2)
    out = jax.block_until_ready(out)
    assert out.shape == (2, out_channels, 16, 16), out.shape
    print("KERNEL_OK")
</pallas_src>

<mosaic_0001>
module attributes {stable_mosaic.version = 11 : i64} {
  func.func @_up_fused_kernel(%arg0: i32, %arg1: memref<8x768xf32, #tpu.memory_space<vmem>>, %arg2: memref<10x1x512xf32, #tpu.memory_space<vmem>>, %arg3: memref<4x8x8xf32, #tpu.memory_space<vmem>>, %arg4: memref<8x1xf32, #tpu.memory_space<vmem>>, %arg5: memref<9x8x8xf32, #tpu.memory_space<vmem>>, %arg6: memref<9x8x8xf32, #tpu.memory_space<vmem>>, %arg7: memref<8x1xf32, #tpu.memory_space<vmem>>, %arg8: memref<8x1xf32, #tpu.memory_space<vmem>>, %arg9: memref<8x1xf32, #tpu.memory_space<vmem>>, %arg10: memref<8x1xf32, #tpu.memory_space<vmem>>, %arg11: memref<8x512xf32, #tpu.memory_space<vmem>>, %arg12: memref<8x768xf32, #tpu.memory_space<vmem>>) attributes {dimension_semantics = [#tpu.dimension_semantics<arbitrary>], iteration_bounds = array<i64: 1>, scalar_prefetch = 0 : i64, scratch_operands = 1 : i64, tpu.core_type = #tpu.core_type<tc>, window_params = [{pipeline_mode = #tpu.pipeline_mode<synchronous>, transform_indices = @transform_0, window_bounds = array<i64: 8, 768>}, {pipeline_mode = #tpu.pipeline_mode<synchronous>, transform_indices = @transform_1, window_bounds = array<i64: 10, 1, 512>}, {pipeline_mode = #tpu.pipeline_mode<synchronous>, transform_indices = @transform_2, window_bounds = array<i64: 4, 8, 8>}, {pipeline_mode = #tpu.pipeline_mode<synchronous>, transform_indices = @transform_3, window_bounds = array<i64: 8, 1>}, {pipeline_mode = #tpu.pipeline_mode<synchronous>, transform_indices = @transform_4, window_bounds = array<i64: 9, 8, 8>}, {pipeline_mode = #tpu.pipeline_mode<synchronous>, transform_indices = @transform_5, window_bounds = array<i64: 9, 8, 8>}, {pipeline_mode = #tpu.pipeline_mode<synchronous>, transform_indices = @transform_6, window_bounds = array<i64: 8, 1>}, {pipeline_mode = #tpu.pipeline_mode<synchronous>, transform_indices = @transform_7, window_bounds = array<i64: 8, 1>}, {pipeline_mode = #tpu.pipeline_mode<synchronous>, transform_indices = @transform_8, window_bounds = array<i64: 8, 1>}, {pipeline_mode = #tpu.pipeline_mode<synchronous>, transform_indices = @transform_9, window_bounds = array<i64: 8, 1>}, {pipeline_mode = #tpu.pipeline_mode<synchronous>, transform_indices = @transform_10, window_bounds = array<i64: 8, 512>}]} {
    %cst = arith.constant 0.000000e+00 : f32
    %0 = vector.broadcast %cst : f32 to vector<8x768xf32>
    %c0 = arith.constant 0 : index
    %c0_0 = arith.constant 0 : index
    %1 = vector.load %arg12[%c0, %c0_0] : memref<8x768xf32, #tpu.memory_space<vmem>>, vector<8x768xf32>
    tpu.vector_store %arg12[%c0, %c0_0], %0 {strides = array<i32>} : memref<8x768xf32, #tpu.memory_space<vmem>>, vector<8x768xf32>,
    %c0_1 = arith.constant 0 : index
    %c128 = arith.constant 128 : index
    %2 = vector.load %arg1[%c0_1, %c128] : memref<8x768xf32, #tpu.memory_space<vmem>>, vector<8x512xf32>
    %c0_2 = arith.constant 0 : index
    %c0_3 = arith.constant 0 : index
    %c0_4 = arith.constant 0 : index
    %3 = vector.load %arg3[%c0_2, %c0_3, %c0_4] : memref<4x8x8xf32, #tpu.memory_space<vmem>>, vector<1x8x8xf32>
    %4 = vector.shape_cast %3 : vector<1x8x8xf32> to vector<8x8xf32>
    %cst_5 = arith.constant dense<0.000000e+00> : vector<8x512xf32>
    %5 = tpu.matmul %4, %2, %cst_5 {dimension_numbers = #tpu.dot_dimension_numbers<[1], [0], [0], [1], [0, 0, 1, 1], [], []>} : vector<8x8xf32>, vector<8x512xf32>, vector<8x512xf32> -> vector<8x512xf32>
    %c0_6 = arith.constant 0 : index
    %c129 = arith.constant 129 : index
    %6 = vector.load %arg1[%c0_6, %c129] : memref<8x768xf32, #tpu.memory_space<vmem>>, vector<8x512xf32>
    %c1 = arith.constant 1 : index
    %c0_7 = arith.constant 0 : index
    %c0_8 = arith.constant 0 : index
    %7 = vector.load %arg3[%c1, %c0_7, %c0_8] : memref<4x8x8xf32, #tpu.memory_space<vmem>>, vector<1x8x8xf32>
    %8 = vector.shape_cast %7 : vector<1x8x8xf32> to vector<8x8xf32>
    %cst_9 = arith.constant dense<0.000000e+00> : vector<8x512xf32>
    %9 = tpu.matmul %8, %6, %cst_9 {dimension_numbers = #tpu.dot_dimension_numbers<[1], [0], [0], [1], [0, 0, 1, 1], [], []>} : vector<8x8xf32>, vector<8x512xf32>, vector<8x512xf32> -> vector<8x512xf32>
    %10 = arith.addf %5, %9 : vector<8x512xf32>
    %c0_10 = arith.constant 0 : index
    %c144 = arith.constant 144 : index
    %11 = vector.load %arg1[%c0_10, %c144] : memref<8x768xf32, #tpu.memory_space<vmem>>, vector<8x512xf32>
    %c2 = arith.constant 2 : index
    %c0_11 = arith.constant 0 : index
    %c0_12 = arith.constant 0 : index
    %12 = vector.load %arg3[%c2, %c0_11, %c0_12] : memref<4x8x8xf32, #tpu.memory_space<vmem>>, vector<1x8x8xf32>
    %13 = vector.shape_cast %12 : vector<1x8x8xf32> to vector<8x8xf32>
    %cst_13 = arith.constant dense<0.000000e+00> : vector<8x512xf32>
    %14 = tpu.matmul %13, %11, %cst_13 {dimension_numbers = #tpu.dot_dimension_numbers<[1], [0], [0], [1], [0, 0, 1, 1], [], []>} : vector<8x8xf32>, vector<8x512xf32>, vector<8x512xf32> -> vector<8x512xf32>
    %15 = arith.addf %10, %14 : vector<8x512xf32>
    %c0_14 = arith.constant 0 : index
    %c145 = arith.constant 145 : index
    %16 = vector.load %arg1[%c0_14, %c145] : memref<8x768xf32, #tpu.memory_space<vmem>>, vector<8x512xf32>
    %c3 = arith.constant 3 : index
    %c0_15 = arith.constant 0 : index
    %c0_16 = arith.constant 0 : index
    %17 = vector.load %arg3[%c3, %c0_15, %c0_16] : memref<4x8x8xf32, #tpu.memory_space<vmem>>, vector<1x8x8xf32>
    %18 = vector.shape_cast %17 : vector<1x8x8xf32> to vector<8x8xf32>
    %cst_17 = arith.constant dense<0.000000e+00> : vector<8x512xf32>
    %19 = tpu.matmul %18, %16, %cst_17 {dimension_numbers = #tpu.dot_dimension_numbers<[1], [0], [0], [1], [0, 0, 1, 1], [], []>} : vector<8x8xf32>, vector<8x512xf32>, vector<8x512xf32> -> vector<8x512xf32>
    %20 = arith.addf %15, %19 : vector<8x512xf32>
    %c0_18 = arith.constant 0 : index
    %c0_19 = arith.constant 0 : index
    %21 = vector.load %arg4[%c0_18, %c0_19] : memref<8x1xf32, #tpu.memory_space<vmem>>, vector<8x1xf32>
    %22 = vector.broadcast %21 : vector<8x1xf32> to vector<8x512xf32>
    %23 = arith.addf %20, %22 : vector<8x512xf32>
    %cst_20 = arith.constant 0.000000e+00 : f32
    %24 = vector.broadcast %cst_20 : f32 to vector<8x512xf32>
    %25 = arith.maximumf %23, %24 : vector<8x512xf32>
    %c9 = arith.constant 9 : index
    %c0_21 = arith.constant 0 : index
    %c0_22 = arith.constant 0 : index
    %26 = vector.load %arg2[%c9, %c0_21, %c0_22] : memref<10x1x512xf32, #tpu.memory_space<vmem>>, vector<1x1x512xf32>
    %27 = vector.shape_cast %26 : vector<1x1x512xf32> to vector<1x512xf32>
    %28 = vector.broadcast %27 : vector<1x512xf32> to vector<8x512xf32>
    %29 = arith.mulf %25, %28 : vector<8x512xf32>
    %c0_23 = arith.constant 0 : index
    %c128_24 = arith.constant 128 : index
    %30 = vector.load %arg12[%c0_23, %c128_24] : memref<8x768xf32, #tpu.memory_space<vmem>>, vector<8x512xf32>
    tpu.vector_store %arg12[%c0_23, %c128_24], %29 {strides = array<i32>} : memref<8x768xf32, #tpu.memory_space<vmem>>, vector<8x512xf32>,
    %c0_25 = arith.constant 0 : index
    %c111 = arith.constant 111 : index
    %31 = vector.load %arg12[%c0_25, %c111] : memref<8x768xf32, #tpu.memory_space<vmem>>, vector<8x512xf32>
    %c0_26 = arith.constant 0 : index
    %c0_27 = arith.constant 0 : index
    %c0_28 = arith.constant 0 : index
    %32 = vector.load %arg2[%c0_26, %c0_27, %c0_28] : memref<10x1x512xf32, #tpu.memory_space<vmem>>, vector<1x1x512xf32>
    %33 = vector.shape_cast %32 : vector<1x1x512xf32> to vector<1x512xf32>
    %34 = vector.broadcast %33 : vector<1x512xf32> to vector<8x512xf32>
    %35 = arith.mulf %31, %34 : vector<8x512xf32>
    %c0_29 = arith.constant 0 : index
    %c0_30 = arith.constant 0 : index
    %c0_31 = arith.constant 0 : index
    %36 = vector.load %arg5[%c0_29, %c0_30, %c0_31] : memref<9x8x8xf32, #tpu.memory_space<vmem>>, vector<1x8x8xf32>
    %37 = vector.shape_cast %36 : vector<1x8x8xf32> to vector<8x8xf32>
    %cst_32 = arith.constant dense<0.000000e+00> : vector<8x512xf32>
    %38 = tpu.matmul %37, %35, %cst_32 {dimension_numbers = #tpu.dot_dimension_numbers<[1], [0], [0], [1], [0, 0, 1, 1], [], []>} : vector<8x8xf32>, vector<8x512xf32>, vector<8x512xf32> -> vector<8x512xf32>
    %c0_33 = arith.constant 0 : index
    %c112 = arith.constant 112 : index
    %39 = vector.load %arg12[%c0_33, %c112] : memref<8x768xf32, #tpu.memory_space<vmem>>, vector<8x512xf32>
    %c1_34 = arith.constant 1 : index
    %c0_35 = arith.constant 0 : index
    %c0_36 = arith.constant 0 : index
    %40 = vector.load %arg2[%c1_34, %c0_35, %c0_36] : memref<10x1x512xf32, #tpu.memory_space<vmem>>, vector<1x1x512xf32>
    %41 = vector.shape_cast %40 : vector<1x1x512xf32> to vector<1x512xf32>
    %42 = vector.broadcast %41 : vector<1x512xf32> to vector<8x512xf32>
    %43 = arith.mulf %39, %42 : vector<8x512xf32>
    %c1_37 = arith.constant 1 : index
    %c0_38 = arith.constant 0 : index
    %c0_39 = arith.constant 0 : index
    %44 = vector.load %arg5[%c1_37, %c0_38, %c0_39] : memref<9x8x8xf32, #tpu.memory_space<vmem>>, vector<1x8x8xf32>
    %45 = vector.shape_cast %44 : vector<1x8x8xf32> to vector<8x8xf32>
    %cst_40 = arith.constant dense<0.000000e+00> : vector<8x512xf32>
    %46 = tpu.matmul %45, %43, %cst_40 {dimension_numbers = #tpu.dot_dimension_numbers<[1], [0], [0], [1], [0, 0, 1, 1], [], []>} : vector<8x8xf32>, vector<8x512xf32>, vector<8x512xf32> -> vector<8x512xf32>
    %47 = arith.addf %38, %46 : vector<8x512xf32>
    %c0_41 = arith.constant 0 : index
    %c113 = arith.constant 113 : index
    %48 = vector.load %arg12[%c0_41, %c113] : memref<8x768xf32, #tpu.memory_space<vmem>>, vector<8x512xf32>
    %c2_42 = arith.constant 2 : index
    %c0_43 = arith.constant 0 : index
    %c0_44 = arith.constant 0 : index
    %49 = vector.load %arg2[%c2_42, %c0_43, %c0_44] : memref<10x1x512xf32, #tpu.memory_space<vmem>>, vector<1x1x512xf32>
    %50 = vector.shape_cast %49 : vector<1x1x512xf32> to vector<1x512xf32>
    %51 = vector.broadcast %50 : vector<1x512xf32> to vector<8x512xf32>
    %52 = arith.mulf %48, %51 : vector<8x512xf32>
    %c2_45 = arith.constant 2 : index
    %c0_46 = arith.constant 0 : index
    %c0_47 = arith.constant 0 : index
    %53 = vector.load %arg5[%c2_45, %c0_46, %c0_47] : memref<9x8x8xf32, #tpu.memory_space<vmem>>, vector<1x8x8xf32>
    %54 = vector.shape_cast %53 : vector<1x8x8xf32> to vector<8x8xf32>
    %cst_48 = arith.constant dense<0.000000e+00> : vector<8x512xf32>
    %55 = tpu.matmul %54, %52, %cst_48 {dimension_numbers = #tpu.dot_dimension_numbers<[1], [0], [0], [1], [0, 0, 1, 1], [], []>} : vector<8x8xf32>, vector<8x512xf32>, vector<8x512xf32> -> vector<8x512xf32>
    %56 = arith.addf %47, %55 : vector<8x512xf32>
    %c0_49 = arith.constant 0 : index
    %c127 = arith.constant 127 : index
    %57 = vector.load %arg12[%c0_49, %c127] : memref<8x768xf32, #tpu.memory_space<vmem>>, vector<8x512xf32>
    %c3_50 = arith.constant 3 : index
    %c0_51 = arith.constant 0 : index
    %c0_52 = arith.constant 0 : index
    %58 = vector.load %arg2[%c3_50, %c0_51, %c0_52] : memref<10x1x512xf32, #tpu.memory_space<vmem>>, vector<1x1x512xf32>
    %59 = vector.shape_cast %58 : vector<1x1x512xf32> to vector<1x512xf32>
    %60 = vector.broadcast %59 : vector<1x512xf32> to vector<8x512xf32>
    %61 = arith.mulf %57, %60 : vector<8x512xf32>
    %c3_53 = arith.constant 3 : index
    %c0_54 = arith.constant 0 : index
    %c0_55 = arith.constant 0 : index
    %62 = vector.load %arg5[%c3_53, %c0_54, %c0_55] : memref<9x8x8xf32, #tpu.memory_space<vmem>>, vector<1x8x8xf32>
    %63 = vector.shape_cast %62 : vector<1x8x8xf32> to vector<8x8xf32>
    %cst_56 = arith.constant dense<0.000000e+00> : vector<8x512xf32>
    %64 = tpu.matmul %63, %61, %cst_56 {dimension_numbers = #tpu.dot_dimension_numbers<[1], [0], [0], [1], [0, 0, 1, 1], [], []>} : vector<8x8xf32>, vector<8x512xf32>, vector<8x512xf32> -> vector<8x512xf32>
    %65 = arith.addf %56, %64 : vector<8x512xf32>
    %c0_57 = arith.constant 0 : index
    %c128_58 = arith.constant 128 : index
    %66 = vector.load %arg12[%c0_57, %c128_58] : memref<8x768xf32, #tpu.memory_space<vmem>>, vector<8x512xf32>
    %c4 = arith.constant 4 : index
    %c0_59 = arith.constant 0 : index
    %c0_60 = arith.constant 0 : index
    %67 = vector.load %arg2[%c4, %c0_59, %c0_60] : memref<10x1x512xf32, #tpu.memory_space<vmem>>, vector<1x1x512xf32>
    %68 = vector.shape_cast %67 : vector<1x1x512xf32> to vector<1x512xf32>
    %69 = vector.broadcast %68 : vector<1x512xf32> to vector<8x512xf32>
    %70 = arith.mulf %66, %69 : vector<8x512xf32>
    %c4_61 = arith.constant 4 : index
    %c0_62 = arith.constant 0 : index
    %c0_63 = arith.constant 0 : index
    %71 = vector.load %arg5[%c4_61, %c0_62, %c0_63] : memref<9x8x8xf32, #tpu.memory_space<vmem>>, vector<1x8x8xf32>
    %72 = vector.shape_cast %71 : vector<1x8x8xf32> to vector<8x8xf32>
    %cst_64 = arith.constant dense<0.000000e+00> : vector<8x512xf32>
    %73 = tpu.matmul %72, %70, %cst_64 {dimension_numbers = #tpu.dot_dimension_numbers<[1], [0], [0], [1], [0, 0, 1, 1], [], []>} : vector<8x8xf32>, vector<8x512xf32>, vector<8x512xf32> -> vector<8x512xf32>
    %74 = arith.addf %65, %73 : vector<8x512xf32>
    %c0_65 = arith.constant 0 : index
    %c129_66 = arith.constant 129 : index
    %75 = vector.load %arg12[%c0_65, %c129_66] : memref<8x768xf32, #tpu.memory_space<vmem>>, vector<8x512xf32>
    %c5 = arith.constant 5 : index
    %c0_67 = arith.constant 0 : index
    %c0_68 = arith.constant 0 : index
    %76 = vector.load %arg2[%c5, %c0_67, %c0_68] : memref<10x1x512xf32, #tpu.memory_space<vmem>>, vector<1x1x512xf32>
    %77 = vector.shape_cast %76 : vector<1x1x512xf32> to vector<1x512xf32>
    %78 = vector.broadcast %77 : vector<1x512xf32> to vector<8x512xf32>
    %79 = arith.mulf %75, %78 : vector<8x512xf32>
    %c5_69 = arith.constant 5 : index
    %c0_70 = arith.constant 0 : index
    %c0_71 = arith.constant 0 : index
    %80 = vector.load %arg5[%c5_69, %c0_70, %c0_71] : memref<9x8x8xf32, #tpu.memory_space<vmem>>, vector<1x8x8xf32>
    %81 = vector.shape_cast %80 : vector<1x8x8xf32> to vector<8x8xf32>
    %cst_72 = arith.constant dense<0.000000e+00> : vector<8x512xf32>
    %82 = tpu.matmul %81, %79, %cst_72 {dimension_numbers = #tpu.dot_dimension_numbers<[1], [0], [0], [1], [0, 0, 1, 1], [], []>} : vector<8x8xf32>, vector<8x512xf32>, vector<8x512xf32> -> vector<8x512xf32>
    %83 = arith.addf %74, %82 : vector<8x512xf32>
    %c0_73 = arith.constant 0 : index
    %c143 = arith.constant 143 : index
    %84 = vector.load %arg12[%c0_73, %c143] : memref<8x768xf32, #tpu.memory_space<vmem>>, vector<8x512xf32>
    %c6 = arith.constant 6 : index
    %c0_74 = arith.constant 0 : index
    %c0_75 = arith.constant 0 : index
    %85 = vector.load %arg2[%c6, %c0_74, %c0_75] : memref<10x1x512xf32, #tpu.memory_space<vmem>>, vector<1x1x512xf32>
    %86 = vector.shape_cast %85 : vector<1x1x512xf32> to vector<1x512xf32>
    %87 = vector.broadcast %86 : vector<1x512xf32> to vector<8x512xf32>
    %88 = arith.mulf %84, %87 : vector<8x512xf32>
    %c6_76 = arith.constant 6 : index
    %c0_77 = arith.constant 0 : index
    %c0_78 = arith.constant 0 : index
    %89 = vector.load %arg5[%c6_76, %c0_77, %c0_78] : memref<9x8x8xf32, #tpu.memory_space<vmem>>, vector<1x8x8xf32>
    %90 = vector.shape_cast %89 : vector<1x8x8xf32> to vector<8x8xf32>
    %cst_79 = arith.constant dense<0.000000e+00> : vector<8x512xf32>
    %91 = tpu.matmul %90, %88, %cst_79 {dimension_numbers = #tpu.dot_dimension_numbers<[1], [0], [0], [1], [0, 0, 1, 1], [], []>} : vector<8x8xf32>, vector<8x512xf32>, vector<8x512xf32> -> vector<8x512xf32>
    %92 = arith.addf %83, %91 : vector<8x512xf32>
    %c0_80 = arith.constant 0 : index
    %c144_81 = arith.constant 144 : index
    %93 = vector.load %arg12[%c0_80, %c144_81] : memref<8x768xf32, #tpu.memory_space<vmem>>, vector<8x512xf32>
    %c7 = arith.constant 7 : index
    %c0_82 = arith.constant 0 : index
    %c0_83 = arith.constant 0 : index
    %94 = vector.load %arg2[%c7, %c0_82, %c0_83] : memref<10x1x512xf32, #tpu.memory_space<vmem>>, vector<1x1x512xf32>
    %95 = vector.shape_cast %94 : vector<1x1x512xf32> to vector<1x512xf32>
    %96 = vector.broadcast %95 : vector<1x512xf32> to vector<8x512xf32>
    %97 = arith.mulf %93, %96 : vector<8x512xf32>
    %c7_84 = arith.constant 7 : index
    %c0_85 = arith.constant 0 : index
    %c0_86 = arith.constant 0 : index
    %98 = vector.load %arg5[%c7_84, %c0_85, %c0_86] : memref<9x8x8xf32, #tpu.memory_space<vmem>>, vector<1x8x8xf32>
    %99 = vector.shape_cast %98 : vector<1x8x8xf32> to vector<8x8xf32>
    %cst_87 = arith.constant dense<0.000000e+00> : vector<8x512xf32>
    %100 = tpu.matmul %99, %97, %cst_87 {dimension_numbers = #tpu.dot_dimension_numbers<[1], [0], [0], [1], [0, 0, 1, 1], [], []>} : vector<8x8xf32>, vector<8x512xf32>, vector<8x512xf32> -> vector<8x512xf32>
    %101 = arith.addf %92, %100 : vector<8x512xf32>
    %c0_88 = arith.constant 0 : index
    %c145_89 = arith.constant 145 : index
    %102 = vector.load %arg12[%c0_88, %c145_89] : memref<8x768xf32, #tpu.memory_space<vmem>>, vector<8x512xf32>
    %c8 = arith.constant 8 : index
    %c0_90 = arith.constant 0 : index
    %c0_91 = arith.constant 0 : index
    %103 = vector.load %arg2[%c8, %c0_90, %c0_91] : memref<10x1x512xf32, #tpu.memory_space<vmem>>, vector<1x1x512xf32>
    %104 = vector.shape_cast %103 : vector<1x1x512xf32> to vector<1x512xf32>
    %105 = vector.broadcast %104 : vector<1x512xf32> to vector<8x512xf32>
    %106 = arith.mulf %102, %105 : vector<8x512xf32>
    %c8_92 = arith.constant 8 : index
    %c0_93 = arith.constant 0 : index
    %c0_94 = arith.constant 0 : index
    %107 = vector.load %arg5[%c8_92, %c0_93, %c0_94] : memref<9x8x8xf32, #tpu.memory_space<vmem>>, vector<1x8x8xf32>
    %108 = vector.shape_cast %107 : vector<1x8x8xf32> to vector<8x8xf32>
    %cst_95 = arith.constant dense<0.000000e+00> : vector<8x512xf32>
    %109 = tpu.matmul %108, %106, %cst_95 {dimension_numbers = #tpu.dot_dimension_numbers<[1], [0], [0], [1], [0, 0, 1, 1], [], []>} : vector<8x8xf32>, vector<8x512xf32>, vector<8x512xf32> -> vector<8x512xf32>
    %110 = arith.addf %101, %109 : vector<8x512xf32>
    %cst_96 = arith.constant dense<0.000000e+00> : vector<8xf32>
    %111 = vector.multi_reduction <add>, %110, %cst_96 [1] : vector<8x512xf32> to vector<8xf32>
    %112 = vector.shape_cast %111 : vector<8xf32> to vector<8x1xf32>
    %cst_97 = arith.constant 5.120000e+02 : f32
    %113 = vector.broadcast %cst_97 : f32 to vector<8x1xf32>
    %114 = arith.divf %112, %113 : vector<8x1xf32>
    %115 = vector.broadcast %114 : vector<8x1xf32> to vector<8x512xf32>
    %116 = arith.subf %110, %115 : vector<8x512xf32>
    %117 = arith.mulf %116, %116 : vector<8x512xf32>
    %cst_98 = arith.constant dense<0.000000e+00> : vector<8xf32>
    %118 = vector.multi_reduction <add>, %117, %cst_98 [1] : vector<8x512xf32> to vector<8xf32>
    %119 = vector.shape_cast %118 : vector<8xf32> to vector<8x1xf32>
    %cst_99 = arith.constant 5.120000e+02 : f32
    %120 = vector.broadcast %cst_99 : f32 to vector<8x1xf32>
    %121 = arith.divf %119, %120 : vector<8x1xf32>
    %c0_100 = arith.constant 0 : index
    %c0_101 = arith.constant 0 : index
    %122 = vector.load %arg7[%c0_100, %c0_101] : memref<8x1xf32, #tpu.memory_space<vmem>>, vector<8x1xf32>
    %cst_102 = arith.constant 9.99999974E-6 : f32
    %123 = vector.broadcast %cst_102 : f32 to vector<8x1xf32>
    %124 = arith.addf %121, %123 : vector<8x1xf32>
    %125 = math.rsqrt %124 : vector<8x1xf32>
    %126 = arith.mulf %122, %125 : vector<8x1xf32>
    %127 = vector.broadcast %114 : vector<8x1xf32> to vector<8x512xf32>
    %128 = arith.subf %110, %127 : vector<8x512xf32>
    %129 = vector.broadcast %126 : vector<8x1xf32> to vector<8x512xf32>
    %130 = arith.mulf %128, %129 : vector<8x512xf32>
    %c0_103 = arith.constant 0 : index
    %c0_104 = arith.constant 0 : index
    %131 = vector.load %arg8[%c0_103, %c0_104] : memref<8x1xf32, #tpu.memory_space<vmem>>, vector<8x1xf32>
    %132 = vector.broadcast %131 : vector<8x1xf32> to vector<8x512xf32>
    %133 = arith.addf %130, %132 : vector<8x512xf32>
    %cst_105 = arith.constant 0.000000e+00 : f32
    %134 = vector.broadcast %cst_105 : f32 to vector<8x512xf32>
    %135 = arith.maximumf %133, %134 : vector<8x512xf32>
    %c0_106 = arith.constant 0 : index
    %c128_107 = arith.constant 128 : index
    %136 = vector.load %arg12[%c0_106, %c128_107] : memref<8x768xf32, #tpu.memory_space<vmem>>, vector<8x512xf32>
    tpu.vector_store %arg12[%c0_106, %c128_107], %135 {strides = array<i32>} : memref<8x768xf32, #tpu.memory_space<vmem>>, vector<8x512xf32>,
    %c0_108 = arith.constant 0 : index
    %c111_109 = arith.constant 111 : index
    %137 = vector.load %arg12[%c0_108, %c111_109] : memref<8x768xf32, #tpu.memory_space<vmem>>, vector<8x512xf32>
    %c0_110 = arith.constant 0 : index
    %c0_111 = arith.constant 0 : index
    %c0_112 = arith.constant 0 : index
    %138 = vector.load %arg2[%c0_110, %c0_111, %c0_112] : memref<10x1x512xf32, #tpu.memory_space<vmem>>, vector<1x1x512xf32>
    %139 = vector.shape_cast %138 : vector<1x1x512xf32> to vector<1x512xf32>
    %140 = vector.broadcast %139 : vector<1x512xf32> to vector<8x512xf32>
    %141 = arith.mulf %137, %140 : vector<8x512xf32>
    %c0_113 = arith.constant 0 : index
    %c0_114 = arith.constant 0 : index
    %c0_115 = arith.constant 0 : index
    %142 = vector.load %arg6[%c0_113, %c0_114, %c0_115] : memref<9x8x8xf32, #tpu.memory_space<vmem>>, vector<1x8x8xf32>
    %143 = vector.shape_cast %142 : vector<1x8x8xf32> to vector<8x8xf32>
    %cst_116 = arith.constant dense<0.000000e+00> : vector<8x512xf32>
    %144 = tpu.matmul %143, %141, %cst_116 {dimension_numbers = #tpu.dot_dimension_numbers<[1], [0], [0], [1], [0, 0, 1, 1], [], []>} : vector<8x8xf32>, vector<8x512xf32>, vector<8x512xf32> -> vector<8x512xf32>
    %c0_117 = arith.constant 0 : index
    %c112_118 = arith.constant 112 : index
    %145 = vector.load %arg12[%c0_117, %c112_118] : memref<8x768xf32, #tpu.memory_space<vmem>>, vector<8x512xf32>
    %c1_119 = arith.constant 1 : index
    %c0_120 = arith.constant 0 : index
    %c0_121 = arith.constant 0 : index
    %146 = vector.load %arg2[%c1_119, %c0_120, %c0_121] : memref<10x1x512xf32, #tpu.memory_space<vmem>>, vector<1x1x512xf32>
    %147 = vector.shape_cast %146 : vector<1x1x512xf32> to vector<1x512xf32>
    %148 = vector.broadcast %147 : vector<1x512xf32> to vector<8x512xf32>
    %149 = arith.mulf %145, %148 : vector<8x512xf32>
    %c1_122 = arith.constant 1 : index
    %c0_123 = arith.constant 0 : index
    %c0_124 = arith.constant 0 : index
    %150 = vector.load %arg6[%c1_122, %c0_123, %c0_124] : memref<9x8x8xf32, #tpu.memory_space<vmem>>, vector<1x8x8xf32>
    %151 = vector.shape_cast %150 : vector<1x8x8xf32> to vector<8x8xf32>
    %cst_125 = arith.constant dense<0.000000e+00> : vector<8x512xf32>
    %152 = tpu.matmul %151, %149, %cst_125 {dimension_numbers = #tpu.dot_dimension_numbers<[1], [0], [0], [1], [0, 0, 1, 1], [], []>} : vector<8x8xf32>, vector<8x512xf32>, vector<8x512xf32> -> vector<8x512xf32>
    %153 = arith.addf %144, %152 : vector<8x512xf32>
    %c0_126 = arith.constant 0 : index
    %c113_127 = arith.constant 113 : index
    %154 = vector.load %arg12[%c0_126, %c113_127] : memref<8x768xf32, #tpu.memory_space<vmem>>, vector<8x512xf32>
    %c2_128 = arith.constant 2 : index
    %c0_129 = arith.constant 0 : index
    %c0_130 = arith.constant 0 : index
    %155 = vector.load %arg2[%c2_128, %c0_129, %c0_130] : memref<10x1x512xf32, #tpu.memory_space<vmem>>, vector<1x1x512xf32>
    %156 = vector.shape_cast %155 : vector<1x1x512xf32> to vector<1x512xf32>
    %157 = vector.broadcast %156 : vector<1x512xf32> to vector<8x512xf32>
    %158 = arith.mulf %154, %157 : vector<8x512xf32>
    %c2_131 = arith.constant 2 : index
    %c0_132 = arith.constant 0 : index
    %c0_133 = arith.constant 0 : index
    %159 = vector.load %arg6[%c2_131, %c0_132, %c0_133] : memref<9x8x8xf32, #tpu.memory_space<vmem>>, vector<1x8x8xf32>
    %160 = vector.shape_cast %159 : vector<1x8x8xf32> to vector<8x8xf32>
    %cst_134 = arith.constant dense<0.000000e+00> : vector<8x512xf32>
    %161 = tpu.matmul %160, %158, %cst_134 {dimension_numbers = #tpu.dot_dimension_numbers<[1], [0], [0], [1], [0, 0, 1, 1], [], []>} : vector<8x8xf32>, vector<8x512xf32>, vector<8x512xf32> -> vector<8x512xf32>
    %162 = arith.addf %153, %161 : vector<8x512xf32>
    %c0_135 = arith.constant 0 : index
    %c127_136 = arith.constant 127 : index
    %163 = vector.load %arg12[%c0_135, %c127_136] : memref<8x768xf32, #tpu.memory_space<vmem>>, vector<8x512xf32>
    %c3_137 = arith.constant 3 : index
    %c0_138 = arith.constant 0 : index
    %c0_139 = arith.constant 0 : index
    %164 = vector.load %arg2[%c3_137, %c0_138, %c0_139] : memref<10x1x512xf32, #tpu.memory_space<vmem>>, vector<1x1x512xf32>
    %165 = vector.shape_cast %164 : vector<1x1x512xf32> to vector<1x512xf32>
    %166 = vector.broadcast %165 : vector<1x512xf32> to vector<8x512xf32>
    %167 = arith.mulf %163, %166 : vector<8x512xf32>
    %c3_140 = arith.constant 3 : index
    %c0_141 = arith.constant 0 : index
    %c0_142 = arith.constant 0 : index
    %168 = vector.load %arg6[%c3_140, %c0_141, %c0_142] : memref<9x8x8xf32, #tpu.memory_space<vmem>>, vector<1x8x8xf32>
    %169 = vector.shape_cast %168 : vector<1x8x8xf32> to vector<8x8xf32>
    %cst_143 = arith.constant dense<0.000000e+00> : vector<8x512xf32>
    %170 = tpu.matmul %169, %167, %cst_143 {dimension_numbers = #tpu.dot_dimension_numbers<[1], [0], [0], [1], [0, 0, 1, 1], [], []>} : vector<8x8xf32>, vector<8x512xf32>, vector<8x512xf32> -> vector<8x512xf32>
    %171 = arith.addf %162, %170 : vector<8x512xf32>
    %c0_144 = arith.constant 0 : index
    %c128_145 = arith.constant 128 : index
    %172 = vector.load %arg12[%c0_144, %c128_145] : memref<8x768xf32, #tpu.memory_space<vmem>>, vector<8x512xf32>
    %c4_146 = arith.constant 4 : index
    %c0_147 = arith.constant 0 : index
    %c0_148 = arith.constant 0 : index
    %173 = vector.load %arg2[%c4_146, %c0_147, %c0_148] : memref<10x1x512xf32, #tpu.memory_space<vmem>>, vector<1x1x512xf32>
    %174 = vector.shape_cast %173 : vector<1x1x512xf32> to vector<1x512xf32>
    %175 = vector.broadcast %174 : vector<1x512xf32> to vector<8x512xf32>
    %176 = arith.mulf %172, %175 : vector<8x512xf32>
    %c4_149 = arith.constant 4 : index
    %c0_150 = arith.constant 0 : index
    %c0_151 = arith.constant 0 : index
    %177 = vector.load %arg6[%c4_149, %c0_150, %c0_151] : memref<9x8x8xf32, #tpu.memory_space<vmem>>, vector<1x8x8xf32>
    %178 = vector.shape_cast %177 : vector<1x8x8xf32> to vector<8x8xf32>
    %cst_152 = arith.constant dense<0.000000e+00> : vector<8x512xf32>
    %179 = tpu.matmul %178, %176, %cst_152 {dimension_numbers = #tpu.dot_dimension_numbers<[1], [0], [0], [1], [0, 0, 1, 1], [], []>} : vector<8x8xf32>, vector<8x512xf32>, vector<8x512xf32> -> vector<8x512xf32>
    %180 = arith.addf %171, %179 : vector<8x512xf32>
    %c0_153 = arith.constant 0 : index
    %c129_154 = arith.constant 129 : index
    %181 = vector.load %arg12[%c0_153, %c129_154] : memref<8x768xf32, #tpu.memory_space<vmem>>, vector<8x512xf32>
    %c5_155 = arith.constant 5 : index
    %c0_156 = arith.constant 0 : index
    %c0_157 = arith.constant 0 : index
    %182 = vector.load %arg2[%c5_155, %c0_156, %c0_157] : memref<10x1x512xf32, #tpu.memory_space<vmem>>, vector<1x1x512xf32>
    %183 = vector.shape_cast %182 : vector<1x1x512xf32> to vector<1x512xf32>
    %184 = vector.broadcast %183 : vector<1x512xf32> to vector<8x512xf32>
    %185 = arith.mulf %181, %184 : vector<8x512xf32>
    %c5_158 = arith.constant 5 : index
    %c0_159 = arith.constant 0 : index
    %c0_160 = arith.constant 0 : index
    %186 = vector.load %arg6[%c5_158, %c0_159, %c0_160] : memref<9x8x8xf32, #tpu.memory_space<vmem>>, vector<1x8x8xf32>
    %187 = vector.shape_cast %186 : vector<1x8x8xf32> to vector<8x8xf32>
    %cst_161 = arith.constant dense<0.000000e+00> : vector<8x512xf32>
    %188 = tpu.matmul %187, %185, %cst_161 {dimension_numbers = #tpu.dot_dimension_numbers<[1], [0], [0], [1], [0, 0, 1, 1], [], []>} : vector<8x8xf32>, vector<8x512xf32>, vector<8x512xf32> -> vector<8x512xf32>
    %189 = arith.addf %180, %188 : vector<8x512xf32>
    %c0_162 = arith.constant 0 : index
    %c143_163 = arith.constant 143 : index
    %190 = vector.load %arg12[%c0_162, %c143_163] : memref<8x768xf32, #tpu.memory_space<vmem>>, vector<8x512xf32>
    %c6_164 = arith.constant 6 : index
    %c0_165 = arith.constant 0 : index
    %c0_166 = arith.constant 0 : index
    %191 = vector.load %arg2[%c6_164, %c0_165, %c0_166] : memref<10x1x512xf32, #tpu.memory_space<vmem>>, vector<1x1x512xf32>
    %192 = vector.shape_cast %191 : vector<1x1x512xf32> to vector<1x512xf32>
    %193 = vector.broadcast %192 : vector<1x512xf32> to vector<8x512xf32>
    %194 = arith.mulf %190, %193 : vector<8x512xf32>
    %c6_167 = arith.constant 6 : index
    %c0_168 = arith.constant 0 : index
    %c0_169 = arith.constant 0 : index
    %195 = vector.load %arg6[%c6_167, %c0_168, %c0_169] : memref<9x8x8xf32, #tpu.memory_space<vmem>>, vector<1x8x8xf32>
    %196 = vector.shape_cast %195 : vector<1x8x8xf32> to vector<8x8xf32>
    %cst_170 = arith.constant dense<0.000000e+00> : vector<8x512xf32>
    %197 = tpu.matmul %196, %194, %cst_170 {dimension_numbers = #tpu.dot_dimension_numbers<[1], [0], [0], [1], [0, 0, 1, 1], [], []>} : vector<8x8xf32>, vector<8x512xf32>, vector<8x512xf32> -> vector<8x512xf32>
    %198 = arith.addf %189, %197 : vector<8x512xf32>
    %c0_171 = arith.constant 0 : index
    %c144_172 = arith.constant 144 : index
    %199 = vector.load %arg12[%c0_171, %c144_172] : memref<8x768xf32, #tpu.memory_space<vmem>>, vector<8x512xf32>
    %c7_173 = arith.constant 7 : index
    %c0_174 = arith.constant 0 : index
    %c0_175 = arith.constant 0 : index
    %200 = vector.load %arg2[%c7_173, %c0_174, %c0_175] : memref<10x1x512xf32, #tpu.memory_space<vmem>>, vector<1x1x512xf32>
    %201 = vector.shape_cast %200 : vector<1x1x512xf32> to vector<1x512xf32>
    %202 = vector.broadcast %201 : vector<1x512xf32> to vector<8x512xf32>
    %203 = arith.mulf %199, %202 : vector<8x512xf32>
    %c7_176 = arith.constant 7 : index
    %c0_177 = arith.constant 0 : index
    %c0_178 = arith.constant 0 : index
    %204 = vector.load %arg6[%c7_176, %c0_177, %c0_178] : memref<9x8x8xf32, #tpu.memory_space<vmem>>, vector<1x8x8xf32>
    %205 = vector.shape_cast %204 : vector<1x8x8xf32> to vector<8x8xf32>
    %cst_179 = arith.constant dense<0.000000e+00> : vector<8x512xf32>
    %206 = tpu.matmul %205, %203, %cst_179 {dimension_numbers = #tpu.dot_dimension_numbers<[1], [0], [0], [1], [0, 0, 1, 1], [], []>} : vector<8x8xf32>, vector<8x512xf32>, vector<8x512xf32> -> vector<8x512xf32>
    %207 = arith.addf %198, %206 : vector<8x512xf32>
    %c0_180 = arith.constant 0 : index
    %c145_181 = arith.constant 145 : index
    %208 = vector.load %arg12[%c0_180, %c145_181] : memref<8x768xf32, #tpu.memory_space<vmem>>, vector<8x512xf32>
    %c8_182 = arith.constant 8 : index
    %c0_183 = arith.constant 0 : index
    %c0_184 = arith.constant 0 : index
    %209 = vector.load %arg2[%c8_182, %c0_183, %c0_184] : memref<10x1x512xf32, #tpu.memory_space<vmem>>, vector<1x1x512xf32>
    %210 = vector.shape_cast %209 : vector<1x1x512xf32> to vector<1x512xf32>
    %211 = vector.broadcast %210 : vector<1x512xf32> to vector<8x512xf32>
    %212 = arith.mulf %208, %211 : vector<8x512xf32>
    %c8_185 = arith.constant 8 : index
    %c0_186 = arith.constant 0 : index
    %c0_187 = arith.constant 0 : index
    %213 = vector.load %arg6[%c8_185, %c0_186, %c0_187] : memref<9x8x8xf32, #tpu.memory_space<vmem>>, vector<1x8x8xf32>
    %214 = vector.shape_cast %213 : vector<1x8x8xf32> to vector<8x8xf32>
    %cst_188 = arith.constant dense<0.000000e+00> : vector<8x512xf32>
    %215 = tpu.matmul %214, %212, %cst_188 {dimension_numbers = #tpu.dot_dimension_numbers<[1], [0], [0], [1], [0, 0, 1, 1], [], []>} : vector<8x8xf32>, vector<8x512xf32>, vector<8x512xf32> -> vector<8x512xf32>
    %216 = arith.addf %207, %215 : vector<8x512xf32>
    %cst_189 = arith.constant dense<0.000000e+00> : vector<8xf32>
    %217 = vector.multi_reduction <add>, %216, %cst_189 [1] : vector<8x512xf32> to vector<8xf32>
    %218 = vector.shape_cast %217 : vector<8xf32> to vector<8x1xf32>
    %cst_190 = arith.constant 5.120000e+02 : f32
    %219 = vector.broadcast %cst_190 : f32 to vector<8x1xf32>
    %220 = arith.divf %218, %219 : vector<8x1xf32>
    %221 = vector.broadcast %220 : vector<8x1xf32> to vector<8x512xf32>
    %222 = arith.subf %216, %221 : vector<8x512xf32>
    %223 = arith.mulf %222, %222 : vector<8x512xf32>
    %cst_191 = arith.constant dense<0.000000e+00> : vector<8xf32>
    %224 = vector.multi_reduction <add>, %223, %cst_191 [1] : vector<8x512xf32> to vector<8xf32>
    %225 = vector.shape_cast %224 : vector<8xf32> to vector<8x1xf32>
    %cst_192 = arith.constant 5.120000e+02 : f32
    %226 = vector.broadcast %cst_192 : f32 to vector<8x1xf32>
    %227 = arith.divf %225, %226 : vector<8x1xf32>
    %c0_193 = arith.constant 0 : index
    %c0_194 = arith.constant 0 : index
    %228 = vector.load %arg9[%c0_193, %c0_194] : memref<8x1xf32, #tpu.memory_space<vmem>>, vector<8x1xf32>
    %cst_195 = arith.constant 9.99999974E-6 : f32
    %229 = vector.broadcast %cst_195 : f32 to vector<8x1xf32>
    %230 = arith.addf %227, %229 : vector<8x1xf32>
    %231 = math.rsqrt %230 : vector<8x1xf32>
    %232 = arith.mulf %228, %231 : vector<8x1xf32>
    %233 = vector.broadcast %220 : vector<8x1xf32> to vector<8x512xf32>
    %234 = arith.subf %216, %233 : vector<8x512xf32>
    %235 = vector.broadcast %232 : vector<8x1xf32> to vector<8x512xf32>
    %236 = arith.mulf %234, %235 : vector<8x512xf32>
    %c0_196 = arith.constant 0 : index
    %c0_197 = arith.constant 0 : index
    %237 = vector.load %arg10[%c0_196, %c0_197] : memref<8x1xf32, #tpu.memory_space<vmem>>, vector<8x1xf32>
    %238 = vector.broadcast %237 : vector<8x1xf32> to vector<8x512xf32>
    %239 = arith.addf %236, %238 : vector<8x512xf32>
    %cst_198 = arith.constant 0.000000e+00 : f32
    %240 = vector.broadcast %cst_198 : f32 to vector<8x512xf32>
    %241 = arith.maximumf %239, %240 : vector<8x512xf32>
    %c0_199 = arith.constant 0 : index
    %c0_200 = arith.constant 0 : index
    %242 = vector.load %arg11[%c0_199, %c0_200] : memref<8x512xf32, #tpu.memory_space<vmem>>, vector<8x512xf32>
    tpu.vector_store %arg11[%c0_199, %c0_200], %241 {strides = array<i32>} : memref<8x512xf32, #tpu.memory_space<vmem>>, vector<8x512xf32>,
    return
  }
  func.func @transform_0(%arg0: i32) -> (i32, i32) {
    %c0_i32 = arith.constant 0 : i32
    %c0_i32_0 = arith.constant 0 : i32
    %c0_i32_1 = arith.constant 0 : i32
    return %c0_i32, %c0_i32_0 : i32, i32
  }
  func.func @transform_1(%arg0: i32) -> (i32, i32, i32) {
    %c0_i32 = arith.constant 0 : i32
    %c0_i32_0 = arith.constant 0 : i32
    %c0_i32_1 = arith.constant 0 : i32
    %c0_i32_2 = arith.constant 0 : i32
    return %c0_i32, %c0_i32_0, %c0_i32_1 : i32, i32, i32
  }
  func.func @transform_2(%arg0: i32) -> (i32, i32, i32) {
    %c0_i32 = arith.constant 0 : i32
    %c0_i32_0 = arith.constant 0 : i32
    %c0_i32_1 = arith.constant 0 : i32
    %c0_i32_2 = arith.constant 0 : i32
    return %c0_i32, %c0_i32_0, %c0_i32_1 : i32, i32, i32
  }
  func.func @transform_3(%arg0: i32) -> (i32, i32) {
    %c0_i32 = arith.constant 0 : i32
    %c0_i32_0 = arith.constant 0 : i32
    %c0_i32_1 = arith.constant 0 : i32
    return %c0_i32, %c0_i32_0 : i32, i32
  }
  func.func @transform_4(%arg0: i32) -> (i32, i32, i32) {
    %c0_i32 = arith.constant 0 : i32
    %c0_i32_0 = arith.constant 0 : i32
    %c0_i32_1 = arith.constant 0 : i32
    %c0_i32_2 = arith.constant 0 : i32
    return %c0_i32, %c0_i32_0, %c0_i32_1 : i32, i32, i32
  }
  func.func @transform_5(%arg0: i32) -> (i32, i32, i32) {
    %c0_i32 = arith.constant 0 : i32
    %c0_i32_0 = arith.constant 0 : i32
    %c0_i32_1 = arith.constant 0 : i32
    %c0_i32_2 = arith.constant 0 : i32
    return %c0_i32, %c0_i32_0, %c0_i32_1 : i32, i32, i32
  }
  func.func @transform_6(%arg0: i32) -> (i32, i32) {
    %c0_i32 = arith.constant 0 : i32
    %c0_i32_0 = arith.constant 0 : i32
    %c0_i32_1 = arith.constant 0 : i32
    return %c0_i32, %c0_i32_0 : i32, i32
  }
  func.func @transform_7(%arg0: i32) -> (i32, i32) {
    %c0_i32 = arith.constant 0 : i32
    %c0_i32_0 = arith.constant 0 : i32
    %c0_i32_1 = arith.constant 0 : i32
    return %c0_i32, %c0_i32_0 : i32, i32
  }
  func.func @transform_8(%arg0: i32) -> (i32, i32) {
    %c0_i32 = arith.constant 0 : i32
    %c0_i32_0 = arith.constant 0 : i32
    %c0_i32_1 = arith.constant 0 : i32
    return %c0_i32, %c0_i32_0 : i32, i32
  }
  func.func @transform_9(%arg0: i32) -> (i32, i32) {
    %c0_i32 = arith.constant 0 : i32
    %c0_i32_0 = arith.constant 0 : i32
    %c0_i32_1 = arith.constant 0 : i32
    return %c0_i32, %c0_i32_0 : i32, i32
  }
  func.func @transform_10(%arg0: i32) -> (i32, i32) {
    %c0_i32 = arith.constant 0 : i32
    %c0_i32_0 = arith.constant 0 : i32
    %c0_i32_1 = arith.constant 0 : i32
    return %c0_i32, %c0_i32_0 : i32, i32
  }
}

</mosaic_0001>

<llo_original>
// kernel: up_forward.1
$region0: #{up_forward.1}
  #allocation0 [shape = 'u32[]', space=smem, size = 0x4, offset = 0x4, fixed_abs, tag = 'smem constant byte address 0x4 - core index']
  #allocation1 [shape = 'u32[144,128]{1,0:T(1,128)}', space=vmem, size = 0x12000, scoped, tag = 'internal scratch']
  #allocation2 [shape = 'f32[8,768]{1,0:T(8,128)}', space=vmem, size = 0x6000, scoped, tag = 'scratch operand']
  %s0 = inlined_call_operand.vmem [shape: f32[8,768], index: 0, kind: input, shape index: {}]
  %s1 = inlined_call_operand.vmem [shape: f32[10,1,512], index: 1, kind: input, shape index: {}]
  %s2 = inlined_call_operand.vmem [shape: f32[4,8,8], index: 2, kind: input, shape index: {}]
  %s3 = inlined_call_operand.vmem [shape: f32[8,1], index: 3, kind: input, shape index: {}]
  %s4 = inlined_call_operand.vmem [shape: f32[9,8,8], index: 4, kind: input, shape index: {}]
  %s5 = inlined_call_operand.vmem [shape: f32[9,8,8], index: 5, kind: input, shape index: {}]
  %s6 = inlined_call_operand.vmem [shape: f32[8,1], index: 6, kind: input, shape index: {}]
  %s7 = inlined_call_operand.vmem [shape: f32[8,1], index: 7, kind: input, shape index: {}]
  %s8 = inlined_call_operand.vmem [shape: f32[8,1], index: 8, kind: input, shape index: {}]
  %s9 = inlined_call_operand.vmem [shape: f32[8,1], index: 9, kind: input, shape index: {}]
  %s10 = inlined_call_operand.vmem [shape: f32[8,512], index: 10, kind: output, shape index: {}]
  %s11 = sld [smem:[#allocation0]]
  $region50: #{up_forward.1} parent=0
    _
  %s13 = ssub.s32 1, %s11
  %s14 = scalar_select 0, %s13, %s11
  // Predicated region
  $region2: #{up_forward.1} parent=0 // pred_check
    _
  $region3: #{up_forward.1} parent=0 // pred_check_branch
    %16 = sbr.rel (0) target = $region5
  $region4: #{up_forward.1} parent=0 // pred_region
    _
  $region5: #{up_forward.1} parent=0 // pred_fallthru
    _
  // Predicated region
  $region6: #{up_forward.1} parent=0 // pred_check
    _
  $region7: #{up_forward.1} parent=0 // pred_check_branch
    %18 = sbr.rel (0) target = $region9
  $region8: #{up_forward.1} parent=0 // pred_region
    _
  $region9: #{up_forward.1} parent=0 // pred_fallthru
    _
  // Predicated region
  $region10: #{up_forward.1} parent=0 // pred_check
    _
  $region11: #{up_forward.1} parent=0 // pred_check_branch
    %20 = sbr.rel (0) target = $region13
  $region12: #{up_forward.1} parent=0 // pred_region
    _
  $region13: #{up_forward.1} parent=0 // pred_fallthru
    _
  // Predicated region
  $region14: #{up_forward.1} parent=0 // pred_check
    _
  $region15: #{up_forward.1} parent=0 // pred_check_branch
    %22 = sbr.rel (0) target = $region17
  $region16: #{up_forward.1} parent=0 // pred_region
    _
  $region17: #{up_forward.1} parent=0 // pred_fallthru
    _
  // Predicated region
  $region18: #{up_forward.1} parent=0 // pred_check
    _
  $region19: #{up_forward.1} parent=0 // pred_check_branch
    %24 = sbr.rel (0) target = $region21
  $region20: #{up_forward.1} parent=0 // pred_region
    _
  $region21: #{up_forward.1} parent=0 // pred_fallthru
    _
  // Predicated region
  $region22: #{up_forward.1} parent=0 // pred_check
    _
  $region23: #{up_forward.1} parent=0 // pred_check_branch
    %26 = sbr.rel (0) target = $region25
  $region24: #{up_forward.1} parent=0 // pred_region
    _
  $region25: #{up_forward.1} parent=0 // pred_fallthru
    _
  // Predicated region
  $region26: #{up_forward.1} parent=0 // pred_check
    _
  $region27: #{up_forward.1} parent=0 // pred_check_branch
    %28 = sbr.rel (0) target = $region29
  $region28: #{up_forward.1} parent=0 // pred_region
    _
  $region29: #{up_forward.1} parent=0 // pred_fallthru
    _
  // Predicated region
  $region30: #{up_forward.1} parent=0 // pred_check
    _
  $region31: #{up_forward.1} parent=0 // pred_check_branch
    %30 = sbr.rel (0) target = $region33
  $region32: #{up_forward.1} parent=0 // pred_region
    _
  $region33: #{up_forward.1} parent=0 // pred_fallthru
    _
  // Predicated region
  $region34: #{up_forward.1} parent=0 // pred_check
    _
  $region35: #{up_forward.1} parent=0 // pred_check_branch
    %32 = sbr.rel (0) target = $region37
  $region36: #{up_forward.1} parent=0 // pred_region
    _
  $region37: #{up_forward.1} parent=0 // pred_fallthru
    _
  // Predicated region
  $region38: #{up_forward.1} parent=0 // pred_check
    _
  $region39: #{up_forward.1} parent=0 // pred_check_branch
    %34 = sbr.rel (0) target = $region41
  $region40: #{up_forward.1} parent=0 // pred_region
    _
  $region41: #{up_forward.1} parent=0 // pred_fallthru
    _
  %35 = vst [vmem:[#allocation2] sm:$0xff] 0.0
  %36 = vst [vmem:[#allocation2 + $0x8] sm:$0xff] 0.0
  %37 = vst [vmem:[#allocation2 + $0x10] sm:$0xff] 0.0
  %38 = vst [vmem:[#allocation2 + $0x18] sm:$0xff] 0.0
  %39 = vst [vmem:[#allocation2 + $0x20] sm:$0xff] 0.0
  %40 = vst [vmem:[#allocation2 + $0x28] sm:$0xff] 0.0
  %v41 = vld [vmem:[%s0 + $0x8] sm:$0xff]
  %v42 = vld [vmem:[%s0 + $0x10] sm:$0xff]
  %v43 = vld [vmem:[%s0 + $0x18] sm:$0xff]
  %v44 = vld [vmem:[%s0 + $0x20] sm:$0xff]
  %v45 = vld [vmem:[%s2] sm:$0xff]
  %v46 = vld [vmem:[%s0 + $0x8] sm:$0xff]
  %v47 = vld [vmem:[%s0 + $0x10] sm:$0xff]
  %v48 = vld [vmem:[%s0 + $0x18] sm:$0xff]
  %v49 = vld [vmem:[%s0 + $0x20] sm:$0xff]
  %v50 = vld [vmem:[%s0 + $0x28] sm:$0xff]
  %s51 = scalar_lea.vmem %s2, 8
  %v52 = vld [vmem:[%s51] sm:$0xff]
  %58 = vrot.lane.b32.xlu0 %v46, 127
  %v59 = vpop.permute.xlu0 %58
  %60 = vrot.lane.b32.xlu0 %v47, 127
  %v61 = vpop.permute.xlu0 %60
  %62 = vrot.lane.b32.xlu0 %v48, 127
  %v63 = vpop.permute.xlu0 %62
  %64 = vrot.lane.b32.xlu0 %v49, 127
  %v65 = vpop.permute.xlu0 %64
  %66 = vrot.lane.b32.xlu0 %v50, 127
  %v67 = vpop.permute.xlu0 %66
  %vm68 = vcmask 1039360
  %v69 = vsel %vm68, %v59, %v61
  %v70 = vsel %vm68, %v61, %v63
  %v71 = vsel %vm68, %v63, %v65
  %v72 = vsel %vm68, %v65, %v67
  %vm77 = vcmask 64512
  %v79 = vsel %vm77, %v52, 0
  %81 = vmatprep.subr.mxu0 %v70
  %82 = vmatpush1.msra.mxu0 %v69
  %83 = vmatprep.subr.mxu0 0.0
  %84 = vmatpush1.msra.mxu0 0.0
  %85 = vmatprep.subr.mxu0 0.0
  %86 = vmatpush1.msra.mxu0 0.0
  %87 = vmatprep.subr.mxu0 0.0
  %88 = vmatpush1.msra.mxu0 0.0
  %89 = vmatprep.subr.mxu0 0.0
  %90 = vmatpush1.msra.mxu0 0.0
  %91 = vmatprep.subr.mxu0 0.0
  %92 = vmatpush1.msra.mxu0 0.0
  %93 = vmatprep.subr.mxu0 0.0
  %94 = vmatpush1.msra.mxu0 0.0
  %95 = vmatprep.subr.mxu0 0.0
  %96 = vmatpush1.msra.mxu0 0.0
  %97 = vmatprep.subr.mxu0 0.0
  %98 = vmatpush1.msra.mxu0 0.0
  %99 = vmatprep.subr.mxu0 0.0
  %100 = vmatpush1.msra.mxu0 0.0
  %101 = vmatprep.subr.mxu0 0.0
  %102 = vmatpush1.msra.mxu0 0.0
  %103 = vmatprep.subr.mxu0 0.0
  %104 = vmatpush1.msra.mxu0 0.0
  %105 = vmatprep.subr.mxu0 0.0
  %106 = vmatpush1.msra.mxu0 0.0
  %107 = vmatprep.subr.mxu0 0.0
  %108 = vmatpush1.msra.mxu0 0.0
  %109 = vmatprep.subr.mxu0 0.0
  %110 = vmatpush1.msra.mxu0 0.0
  %111 = vmatprep.subr.mxu0 0.0
  %112 = vmatpush1.msra.mxu0 0.0
  %113 = vmatprep.subr.mxu0 0.0
  %114 = vmatpush1.msra.mxu0 0.0
  %115 = vmatprep.subr.mxu0 0.0
  %116 = vmatpush1.msra.mxu0 0.0
  %117 = vmatprep.subr.mxu0 0.0
  %118 = vmatpush1.msra.mxu0 0.0
  %119 = vmatprep.subr.mxu0 0.0
  %120 = vmatpush1.msra.mxu0 0.0
  %121 = vmatprep.subr.mxu0 0.0
  %122 = vmatpush1.msra.mxu0 0.0
  %123 = vmatprep.subr.mxu0 0.0
  %124 = vmatpush1.msra.mxu0 0.0
  %125 = vmatprep.subr.mxu0 0.0
  %126 = vmatpush1.msra.mxu0 0.0
  %127 = vmatprep.subr.mxu0 0.0
  %128 = vmatpush1.msra.mxu0 0.0
  %129 = vmatprep.subr.mxu0 0.0
  %130 = vmatpush1.msra.mxu0 0.0
  %131 = vmatprep.subr.mxu0 0.0
  %132 = vmatpush1.msra.mxu0 0.0
  %133 = vmatprep.subr.mxu0 0.0
  %134 = vmatpush1.msra.mxu0 0.0
  %135 = vmatprep.subr.mxu0 0.0
  %136 = vmatpush1.msra.mxu0 0.0
  %137 = vmatprep.subr.mxu0 0.0
  %138 = vmatpush1.msra.mxu0 0.0
  %139 = vmatprep.subr.mxu0 0.0
  %140 = vmatpush1.msra.mxu0 0.0
  %141 = vmatprep.subr.mxu0 0.0
  %142 = vmatpush1.msra.mxu0 0.0
  %143 = vmatprep.subr.mxu0 0.0
  %144 = vmatpush1.msra.mxu0 0.0
  %145 = vmatprep.mubr.f32.mxu0 0.0
  %146 = vmatmul.mubr.f32.gmra.mrb[0].mxu0 %v79
  %v147 = vpop.f32.mrb[0].mxu0
  %v148 = vadd.f32 0.0, %v147
  %v149 = vpop.f32.mrb[0].mxu0
  %v150 = vadd.f32 0.0, %v149
  %151 = vdwg.mxu0
  %152 = vmatprep.subr.mxu0 %v72
  %153 = vmatpush1.msra.mxu0 %v71
  %154 = vmatprep.subr.mxu0 0.0
  %155 = vmatpush1.msra.mxu0 0.0
  %156 = vmatprep.subr.mxu0 0.0
  %157 = vmatpush1.msra.mxu0 0.0
  %158 = vmatprep.subr.mxu0 0.0
  %159 = vmatpush1.msra.mxu0 0.0
  %160 = vmatprep.subr.mxu0 0.0
  %161 = vmatpush1.msra.mxu0 0.0
  %162 = vmatprep.subr.mxu0 0.0
  %163 = vmatpush1.msra.mxu0 0.0
  %164 = vmatprep.subr.mxu0 0.0
  %165 = vmatpush1.msra.mxu0 0.0
  %166 = vmatprep.subr.mxu0 0.0
  %167 = vmatpush1.msra.mxu0 0.0
  %168 = vmatprep.subr.mxu0 0.0
  %169 = vmatpush1.msra.mxu0 0.0
  %170 = vmatprep.subr.mxu0 0.0
  %171 = vmatpush1.msra.mxu0 0.0
  %172 = vmatprep.subr.mxu0 0.0
  %173 = vmatpush1.msra.mxu0 0.0
  %174 = vmatprep.subr.mxu0 0.0
  %175 = vmatpush1.msra.mxu0 0.0
  %176 = vmatprep.subr.mxu0 0.0
  %177 = vmatpush1.msra.mxu0 0.0
  %178 = vmatprep.subr.mxu0 0.0
  %179 = vmatpush1.msra.mxu0 0.0
  %180 = vmatprep.subr.mxu0 0.0
  %181 = vmatpush1.msra.mxu0 0.0
  %182 = vmatprep.subr.mxu0 0.0
  %183 = vmatpush1.msra.mxu0 0.0
  %184 = vmatprep.subr.mxu0 0.0
  %185 = vmatpush1.msra.mxu0 0.0
  %186 = vmatprep.subr.mxu0 0.0
  %187 = vmatpush1.msra.mxu0 0.0
  %188 = vmatprep.subr.mxu0 0.0
  %189 = vmatpush1.msra.mxu0 0.0
  %190 = vmatprep.subr.mxu0 0.0
  %191 = vmatpush1.msra.mxu0 0.0
  %192 = vmatprep.subr.mxu0 0.0
  %193 = vmatpush1.msra.mxu0 0.0
  %194 = vmatprep.subr.mxu0 0.0
  %195 = vmatpush1.msra.mxu0 0.0
  %196 = vmatprep.subr.mxu0 0.0
  %197 = vmatpush1.msra.mxu0 0.0
  %198 = vmatprep.subr.mxu0 0.0
  %199 = vmatpush1.msra.mxu0 0.0
  %200 = vmatprep.subr.mxu0 0.0
  %201 = vmatpush1.msra.mxu0 0.0
  %202 = vmatprep.subr.mxu0 0.0
  %203 = vmatpush1.msra.mxu0 0.0
  %204 = vmatprep.subr.mxu0 0.0
  %205 = vmatpush1.msra.mxu0 0.0
  %206 = vmatprep.subr.mxu0 0.0
  %207 = vmatpush1.msra.mxu0 0.0
  %208 = vmatprep.subr.mxu0 0.0
  %209 = vmatpush1.msra.mxu0 0.0
  %210 = vmatprep.subr.mxu0 0.0
  %211 = vmatpush1.msra.mxu0 0.0
  %212 = vmatprep.subr.mxu0 0.0
  %213 = vmatpush1.msra.mxu0 0.0
  %214 = vmatprep.subr.mxu0 0.0
  %215 = vmatpush1.msra.mxu0 0.0
  %216 = vmatprep.mubr.f32.mxu0 0.0
  %217 = vmatmul.mubr.f32.gmra.mrb[0].mxu0 %v79
  %v218 = vpop.f32.mrb[0].mxu0
  %v219 = vadd.f32 0.0, %v218
  %v220 = vpop.f32.mrb[0].mxu0
  %v221 = vadd.f32 0.0, %v220
  %222 = vdwg.mxu0
  %v224 = vsel %vm77, %v45, 0
  %226 = vmatprep.subr.mxu0 %v42
  %227 = vmatpush1.msra.mxu0 %v41
  %228 = vmatprep.subr.mxu0 0.0
  %229 = vmatpush1.msra.mxu0 0.0
  %230 = vmatprep.subr.mxu0 0.0
  %231 = vmatpush1.msra.mxu0 0.0
  %232 = vmatprep.subr.mxu0 0.0
  %233 = vmatpush1.msra.mxu0 0.0
  %234 = vmatprep.subr.mxu0 0.0
  %235 = vmatpush1.msra.mxu0 0.0
  %236 = vmatprep.subr.mxu0 0.0
  %237 = vmatpush1.msra.mxu0 0.0
  %238 = vmatprep.subr.mxu0 0.0
  %239 = vmatpush1.msra.mxu0 0.0
  %240 = vmatprep.subr.mxu0 0.0
  %241 = vmatpush1.msra.mxu0 0.0
  %242 = vmatprep.subr.mxu0 0.0
  %243 = vmatpush1.msra.mxu0 0.0
  %244 = vmatprep.subr.mxu0 0.0
  %245 = vmatpush1.msra.mxu0 0.0
  %246 = vmatprep.subr.mxu0 0.0
  %247 = vmatpush1.msra.mxu0 0.0
  %248 = vmatprep.subr.mxu0 0.0
  %249 = vmatpush1.msra.mxu0 0.0
  %250 = vmatprep.subr.mxu0 0.0
  %251 = vmatpush1.msra.mxu0 0.0
  %252 = vmatprep.subr.mxu0 0.0
  %253 = vmatpush1.msra.mxu0 0.0
  %254 = vmatprep.subr.mxu0 0.0
  %255 = vmatpush1.msra.mxu0 0.0
  %256 = vmatprep.subr.mxu0 0.0
  %257 = vmatpush1.msra.mxu0 0.0
  %258 = vmatprep.subr.mxu0 0.0
  %259 = vmatpush1.msra.mxu0 0.0
  %260 = vmatprep.subr.mxu0 0.0
  %261 = vmatpush1.msra.mxu0 0.0
  %262 = vmatprep.subr.mxu0 0.0
  %263 = vmatpush1.msra.mxu0 0.0
  %264 = vmatprep.subr.mxu0 0.0
  %265 = vmatpush1.msra.mxu0 0.0
  %266 = vmatprep.subr.mxu0 0.0
  %267 = vmatpush1.msra.mxu0 0.0
  %268 = vmatprep.subr.mxu0 0.0
  %269 = vmatpush1.msra.mxu0 0.0
  %270 = vmatprep.subr.mxu0 0.0
  %271 = vmatpush1.msra.mxu0 0.0
  %272 = vmatprep.subr.mxu0 0.0
  %273 = vmatpush1.msra.mxu0 0.0
  %274 = vmatprep.subr.mxu0 0.0
  %275 = vmatpush1.msra.mxu0 0.0
  %276 = vmatprep.subr.mxu0 0.0
  %277 = vmatpush1.msra.mxu0 0.0
  %278 = vmatprep.subr.mxu0 0.0
  %279 = vmatpush1.msra.mxu0 0.0
  %280 = vmatprep.subr.mxu0 0.0
  %281 = vmatpush1.msra.mxu0 0.0
  %282 = vmatprep.subr.mxu0 0.0
  %283 = vmatpush1.msra.mxu0 0.0
  %284 = vmatprep.subr.mxu0 0.0
  %285 = vmatpush1.msra.mxu0 0.0
  %286 = vmatprep.subr.mxu0 0.0
  %287 = vmatpush1.msra.mxu0 0.0
  %288 = vmatprep.subr.mxu0 0.0
  %289 = vmatpush1.msra.mxu0 0.0
  %290 = vmatprep.mubr.f32.mxu0 0.0
  %291 = vmatmul.mubr.f32.gmra.mrb[0].mxu0 %v224
  %v292 = vpop.f32.mrb[0].mxu0
  %v293 = vadd.f32 %v148, %v292
  %v294 = vpop.f32.mrb[0].mxu0
  %v295 = vadd.f32 %v150, %v294
  %296 = vdwg.mxu0
  %297 = vmatprep.subr.mxu0 %v44
  %298 = vmatpush1.msra.mxu0 %v43
  %299 = vmatprep.subr.mxu0 0.0
  %300 = vmatpush1.msra.mxu0 0.0
  %301 = vmatprep.subr.mxu0 0.0
  %302 = vmatpush1.msra.mxu0 0.0
  %303 = vmatprep.subr.mxu0 0.0
  %304 = vmatpush1.msra.mxu0 0.0
  %305 = vmatprep.subr.mxu0 0.0
  %306 = vmatpush1.msra.mxu0 0.0
  %307 = vmatprep.subr.mxu0 0.0
  %308 = vmatpush1.msra.mxu0 0.0
  %309 = vmatprep.subr.mxu0 0.0
  %310 = vmatpush1.msra.mxu0 0.0
  %311 = vmatprep.subr.mxu0 0.0
  %312 = vmatpush1.msra.mxu0 0.0
  %313 = vmatprep.subr.mxu0 0.0
  %314 = vmatpush1.msra.mxu0 0.0
  %315 = vmatprep.subr.mxu0 0.0
  %316 = vmatpush1.msra.mxu0 0.0
  %317 = vmatprep.subr.mxu0 0.0
  %318 = vmatpush1.msra.mxu0 0.0
  %319 = vmatprep.subr.mxu0 0.0
  %320 = vmatpush1.msra.mxu0 0.0
  %321 = vmatprep.subr.mxu0 0.0
  %322 = vmatpush1.msra.mxu0 0.0
  %323 = vmatprep.subr.mxu0 0.0
  %324 = vmatpush1.msra.mxu0 0.0
  %325 = vmatprep.subr.mxu0 0.0
  %326 = vmatpush1.msra.mxu0 0.0
  %327 = vmatprep.subr.mxu0 0.0
  %328 = vmatpush1.msra.mxu0 0.0
  %329 = vmatprep.subr.mxu0 0.0
  %330 = vmatpush1.msra.mxu0 0.0
  %331 = vmatprep.subr.mxu0 0.0
  %332 = vmatpush1.msra.mxu0 0.0
  %333 = vmatprep.subr.mxu0 0.0
  %334 = vmatpush1.msra.mxu0 0.0
  %335 = vmatprep.subr.mxu0 0.0
  %336 = vmatpush1.msra.mxu0 0.0
  %337 = vmatprep.subr.mxu0 0.0
  %338 = vmatpush1.msra.mxu0 0.0
  %339 = vmatprep.subr.mxu0 0.0
  %340 = vmatpush1.msra.mxu0 0.0
  %341 = vmatprep.subr.mxu0 0.0
  %342 = vmatpush1.msra.mxu0 0.0
  %343 = vmatprep.subr.mxu0 0.0
  %344 = vmatpush1.msra.mxu0 0.0
  %345 = vmatprep.subr.mxu0 0.0
  %346 = vmatpush1.msra.mxu0 0.0
  %347 = vmatprep.subr.mxu0 0.0
  %348 = vmatpush1.msra.mxu0 0.0
  %349 = vmatprep.subr.mxu0 0.0
  %350 = vmatpush1.msra.mxu0 0.0
  %351 = vmatprep.subr.mxu0 0.0
  %352 = vmatpush1.msra.mxu0 0.0
  %353 = vmatprep.subr.mxu0 0.0
  %354 = vmatpush1.msra.mxu0 0.0
  %355 = vmatprep.subr.mxu0 0.0
  %356 = vmatpush1.msra.mxu0 0.0
  %357 = vmatprep.subr.mxu0 0.0
  %358 = vmatpush1.msra.mxu0 0.0
  %359 = vmatprep.subr.mxu0 0.0
  %360 = vmatpush1.msra.mxu0 0.0
  %361 = vmatprep.mubr.f32.mxu0 0.0
  %362 = vmatmul.mubr.f32.gmra.mrb[0].mxu0 %v224
  %v363 = vpop.f32.mrb[0].mxu0
  %v364 = vadd.f32 %v219, %v363
  %v365 = vpop.f32.mrb[0].mxu0
  %v366 = vadd.f32 %v221, %v365
  %367 = vdwg.mxu0
  %s368 = scalar_lea.vmem %s2, 16
  %v369 = vld [vmem:[%s368] sm:$0xff]
  %370 = vrot.lane.b32.xlu0 %v46, 112
  %v371 = vpop.permute.xlu0 %370
  %372 = vrot.lane.b32.xlu0 %v47, 112
  %v373 = vpop.permute.xlu0 %372
  %374 = vrot.lane.b32.xlu0 %v48, 112
  %v375 = vpop.permute.xlu0 %374
  %376 = vrot.lane.b32.xlu0 %v49, 112
  %v377 = vpop.permute.xlu0 %376
  %378 = vrot.lane.b32.xlu0 %v50, 112
  %v379 = vpop.permute.xlu0 %378
  %vm380 = vcmask 916480
  %v381 = vsel %vm380, %v371, %v373
  %v382 = vsel %vm380, %v373, %v375
  %v383 = vsel %vm380, %v375, %v377
  %v384 = vsel %vm380, %v377, %v379
  %v390 = vsel %vm77, %v369, 0
  %392 = vmatprep.subr.mxu0 %v382
  %393 = vmatpush1.msra.mxu0 %v381
  %394 = vmatprep.subr.mxu0 0.0
  %395 = vmatpush1.msra.mxu0 0.0
  %396 = vmatprep.subr.mxu0 0.0
  %397 = vmatpush1.msra.mxu0 0.0
  %398 = vmatprep.subr.mxu0 0.0
  %399 = vmatpush1.msra.mxu0 0.0
  %400 = vmatprep.subr.mxu0 0.0
  %401 = vmatpush1.msra.mxu0 0.0
  %402 = vmatprep.subr.mxu0 0.0
  %403 = vmatpush1.msra.mxu0 0.0
  %404 = vmatprep.subr.mxu0 0.0
  %405 = vmatpush1.msra.mxu0 0.0
  %406 = vmatprep.subr.mxu0 0.0
  %407 = vmatpush1.msra.mxu0 0.0
  %408 = vmatprep.subr.mxu0 0.0
  %409 = vmatpush1.msra.mxu0 0.0
  %410 = vmatprep.subr.mxu0 0.0
  %411 = vmatpush1.msra.mxu0 0.0
  %412 = vmatprep.subr.mxu0 0.0
  %413 = vmatpush1.msra.mxu0 0.0
  %414 = vmatprep.subr.mxu0 0.0
  %415 = vmatpush1.msra.mxu0 0.0
  %416 = vmatprep.subr.mxu0 0.0
  %417 = vmatpush1.msra.mxu0 0.0
  %418 = vmatprep.subr.mxu0 0.0
  %419 = vmatpush1.msra.mxu0 0.0
  %420 = vmatprep.subr.mxu0 0.0
  %421 = vmatpush1.msra.mxu0 0.0
  %422 = vmatprep.subr.mxu0 0.0
  %423 = vmatpush1.msra.mxu0 0.0
  %424 = vmatprep.subr.mxu0 0.0
  %425 = vmatpush1.msra.mxu0 0.0
  %426 = vmatprep.subr.mxu0 0.0
  %427 = vmatpush1.msra.mxu0 0.0
  %428 = vmatprep.subr.mxu0 0.0
  %429 = vmatpush1.msra.mxu0 0.0
  %430 = vmatprep.subr.mxu0 0.0
  %431 = vmatpush1.msra.mxu0 0.0
  %432 = vmatprep.subr.mxu0 0.0
  %433 = vmatpush1.msra.mxu0 0.0
  %434 = vmatprep.subr.mxu0 0.0
  %435 = vmatpush1.msra.mxu0 0.0
  %436 = vmatprep.subr.mxu0 0.0
  %437 = vmatpush1.msra.mxu0 0.0
  %438 = vmatprep.subr.mxu0 0.0
  %439 = vmatpush1.msra.mxu0 0.0
  %440 = vmatprep.subr.mxu0 0.0
  %441 = vmatpush1.msra.mxu0 0.0
  %442 = vmatprep.subr.mxu0 0.0
  %443 = vmatpush1.msra.mxu0 0.0
  %444 = vmatprep.subr.mxu0 0.0
  %445 = vmatpush1.msra.mxu0 0.0
  %446 = vmatprep.subr.mxu0 0.0
  %447 = vmatpush1.msra.mxu0 0.0
  %448 = vmatprep.subr.mxu0 0.0
  %449 = vmatpush1.msra.mxu0 0.0
  %450 = vmatprep.subr.mxu0 0.0
  %451 = vmatpush1.msra.mxu0 0.0
  %452 = vmatprep.subr.mxu0 0.0
  %453 = vmatpush1.msra.mxu0 0.0
  %454 = vmatprep.subr.mxu0 0.0
  %455 = vmatpush1.msra.mxu0 0.0
  %456 = vmatprep.mubr.f32.mxu0 0.0
  %457 = vmatmul.mubr.f32.gmra.mrb[0].mxu0 %v390
  %v458 = vpop.f32.mrb[0].mxu0
  %v459 = vadd.f32 0.0, %v458
  %v460 = vpop.f32.mrb[0].mxu0
  %v461 = vadd.f32 0.0, %v460
  %462 = vdwg.mxu0
  %463 = vmatprep.subr.mxu0 %v384
  %464 = vmatpush1.msra.mxu0 %v383
  %465 = vmatprep.subr.mxu0 0.0
  %466 = vmatpush1.msra.mxu0 0.0
  %467 = vmatprep.subr.mxu0 0.0
  %468 = vmatpush1.msra.mxu0 0.0
  %469 = vmatprep.subr.mxu0 0.0
  %470 = vmatpush1.msra.mxu0 0.0
  %471 = vmatprep.subr.mxu0 0.0
  %472 = vmatpush1.msra.mxu0 0.0
  %473 = vmatprep.subr.mxu0 0.0
  %474 = vmatpush1.msra.mxu0 0.0
  %475 = vmatprep.subr.mxu0 0.0
  %476 = vmatpush1.msra.mxu0 0.0
  %477 = vmatprep.subr.mxu0 0.0
  %478 = vmatpush1.msra.mxu0 0.0
  %479 = vmatprep.subr.mxu0 0.0
  %480 = vmatpush1.msra.mxu0 0.0
  %481 = vmatprep.subr.mxu0 0.0
  %482 = vmatpush1.msra.mxu0 0.0
  %483 = vmatprep.subr.mxu0 0.0
  %484 = vmatpush1.msra.mxu0 0.0
  %485 = vmatprep.subr.mxu0 0.0
  %486 = vmatpush1.msra.mxu0 0.0
  %487 = vmatprep.subr.mxu0 0.0
  %488 = vmatpush1.msra.mxu0 0.0
  %489 = vmatprep.subr.mxu0 0.0
  %490 = vmatpush1.msra.mxu0 0.0
  %491 = vmatprep.subr.mxu0 0.0
  %492 = vmatpush1.msra.mxu0 0.0
  %493 = vmatprep.subr.mxu0 0.0
  %494 = vmatpush1.msra.mxu0 0.0
  %495 = vmatprep.subr.mxu0 0.0
  %496 = vmatpush1.msra.mxu0 0.0
  %497 = vmatprep.subr.mxu0 0.0
  %498 = vmatpush1.msra.mxu0 0.0
  %499 = vmatprep.subr.mxu0 0.0
  %500 = vmatpush1.msra.mxu0 0.0
  %501 = vmatprep.subr.mxu0 0.0
  %502 = vmatpush1.msra.mxu0 0.0
  %503 = vmatprep.subr.mxu0 0.0
  %504 = vmatpush1.msra.mxu0 0.0
  %505 = vmatprep.subr.mxu0 0.0
  %506 = vmatpush1.msra.mxu0 0.0
  %507 = vmatprep.subr.mxu0 0.0
  %508 = vmatpush1.msra.mxu0 0.0
  %509 = vmatprep.subr.mxu0 0.0
  %510 = vmatpush1.msra.mxu0 0.0
  %511 = vmatprep.subr.mxu0 0.0
  %512 = vmatpush1.msra.mxu0 0.0
  %513 = vmatprep.subr.mxu0 0.0
  %514 = vmatpush1.msra.mxu0 0.0
  %515 = vmatprep.subr.mxu0 0.0
  %516 = vmatpush1.msra.mxu0 0.0
  %517 = vmatprep.subr.mxu0 0.0
  %518 = vmatpush1.msra.mxu0 0.0
  %519 = vmatprep.subr.mxu0 0.0
  %520 = vmatpush1.msra.mxu0 0.0
  %521 = vmatprep.subr.mxu0 0.0
  %522 = vmatpush1.msra.mxu0 0.0
  %523 = vmatprep.subr.mxu0 0.0
  %524 = vmatpush1.msra.mxu0 0.0
  %525 = vmatprep.subr.mxu0 0.0
  %526 = vmatpush1.msra.mxu0 0.0
  %527 = vmatprep.mubr.f32.mxu0 0.0
  %528 = vmatmul.mubr.f32.gmra.mrb[0].mxu0 %v390
  %v529 = vpop.f32.mrb[0].mxu0
  %v530 = vadd.f32 0.0, %v529
  %v531 = vpop.f32.mrb[0].mxu0
  %v532 = vadd.f32 0.0, %v531
  %533 = vdwg.mxu0
  %v534 = vadd.f32 %v293, %v459
  %v535 = vadd.f32 %v295, %v461
  %v536 = vadd.f32 %v364, %v530
  %v537 = vadd.f32 %v366, %v532
  %s538 = scalar_lea.vmem %s2, 24
  %v539 = vld [vmem:[%s538] sm:$0xff]
  %540 = vrot.lane.b32.xlu0 %v46, 111
  %v541 = vpop.permute.xlu0 %540
  %542 = vrot.lane.b32.xlu0 %v47, 111
  %v543 = vpop.permute.xlu0 %542
  %544 = vrot.lane.b32.xlu0 %v48, 111
  %v545 = vpop.permute.xlu0 %544
  %546 = vrot.lane.b32.xlu0 %v49, 111
  %v547 = vpop.permute.xlu0 %546
  %548 = vrot.lane.b32.xlu0 %v50, 111
  %v549 = vpop.permute.xlu0 %548
  %vm550 = vcmask 908288
  %v551 = vsel %vm550, %v541, %v543
  %v552 = vsel %vm550, %v543, %v545
  %v553 = vsel %vm550, %v545, %v547
  %v554 = vsel %vm550, %v547, %v549
  %v560 = vsel %vm77, %v539, 0
  %562 = vmatprep.subr.mxu0 %v552
  %563 = vmatpush1.msra.mxu0 %v551
  %564 = vmatprep.subr.mxu0 0.0
  %565 = vmatpush1.msra.mxu0 0.0
  %566 = vmatprep.subr.mxu0 0.0
  %567 = vmatpush1.msra.mxu0 0.0
  %568 = vmatprep.subr.mxu0 0.0
  %569 = vmatpush1.msra.mxu0 0.0
  %570 = vmatprep.subr.mxu0 0.0
  %571 = vmatpush1.msra.mxu0 0.0
  %572 = vmatprep.subr.mxu0 0.0
  %573 = vmatpush1.msra.mxu0 0.0
  %574 = vmatprep.subr.mxu0 0.0
  %575 = vmatpush1.msra.mxu0 0.0
  %576 = vmatprep.subr.mxu0 0.0
  %577 = vmatpush1.msra.mxu0 0.0
  %578 = vmatprep.subr.mxu0 0.0
  %579 = vmatpush1.msra.mxu0 0.0
  %580 = vmatprep.subr.mxu0 0.0
  %581 = vmatpush1.msra.mxu0 0.0
  %582 = vmatprep.subr.mxu0 0.0
  %583 = vmatpush1.msra.mxu0 0.0
  %584 = vmatprep.subr.mxu0 0.0
  %585 = vmatpush1.msra.mxu0 0.0
  %586 = vmatprep.subr.mxu0 0.0
  %587 = vmatpush1.msra.mxu0 0.0
  %588 = vmatprep.subr.mxu0 0.0
  %589 = vmatpush1.msra.mxu0 0.0
  %590 = vmatprep.subr.mxu0 0.0
  %591 = vmatpush1.msra.mxu0 0.0
  %592 = vmatprep.subr.mxu0 0.0
  %593 = vmatpush1.msra.mxu0 0.0
  %594 = vmatprep.subr.mxu0 0.0
  %595 = vmatpush1.msra.mxu0 0.0
  %596 = vmatprep.subr.mxu0 0.0
  %597 = vmatpush1.msra.mxu0 0.0
  %598 = vmatprep.subr.mxu0 0.0
  %599 = vmatpush1.msra.mxu0 0.0
  %600 = vmatprep.subr.mxu0 0.0
  %601 = vmatpush1.msra.mxu0 0.0
  %602 = vmatprep.subr.mxu0 0.0
  %603 = vmatpush1.msra.mxu0 0.0
  %604 = vmatprep.subr.mxu0 0.0
  %605 = vmatpush1.msra.mxu0 0.0
  %606 = vmatprep.subr.mxu0 0.0
  %607 = vmatpush1.msra.mxu0 0.0
  %608 = vmatprep.subr.mxu0 0.0
  %609 = vmatpush1.msra.mxu0 0.0
  %610 = vmatprep.subr.mxu0 0.0
  %611 = vmatpush1.msra.mxu0 0.0
  %612 = vmatprep.subr.mxu0 0.0
  %613 = vmatpush1.msra.mxu0 0.0
  %614 = vmatprep.subr.mxu0 0.0
  %615 = vmatpush1.msra.mxu0 0.0
  %616 = vmatprep.subr.mxu0 0.0
  %617 = vmatpush1.msra.mxu0 0.0
  %618 = vmatprep.subr.mxu0 0.0
  %619 = vmatpush1.msra.mxu0 0.0
  %620 = vmatprep.subr.mxu0 0.0
  %621 = vmatpush1.msra.mxu0 0.0
  %622 = vmatprep.subr.mxu0 0.0
  %623 = vmatpush1.msra.mxu0 0.0
  %624 = vmatprep.subr.mxu0 0.0
  %625 = vmatpush1.msra.mxu0 0.0
  %626 = vmatprep.mubr.f32.mxu0 0.0
  %627 = vmatmul.mubr.f32.gmra.mrb[0].mxu0 %v560
  %v628 = vpop.f32.mrb[0].mxu0
  %v629 = vadd.f32 0.0, %v628
  %v630 = vpop.f32.mrb[0].mxu0
  %v631 = vadd.f32 0.0, %v630
  %632 = vdwg.mxu0
  %633 = vmatprep.subr.mxu0 %v554
  %634 = vmatpush1.msra.mxu0 %v553
  %635 = vmatprep.subr.mxu0 0.0
  %636 = vmatpush1.msra.mxu0 0.0
  %637 = vmatprep.subr.mxu0 0.0
  %638 = vmatpush1.msra.mxu0 0.0
  %639 = vmatprep.subr.mxu0 0.0
  %640 = vmatpush1.msra.mxu0 0.0
  %641 = vmatprep.subr.mxu0 0.0
  %642 = vmatpush1.msra.mxu0 0.0
  %643 = vmatprep.subr.mxu0 0.0
  %644 = vmatpush1.msra.mxu0 0.0
  %645 = vmatprep.subr.mxu0 0.0
  %646 = vmatpush1.msra.mxu0 0.0
  %647 = vmatprep.subr.mxu0 0.0
  %648 = vmatpush1.msra.mxu0 0.0
  %649 = vmatprep.subr.mxu0 0.0
  %650 = vmatpush1.msra.mxu0 0.0
  %651 = vmatprep.subr.mxu0 0.0
  %652 = vmatpush1.msra.mxu0 0.0
  %653 = vmatprep.subr.mxu0 0.0
  %654 = vmatpush1.msra.mxu0 0.0
  %655 = vmatprep.subr.mxu0 0.0
  %656 = vmatpush1.msra.mxu0 0.0
  %657 = vmatprep.subr.mxu0 0.0
  %658 = vmatpush1.msra.mxu0 0.0
  %659 = vmatprep.subr.mxu0 0.0
  %660 = vmatpush1.msra.mxu0 0.0
  %661 = vmatprep.subr.mxu0 0.0
  %662 = vmatpush1.msra.mxu0 0.0
  %663 = vmatprep.subr.mxu0 0.0
  %664 = vmatpush1.msra.mxu0 0.0
  %665 = vmatprep.subr.mxu0 0.0
  %666 = vmatpush1.msra.mxu0 0.0
  %667 = vmatprep.subr.mxu0 0.0
  %668 = vmatpush1.msra.mxu0 0.0
  %669 = vmatprep.subr.mxu0 0.0
  %670 = vmatpush1.msra.mxu0 0.0
  %671 = vmatprep.subr.mxu0 0.0
  %672 = vmatpush1.msra.mxu0 0.0
  %673 = vmatprep.subr.mxu0 0.0
  %674 = vmatpush1.msra.mxu0 0.0
  %675 = vmatprep.subr.mxu0 0.0
  %676 = vmatpush1.msra.mxu0 0.0
  %677 = vmatprep.subr.mxu0 0.0
  %678 = vmatpush1.msra.mxu0 0.0
  %679 = vmatprep.subr.mxu0 0.0
  %680 = vmatpush1.msra.mxu0 0.0
  %681 = vmatprep.subr.mxu0 0.0
  %682 = vmatpush1.msra.mxu0 0.0
  %683 = vmatprep.subr.mxu0 0.0
  %684 = vmatpush1.msra.mxu0 0.0
  %685 = vmatprep.subr.mxu0 0.0
  %686 = vmatpush1.msra.mxu0 0.0
  %687 = vmatprep.subr.mxu0 0.0
  %688 = vmatpush1.msra.mxu0 0.0
  %689 = vmatprep.subr.mxu0 0.0
  %690 = vmatpush1.msra.mxu0 0.0
  %691 = vmatprep.subr.mxu0 0.0
  %692 = vmatpush1.msra.mxu0 0.0
  %693 = vmatprep.subr.mxu0 0.0
  %694 = vmatpush1.msra.mxu0 0.0
  %695 = vmatprep.subr.mxu0 0.0
  %696 = vmatpush1.msra.mxu0 0.0
  %697 = vmatprep.mubr.f32.mxu0 0.0
  %698 = vmatmul.mubr.f32.gmra.mrb[0].mxu0 %v560
  %v699 = vpop.f32.mrb[0].mxu0
  %v700 = vadd.f32 0.0, %v699
  %v701 = vpop.f32.mrb[0].mxu0
  %v702 = vadd.f32 0.0, %v701
  %703 = vdwg.mxu0
  %v704 = vadd.f32 %v534, %v629
  %v705 = vadd.f32 %v535, %v631
  %v706 = vadd.f32 %v536, %v700
  %v707 = vadd.f32 %v537, %v702
  %v708 = vld [vmem:[%s3] sm:$0xff]
  %710 = vset.pattern.permute.xlu0 0
  %711 = vperm.xlu0 %710, %v708
  %v712 = vpop.permute.xlu0 %711
  %v714 = vadd.f32 %v704, %v712
  %v715 = vadd.f32 %v705, %v712
  %v716 = vadd.f32 %v706, %v712
  %v717 = vadd.f32 %v707, %v712
  %v718 = vmax.f32 %v714, 0.0
  %v719 = vmax.f32 %v715, 0.0
  %v720 = vmax.f32 %v716, 0.0
  %v721 = vmax.f32 %v717, 0.0
  %s722 = scalar_lea.vmem %s1, 36
  %v723 = vld [vmem:[%s722] sm:$0xf]
  %v725 = vlaneseq
  %v726 = vshrl.u32 %v725, 7
  %v727 = vsub.s32 0, %v726
  %v728 = vrot.slane %v723, %v727
  %v729 = vlaneseq
  %v730 = vshrl.u32 %v729, 7
  %v731 = vsub.s32 1, %v730
  %v732 = vrot.slane %v723, %v731
  %v733 = vlaneseq
  %v734 = vshrl.u32 %v733, 7
  %v735 = vsub.s32 2, %v734
  %v736 = vrot.slane %v723, %v735
  %v737 = vlaneseq
  %v738 = vshrl.u32 %v737, 7
  %v739 = vsub.s32 3, %v738
  %v740 = vrot.slane %v723, %v739
  %v745 = vmul.f32 %v718, %v728
  %v746 = vmul.f32 %v719, %v732
  %v747 = vmul.f32 %v720, %v736
  %v748 = vmul.f32 %v721, %v740
  %749 = vst [vmem:[#allocation2 + $0x8] sm:$0xff] %v745
  %750 = vst [vmem:[#allocation2 + $0x10] sm:$0xff] %v746
  %751 = vst [vmem:[#allocation2 + $0x18] sm:$0xff] %v747
  %752 = vst [vmem:[#allocation2 + $0x20] sm:$0xff] %v748
  %v753 = vld [vmem:[#allocation2] sm:$0xff]
  %v754 = vld [vmem:[#allocation2 + $0x8] sm:$0xff]
  %v755 = vld [vmem:[#allocation2 + $0x10] sm:$0xff]
  %v756 = vld [vmem:[#allocation2 + $0x18] sm:$0xff]
  %v757 = vld [vmem:[#allocation2 + $0x20] sm:$0xff]
  %v758 = vld [vmem:[%s1] sm:$0xf]
  %v760 = vlaneseq
  %v761 = vshrl.u32 %v760, 7
  %v762 = vsub.s32 0, %v761
  %v763 = vrot.slane %v758, %v762
  %v764 = vlaneseq
  %v765 = vshrl.u32 %v764, 7
  %v766 = vsub.s32 1, %v765
  %v767 = vrot.slane %v758, %v766
  %v768 = vlaneseq
  %v769 = vshrl.u32 %v768, 7
  %v770 = vsub.s32 2, %v769
  %v771 = vrot.slane %v758, %v770
  %v772 = vlaneseq
  %v773 = vshrl.u32 %v772, 7
  %v774 = vsub.s32 3, %v773
  %v775 = vrot.slane %v758, %v774
  %776 = vrot.lane.b32.xlu0 %v763, 111
  %v777 = vpop.permute.xlu0 %776
  %778 = vrot.lane.b32.xlu0 %v767, 111
  %v779 = vpop.permute.xlu0 %778
  %780 = vrot.lane.b32.xlu0 %v771, 111
  %v781 = vpop.permute.xlu0 %780
  %782 = vrot.lane.b32.xlu0 %v775, 111
  %v783 = vpop.permute.xlu0 %782
  %v784 = vsel %vm550, %v777, %v779
  %v785 = vsel %vm550, %v779, %v781
  %v786 = vsel %vm550, %v781, %v783
  %v792 = vmul.f32 %v753, %v777
  %v793 = vmul.f32 %v754, %v784
  %v794 = vmul.f32 %v755, %v785
  %v795 = vmul.f32 %v756, %v786
  %v796 = vmul.f32 %v757, %v783
  %v797 = vld [vmem:[%s4] sm:$0xff]
  %s798 = scalar_lea.vmem %s1, 4
  %v799 = vld [vmem:[%s798] sm:$0xf]
  %v801 = vlaneseq
  %v802 = vshrl.u32 %v801, 7
  %v803 = vsub.s32 0, %v802
  %v804 = vrot.slane %v799, %v803
  %v805 = vlaneseq
  %v806 = vshrl.u32 %v805, 7
  %v807 = vsub.s32 1, %v806
  %v808 = vrot.slane %v799, %v807
  %v809 = vlaneseq
  %v810 = vshrl.u32 %v809, 7
  %v811 = vsub.s32 2, %v810
  %v812 = vrot.slane %v799, %v811
  %v813 = vlaneseq
  %v814 = vshrl.u32 %v813, 7
  %v815 = vsub.s32 3, %v814
  %v816 = vrot.slane %v799, %v815
  %817 = vrot.lane.b32.xlu0 %v804, 112
  %v818 = vpop.permute.xlu0 %817
  %819 = vrot.lane.b32.xlu0 %v808, 112
  %v820 = vpop.permute.xlu0 %819
  %821 = vrot.lane.b32.xlu0 %v812, 112
  %v822 = vpop.permute.xlu0 %821
  %823 = vrot.lane.b32.xlu0 %v816, 112
  %v824 = vpop.permute.xlu0 %823
  %v825 = vsel %vm380, %v818, %v820
  %v826 = vsel %vm380, %v820, %v822
  %v827 = vsel %vm380, %v822, %v824
  %v833 = vmul.f32 %v753, %v818
  %v834 = vmul.f32 %v754, %v825
  %v835 = vmul.f32 %v755, %v826
  %v836 = vmul.f32 %v756, %v827
  %v837 = vmul.f32 %v757, %v824
  %s838 = scalar_lea.vmem %s4, 8
  %v839 = vld [vmem:[%s838] sm:$0xff]
  %845 = vrot.lane.b32.xlu0 %v833, 16
  %v846 = vpop.permute.xlu0 %845
  %847 = vrot.lane.b32.xlu0 %v834, 16
  %v848 = vpop.permute.xlu0 %847
  %849 = vrot.lane.b32.xlu0 %v835, 16
  %v850 = vpop.permute.xlu0 %849
  %851 = vrot.lane.b32.xlu0 %v836, 16
  %v852 = vpop.permute.xlu0 %851
  %853 = vrot.lane.b32.xlu0 %v837, 16
  %v854 = vpop.permute.xlu0 %853
  %vm855 = vcmask 130048
  %v856 = vsel %vm855, %v846, %v848
  %v857 = vsel %vm855, %v848, %v850
  %v858 = vsel %vm855, %v850, %v852
  %v859 = vsel %vm855, %v852, %v854
  %v865 = vsel %vm77, %v839, 0
  %867 = vmatprep.subr.mxu0 %v857
  %868 = vmatpush1.msra.mxu0 %v856
  %869 = vmatprep.subr.mxu0 0.0
  %870 = vmatpush1.msra.mxu0 0.0
  %871 = vmatprep.subr.mxu0 0.0
  %872 = vmatpush1.msra.mxu0 0.0
  %873 = vmatprep.subr.mxu0 0.0
  %874 = vmatpush1.msra.mxu0 0.0
  %875 = vmatprep.subr.mxu0 0.0
  %876 = vmatpush1.msra.mxu0 0.0
  %877 = vmatprep.subr.mxu0 0.0
  %878 = vmatpush1.msra.mxu0 0.0
  %879 = vmatprep.subr.mxu0 0.0
  %880 = vmatpush1.msra.mxu0 0.0
  %881 = vmatprep.subr.mxu0 0.0
  %882 = vmatpush1.msra.mxu0 0.0
  %883 = vmatprep.subr.mxu0 0.0
  %884 = vmatpush1.msra.mxu0 0.0
  %885 = vmatprep.subr.mxu0 0.0
  %886 = vmatpush1.msra.mxu0 0.0
  %887 = vmatprep.subr.mxu0 0.0
  %888 = vmatpush1.msra.mxu0 0.0
  %889 = vmatprep.subr.mxu0 0.0
  %890 = vmatpush1.msra.mxu0 0.0
  %891 = vmatprep.subr.mxu0 0.0
  %892 = vmatpush1.msra.mxu0 0.0
  %893 = vmatprep.subr.mxu0 0.0
  %894 = vmatpush1.msra.mxu0 0.0
  %895 = vmatprep.subr.mxu0 0.0
  %896 = vmatpush1.msra.mxu0 0.0
  %897 = vmatprep.subr.mxu0 0.0
  %898 = vmatpush1.msra.mxu0 0.0
  %899 = vmatprep.subr.mxu0 0.0
  %900 = vmatpush1.msra.mxu0 0.0
  %901 = vmatprep.subr.mxu0 0.0
  %902 = vmatpush1.msra.mxu0 0.0
  %903 = vmatprep.subr.mxu0 0.0
  %904 = vmatpush1.msra.mxu0 0.0
  %905 = vmatprep.subr.mxu0 0.0
  %906 = vmatpush1.msra.mxu0 0.0
  %907 = vmatprep.subr.mxu0 0.0
  %908 = vmatpush1.msra.mxu0 0.0
  %909 = vmatprep.subr.mxu0 0.0
  %910 = vmatpush1.msra.mxu0 0.0
  %911 = vmatprep.subr.mxu0 0.0
  %912 = vmatpush1.msra.mxu0 0.0
  %913 = vmatprep.subr.mxu0 0.0
  %914 = vmatpush1.msra.mxu0 0.0
  %915 = vmatprep.subr.mxu0 0.0
  %916 = vmatpush1.msra.mxu0 0.0
  %917 = vmatprep.subr.mxu0 0.0
  %918 = vmatpush1.msra.mxu0 0.0
  %919 = vmatprep.subr.mxu0 0.0
  %920 = vmatpush1.msra.mxu0 0.0
  %921 = vmatprep.subr.mxu0 0.0
  %922 = vmatpush1.msra.mxu0 0.0
  %923 = vmatprep.subr.mxu0 0.0
  %924 = vmatpush1.msra.mxu0 0.0
  %925 = vmatprep.subr.mxu0 0.0
  %926 = vmatpush1.msra.mxu0 0.0
  %927 = vmatprep.subr.mxu0 0.0
  %928 = vmatpush1.msra.mxu0 0.0
  %929 = vmatprep.subr.mxu0 0.0
  %930 = vmatpush1.msra.mxu0 0.0
  %931 = vmatprep.mubr.f32.mxu0 0.0
  %932 = vmatmul.mubr.f32.gmra.mrb[0].mxu0 %v865
  %v933 = vpop.f32.mrb[0].mxu0
  %v934 = vadd.f32 0.0, %v933
  %v935 = vpop.f32.mrb[0].mxu0
  %v936 = vadd.f32 0.0, %v935
  %937 = vdwg.mxu0
  %938 = vmatprep.subr.mxu0 %v859
  %939 = vmatpush1.msra.mxu0 %v858
  %940 = vmatprep.subr.mxu0 0.0
  %941 = vmatpush1.msra.mxu0 0.0
  %942 = vmatprep.subr.mxu0 0.0
  %943 = vmatpush1.msra.mxu0 0.0
  %944 = vmatprep.subr.mxu0 0.0
  %945 = vmatpush1.msra.mxu0 0.0
  %946 = vmatprep.subr.mxu0 0.0
  %947 = vmatpush1.msra.mxu0 0.0
  %948 = vmatprep.subr.mxu0 0.0
  %949 = vmatpush1.msra.mxu0 0.0
  %950 = vmatprep.subr.mxu0 0.0
  %951 = vmatpush1.msra.mxu0 0.0
  %952 = vmatprep.subr.mxu0 0.0
  %953 = vmatpush1.msra.mxu0 0.0
  %954 = vmatprep.subr.mxu0 0.0
  %955 = vmatpush1.msra.mxu0 0.0
  %956 = vmatprep.subr.mxu0 0.0
  %957 = vmatpush1.msra.mxu0 0.0
  %958 = vmatprep.subr.mxu0 0.0
  %959 = vmatpush1.msra.mxu0 0.0
  %960 = vmatprep.subr.mxu0 0.0
  %961 = vmatpush1.msra.mxu0 0.0
  %962 = vmatprep.subr.mxu0 0.0
  %963 = vmatpush1.msra.mxu0 0.0
  %964 = vmatprep.subr.mxu0 0.0
  %965 = vmatpush1.msra.mxu0 0.0
  %966 = vmatprep.subr.mxu0 0.0
  %967 = vmatpush1.msra.mxu0 0.0
  %968 = vmatprep.subr.mxu0 0.0
  %969 = vmatpush1.msra.mxu0 0.0
  %970 = vmatprep.subr.mxu0 0.0
  %971 = vmatpush1.msra.mxu0 0.0
  %972 = vmatprep.subr.mxu0 0.0
  %973 = vmatpush1.msra.mxu0 0.0
  %974 = vmatprep.subr.mxu0 0.0
  %975 = vmatpush1.msra.mxu0 0.0
  %976 = vmatprep.subr.mxu0 0.0
  %977 = vmatpush1.msra.mxu0 0.0
  %978 = vmatprep.subr.mxu0 0.0
  %979 = vmatpush1.msra.mxu0 0.0
  %980 = vmatprep.subr.mxu0 0.0
  %981 = vmatpush1.msra.mxu0 0.0
  %982 = vmatprep.subr.mxu0 0.0
  %983 = vmatpush1.msra.mxu0 0.0
  %984 = vmatprep.subr.mxu0 0.0
  %985 = vmatpush1.msra.mxu0 0.0
  %986 = vmatprep.subr.mxu0 0.0
  %987 = vmatpush1.msra.mxu0 0.0
  %988 = vmatprep.subr.mxu0 0.0
  %989 = vmatpush1.msra.mxu0 0.0
  %990 = vmatprep.subr.mxu0 0.0
  %991 = vmatpush1.msra.mxu0 0.0
  %992 = vmatprep.subr.mxu0 0.0
  %993 = vmatpush1.msra.mxu0 0.0
  %994 = vmatprep.subr.mxu0 0.0
  %995 = vmatpush1.msra.mxu0 0.0
  %996 = vmatprep.subr.mxu0 0.0
  %997 = vmatpush1.msra.mxu0 0.0
  %998 = vmatprep.subr.mxu0 0.0
  %999 = vmatpush1.msra.mxu0 0.0
  %1000 = vmatprep.subr.mxu0 0.0
  %1001 = vmatpush1.msra.mxu0 0.0
  %1002 = vmatprep.mubr.f32.mxu0 0.0
  %1003 = vmatmul.mubr.f32.gmra.mrb[0].mxu0 %v865
  %v1004 = vpop.f32.mrb[0].mxu0
  %v1005 = vadd.f32 0.0, %v1004
  %v1006 = vpop.f32.mrb[0].mxu0
  %v1007 = vadd.f32 0.0, %v1006
  %1008 = vdwg.mxu0
  %1014 = vrot.lane.b32.xlu0 %v792, 17
  %v1015 = vpop.permute.xlu0 %1014
  %1016 = vrot.lane.b32.xlu0 %v793, 17
  %v1017 = vpop.permute.xlu0 %1016
  %1018 = vrot.lane.b32.xlu0 %v794, 17
  %v1019 = vpop.permute.xlu0 %1018
  %1020 = vrot.lane.b32.xlu0 %v795, 17
  %v1021 = vpop.permute.xlu0 %1020
  %1022 = vrot.lane.b32.xlu0 %v796, 17
  %v1023 = vpop.permute.xlu0 %1022
  %vm1024 = vcmask 138240
  %v1025 = vsel %vm1024, %v1015, %v1017
  %v1026 = vsel %vm1024, %v1017, %v1019
  %v1027 = vsel %vm1024, %v1019, %v1021
  %v1028 = vsel %vm1024, %v1021, %v1023
  %v1034 = vsel %vm77, %v797, 0
  %1036 = vmatprep.subr.mxu0 %v1026
  %1037 = vmatpush1.msra.mxu0 %v1025
  %1038 = vmatprep.subr.mxu0 0.0
  %1039 = vmatpush1.msra.mxu0 0.0
  %1040 = vmatprep.subr.mxu0 0.0
  %1041 = vmatpush1.msra.mxu0 0.0
  %1042 = vmatprep.subr.mxu0 0.0
  %1043 = vmatpush1.msra.mxu0 0.0
  %1044 = vmatprep.subr.mxu0 0.0
  %1045 = vmatpush1.msra.mxu0 0.0
  %1046 = vmatprep.subr.mxu0 0.0
  %1047 = vmatpush1.msra.mxu0 0.0
  %1048 = vmatprep.subr.mxu0 0.0
  %1049 = vmatpush1.msra.mxu0 0.0
  %1050 = vmatprep.subr.mxu0 0.0
  %1051 = vmatpush1.msra.mxu0 0.0
  %1052 = vmatprep.subr.mxu0 0.0
  %1053 = vmatpush1.msra.mxu0 0.0
  %1054 = vmatprep.subr.mxu0 0.0
  %1055 = vmatpush1.msra.mxu0 0.0
  %1056 = vmatprep.subr.mxu0 0.0
  %1057 = vmatpush1.msra.mxu0 0.0
  %1058 = vmatprep.subr.mxu0 0.0
  %1059 = vmatpush1.msra.mxu0 0.0
  %1060 = vmatprep.subr.mxu0 0.0
  %1061 = vmatpush1.msra.mxu0 0.0
  %1062 = vmatprep.subr.mxu0 0.0
  %1063 = vmatpush1.msra.mxu0 0.0
  %1064 = vmatprep.subr.mxu0 0.0
  %1065 = vmatpush1.msra.mxu0 0.0
  %1066 = vmatprep.subr.mxu0 0.0
  %1067 = vmatpush1.msra.mxu0 0.0
  %1068 = vmatprep.subr.mxu0 0.0
  %1069 = vmatpush1.msra.mxu0 0.0
  %1070 = vmatprep.subr.mxu0 0.0
  %1071 = vmatpush1.msra.mxu0 0.0
  %1072 = vmatprep.subr.mxu0 0.0
  %1073 = vmatpush1.msra.mxu0 0.0
  %1074 = vmatprep.subr.mxu0 0.0
  %1075 = vmatpush1.msra.mxu0 0.0
  %1076 = vmatprep.subr.mxu0 0.0
  %1077 = vmatpush1.msra.mxu0 0.0
  %1078 = vmatprep.subr.mxu0 0.0
  %1079 = vmatpush1.msra.mxu0 0.0
  %1080 = vmatprep.subr.mxu0 0.0
  %1081 = vmatpush1.msra.mxu0 0.0
  %1082 = vmatprep.subr.mxu0 0.0
  %1083 = vmatpush1.msra.mxu0 0.0
  %1084 = vmatprep.subr.mxu0 0.0
  %1085 = vmatpush1.msra.mxu0 0.0
  %1086 = vmatprep.subr.mxu0 0.0
  %1087 = vmatpush1.msra.mxu0 0.0
  %1088 = vmatprep.subr.mxu0 0.0
  %1089 = vmatpush1.msra.mxu0 0.0
  %1090 = vmatprep.subr.mxu0 0.0
  %1091 = vmatpush1.msra.mxu0 0.0
  %1092 = vmatprep.subr.mxu0 0.0
  %1093 = vmatpush1.msra.mxu0 0.0
  %1094 = vmatprep.subr.mxu0 0.0
  %1095 = vmatpush1.msra.mxu0 0.0
  %1096 = vmatprep.subr.mxu0 0.0
  %1097 = vmatpush1.msra.mxu0 0.0
  %1098 = vmatprep.subr.mxu0 0.0
  %1099 = vmatpush1.msra.mxu0 0.0
  %1100 = vmatprep.mubr.f32.mxu0 0.0
  %1101 = vmatmul.mubr.f32.gmra.mrb[0].mxu0 %v1034
  %v1102 = vpop.f32.mrb[0].mxu0
  %v1103 = vadd.f32 %v934, %v1102
  %v1104 = vpop.f32.mrb[0].mxu0
  %v1105 = vadd.f32 %v936, %v1104
  %1106 = vdwg.mxu0
  %1107 = vmatprep.subr.mxu0 %v1028
  %1108 = vmatpush1.msra.mxu0 %v1027
  %1109 = vmatprep.subr.mxu0 0.0
  %1110 = vmatpush1.msra.mxu0 0.0
  %1111 = vmatprep.subr.mxu0 0.0
  %1112 = vmatpush1.msra.mxu0 0.0
  %1113 = vmatprep.subr.mxu0 0.0
  %1114 = vmatpush1.msra.mxu0 0.0
  %1115 = vmatprep.subr.mxu0 0.0
  %1116 = vmatpush1.msra.mxu0 0.0
  %1117 = vmatprep.subr.mxu0 0.0
  %1118 = vmatpush1.msra.mxu0 0.0
  %1119 = vmatprep.subr.mxu0 0.0
  %1120 = vmatpush1.msra.mxu0 0.0
  %1121 = vmatprep.subr.mxu0 0.0
  %1122 = vmatpush1.msra.mxu0 0.0
  %1123 = vmatprep.subr.mxu0 0.0
  %1124 = vmatpush1.msra.mxu0 0.0
  %1125 = vmatprep.subr.mxu0 0.0
  %1126 = vmatpush1.msra.mxu0 0.0
  %1127 = vmatprep.subr.mxu0 0.0
  %1128 = vmatpush1.msra.mxu0 0.0
  %1129 = vmatprep.subr.mxu0 0.0
  %1130 = vmatpush1.msra.mxu0 0.0
  %1131 = vmatprep.subr.mxu0 0.0
  %1132 = vmatpush1.msra.mxu0 0.0
  %1133 = vmatprep.subr.mxu0 0.0
  %1134 = vmatpush1.msra.mxu0 0.0
  %1135 = vmatprep.subr.mxu0 0.0
  %1136 = vmatpush1.msra.mxu0 0.0
  %1137 = vmatprep.subr.mxu0 0.0
  %1138 = vmatpush1.msra.mxu0 0.0
  %1139 = vmatprep.subr.mxu0 0.0
  %1140 = vmatpush1.msra.mxu0 0.0
  %1141 = vmatprep.subr.mxu0 0.0
  %1142 = vmatpush1.msra.mxu0 0.0
  %1143 = vmatprep.subr.mxu0 0.0
  %1144 = vmatpush1.msra.mxu0 0.0
  %1145 = vmatprep.subr.mxu0 0.0
  %1146 = vmatpush1.msra.mxu0 0.0
  %1147 = vmatprep.subr.mxu0 0.0
  %1148 = vmatpush1.msra.mxu0 0.0
  %1149 = vmatprep.subr.mxu0 0.0
  %1150 = vmatpush1.msra.mxu0 0.0
  %1151 = vmatprep.subr.mxu0 0.0
  %1152 = vmatpush1.msra.mxu0 0.0
  %1153 = vmatprep.subr.mxu0 0.0
  %1154 = vmatpush1.msra.mxu0 0.0
  %1155 = vmatprep.subr.mxu0 0.0
  %1156 = vmatpush1.msra.mxu0 0.0
  %1157 = vmatprep.subr.mxu0 0.0
  %1158 = vmatpush1.msra.mxu0 0.0
  %1159 = vmatprep.subr.mxu0 0.0
  %1160 = vmatpush1.msra.mxu0 0.0
  %1161 = vmatprep.subr.mxu0 0.0
  %1162 = vmatpush1.msra.mxu0 0.0
  %1163 = vmatprep.subr.mxu0 0.0
  %1164 = vmatpush1.msra.mxu0 0.0
  %1165 = vmatprep.subr.mxu0 0.0
  %1166 = vmatpush1.msra.mxu0 0.0
  %1167 = vmatprep.subr.mxu0 0.0
  %1168 = vmatpush1.msra.mxu0 0.0
  %1169 = vmatprep.subr.mxu0 0.0
  %1170 = vmatpush1.msra.mxu0 0.0
  %1171 = vmatprep.mubr.f32.mxu0 0.0
  %1172 = vmatmul.mubr.f32.gmra.mrb[0].mxu0 %v1034
  %v1173 = vpop.f32.mrb[0].mxu0
  %v1174 = vadd.f32 %v1005, %v1173
  %v1175 = vpop.f32.mrb[0].mxu0
  %v1176 = vadd.f32 %v1007, %v1175
  %1177 = vdwg.mxu0
  %s1178 = scalar_lea.vmem %s1, 8
  %v1179 = vld [vmem:[%s1178] sm:$0xf]
  %v1181 = vlaneseq
  %v1182 = vshrl.u32 %v1181, 7
  %v1183 = vsub.s32 0, %v1182
  %v1184 = vrot.slane %v1179, %v1183
  %v1185 = vlaneseq
  %v1186 = vshrl.u32 %v1185, 7
  %v1187 = vsub.s32 1, %v1186
  %v1188 = vrot.slane %v1179, %v1187
  %v1189 = vlaneseq
  %v1190 = vshrl.u32 %v1189, 7
  %v1191 = vsub.s32 2, %v1190
  %v1192 = vrot.slane %v1179, %v1191
  %v1193 = vlaneseq
  %v1194 = vshrl.u32 %v1193, 7
  %v1195 = vsub.s32 3, %v1194
  %v1196 = vrot.slane %v1179, %v1195
  %1197 = vrot.lane.b32.xlu0 %v1184, 113
  %v1198 = vpop.permute.xlu0 %1197
  %1199 = vrot.lane.b32.xlu0 %v1188, 113
  %v1200 = vpop.permute.xlu0 %1199
  %1201 = vrot.lane.b32.xlu0 %v1192, 113
  %v1202 = vpop.permute.xlu0 %1201
  %1203 = vrot.lane.b32.xlu0 %v1196, 113
  %v1204 = vpop.permute.xlu0 %1203
  %vm1205 = vcmask 924672
  %v1206 = vsel %vm1205, %v1198, %v1200
  %v1207 = vsel %vm1205, %v1200, %v1202
  %v1208 = vsel %vm1205, %v1202, %v1204
  %v1214 = vmul.f32 %v753, %v1198
  %v1215 = vmul.f32 %v754, %v1206
  %v1216 = vmul.f32 %v755, %v1207
  %v1217 = vmul.f32 %v756, %v1208
  %v1218 = vmul.f32 %v757, %v1204
  %s1219 = scalar_lea.vmem %s4, 16
  %v1220 = vld [vmem:[%s1219] sm:$0xff]
  %1226 = vrot.lane.b32.xlu0 %v1214, 15
  %v1227 = vpop.permute.xlu0 %1226
  %1228 = vrot.lane.b32.xlu0 %v1215, 15
  %v1229 = vpop.permute.xlu0 %1228
  %1230 = vrot.lane.b32.xlu0 %v1216, 15
  %v1231 = vpop.permute.xlu0 %1230
  %1232 = vrot.lane.b32.xlu0 %v1217, 15
  %v1233 = vpop.permute.xlu0 %1232
  %1234 = vrot.lane.b32.xlu0 %v1218, 15
  %v1235 = vpop.permute.xlu0 %1234
  %vm1236 = vcmask 121856
  %v1237 = vsel %vm1236, %v1227, %v1229
  %v1238 = vsel %vm1236, %v1229, %v1231
  %v1239 = vsel %vm1236, %v1231, %v1233
  %v1240 = vsel %vm1236, %v1233, %v1235
  %v1246 = vsel %vm77, %v1220, 0
  %1248 = vmatprep.subr.mxu0 %v1238
  %1249 = vmatpush1.msra.mxu0 %v1237
  %1250 = vmatprep.subr.mxu0 0.0
  %1251 = vmatpush1.msra.mxu0 0.0
  %1252 = vmatprep.subr.mxu0 0.0
  %1253 = vmatpush1.msra.mxu0 0.0
  %1254 = vmatprep.subr.mxu0 0.0
  %1255 = vmatpush1.msra.mxu0 0.0
  %1256 = vmatprep.subr.mxu0 0.0
  %1257 = vmatpush1.msra.mxu0 0.0
  %1258 = vmatprep.subr.mxu0 0.0
  %1259 = vmatpush1.msra.mxu0 0.0
  %1260 = vmatprep.subr.mxu0 0.0
  %1261 = vmatpush1.msra.mxu0 0.0
  %1262 = vmatprep.subr.mxu0 0.0
  %1263 = vmatpush1.msra.mxu0 0.0
  %1264 = vmatprep.subr.mxu0 0.0
  %1265 = vmatpush1.msra.mxu0 0.0
  %1266 = vmatprep.subr.mxu0 0.0
  %1267 = vmatpush1.msra.mxu0 0.0
  %1268 = vmatprep.subr.mxu0 0.0
  %1269 = vmatpush1.msra.mxu0 0.0
  %1270 = vmatprep.subr.mxu0 0.0
  %1271 = vmatpush1.msra.mxu0 0.0
  %1272 = vmatprep.subr.mxu0 0.0
  %1273 = vmatpush1.msra.mxu0 0.0
  %1274 = vmatprep.subr.mxu0 0.0
  %1275 = vmatpush1.msra.mxu0 0.0
  %1276 = vmatprep.subr.mxu0 0.0
  %1277 = vmatpush1.msra.mxu0 0.0
  %1278 = vmatprep.subr.mxu0 0.0
  %1279 = vmatpush1.msra.mxu0 0.0
  %1280 = vmatprep.subr.mxu0 0.0
  %1281 = vmatpush1.msra.mxu0 0.0
  %1282 = vmatprep.subr.mxu0 0.0
  %1283 = vmatpush1.msra.mxu0 0.0
  %1284 = vmatprep.subr.mxu0 0.0
  %1285 = vmatpush1.msra.mxu0 0.0
  %1286 = vmatprep.subr.mxu0 0.0
  %1287 = vmatpush1.msra.mxu0 0.0
  %1288 = vmatprep.subr.mxu0 0.0
  %1289 = vmatpush1.msra.mxu0 0.0
  %1290 = vmatprep.subr.mxu0 0.0
  %1291 = vmatpush1.msra.mxu0 0.0
  %1292 = vmatprep.subr.mxu0 0.0
  %1293 = vmatpush1.msra.mxu0 0.0
  %1294 = vmatprep.subr.mxu0 0.0
  %1295 = vmatpush1.msra.mxu0 0.0
  %1296 = vmatprep.subr.mxu0 0.0
  %1297 = vmatpush1.msra.mxu0 0.0
  %1298 = vmatprep.subr.mxu0 0.0
  %1299 = vmatpush1.msra.mxu0 0.0
  %1300 = vmatprep.subr.mxu0 0.0
  %1301 = vmatpush1.msra.mxu0 0.0
  %1302 = vmatprep.subr.mxu0 0.0
  %1303 = vmatpush1.msra.mxu0 0.0
  %1304 = vmatprep.subr.mxu0 0.0
  %1305 = vmatpush1.msra.mxu0 0.0
  %1306 = vmatprep.subr.mxu0 0.0
  %1307 = vmatpush1.msra.mxu0 0.0
  %1308 = vmatprep.subr.mxu0 0.0
  %1309 = vmatpush1.msra.mxu0 0.0
  %1310 = vmatprep.subr.mxu0 0.0
  %1311 = vmatpush1.msra.mxu0 0.0
  %1312 = vmatprep.mubr.f32.mxu0 0.0
  %1313 = vmatmul.mubr.f32.gmra.mrb[0].mxu0 %v1246
  %v1314 = vpop.f32.mrb[0].mxu0
  %v1315 = vadd.f32 0.0, %v1314
  %v1316 = vpop.f32.mrb[0].mxu0
  %v1317 = vadd.f32 0.0, %v1316
  %1318 = vdwg.mxu0
  %1319 = vmatprep.subr.mxu0 %v1240
  %1320 = vmatpush1.msra.mxu0 %v1239
  %1321 = vmatprep.subr.mxu0 0.0
  %1322 = vmatpush1.msra.mxu0 0.0
  %1323 = vmatprep.subr.mxu0 0.0
  %1324 = vmatpush1.msra.mxu0 0.0
  %1325 = vmatprep.subr.mxu0 0.0
  %1326 = vmatpush1.msra.mxu0 0.0
  %1327 = vmatprep.subr.mxu0 0.0
  %1328 = vmatpush1.msra.mxu0 0.0
  %1329 = vmatprep.subr.mxu0 0.0
  %1330 = vmatpush1.msra.mxu0 0.0
  %1331 = vmatprep.subr.mxu0 0.0
  %1332 = vmatpush1.msra.mxu0 0.0
  %1333 = vmatprep.subr.mxu0 0.0
  %1334 = vmatpush1.msra.mxu0 0.0
  %1335 = vmatprep.subr.mxu0 0.0
  %1336 = vmatpush1.msra.mxu0 0.0
  %1337 = vmatprep.subr.mxu0 0.0
  %1338 = vmatpush1.msra.mxu0 0.0
  %1339 = vmatprep.subr.mxu0 0.0
  %1340 = vmatpush1.msra.mxu0 0.0
  %1341 = vmatprep.subr.mxu0 0.0
  %1342 = vmatpush1.msra.mxu0 0.0
  %1343 = vmatprep.subr.mxu0 0.0
  %1344 = vmatpush1.msra.mxu0 0.0
  %1345 = vmatprep.subr.mxu0 0.0
  %1346 = vmatpush1.msra.mxu0 0.0
  %1347 = vmatprep.subr.mxu0 0.0
  %1348 = vmatpush1.msra.mxu0 0.0
  %1349 = vmatprep.subr.mxu0 0.0
  %1350 = vmatpush1.msra.mxu0 0.0
  %1351 = vmatprep.subr.mxu0 0.0
  %1352 = vmatpush1.msra.mxu0 0.0
  %1353 = vmatprep.subr.mxu0 0.0
  %1354 = vmatpush1.msra.mxu0 0.0
  %1355 = vmatprep.subr.mxu0 0.0
  %1356 = vmatpush1.msra.mxu0 0.0
  %1357 = vmatprep.subr.mxu0 0.0
  %1358 = vmatpush1.msra.mxu0 0.0
  %1359 = vmatprep.subr.mxu0 0.0
  %1360 = vmatpush1.msra.mxu0 0.0
  %1361 = vmatprep.subr.mxu0 0.0
  %1362 = vmatpush1.msra.mxu0 0.0
  %1363 = vmatprep.subr.mxu0 0.0
  %1364 = vmatpush1.msra.mxu0 0.0
  %1365 = vmatprep.subr.mxu0 0.0
  %1366 = vmatpush1.msra.mxu0 0.0
  %1367 = vmatprep.subr.mxu0 0.0
  %1368 = vmatpush1.msra.mxu0 0.0
  %1369 = vmatprep.subr.mxu0 0.0
  %1370 = vmatpush1.msra.mxu0 0.0
  %1371 = vmatprep.subr.mxu0 0.0
  %1372 = vmatpush1.msra.mxu0 0.0
  %1373 = vmatprep.subr.mxu0 0.0
  %1374 = vmatpush1.msra.mxu0 0.0
  %1375 = vmatprep.subr.mxu0 0.0
  %1376 = vmatpush1.msra.mxu0 0.0
  %1377 = vmatprep.subr.mxu0 0.0
  %1378 = vmatpush1.msra.mxu0 0.0
  %1379 = vmatprep.subr.mxu0 0.0
  %1380 = vmatpush1.msra.mxu0 0.0
  %1381 = vmatprep.subr.mxu0 0.0
  %1382 = vmatpush1.msra.mxu0 0.0
  %1383 = vmatprep.mubr.f32.mxu0 0.0
  %1384 = vmatmul.mubr.f32.gmra.mrb[0].mxu0 %v1246
  %v1385 = vpop.f32.mrb[0].mxu0
  %v1386 = vadd.f32 0.0, %v1385
  %v1387 = vpop.f32.mrb[0].mxu0
  %v1388 = vadd.f32 0.0, %v1387
  %1389 = vdwg.mxu0
  %v1390 = vadd.f32 %v1103, %v1315
  %v1391 = vadd.f32 %v1105, %v1317
  %v1392 = vadd.f32 %v1174, %v1386
  %v1393 = vadd.f32 %v1176, %v1388
  %s1394 = scalar_lea.vmem %s1, 12
  %v1395 = vld [vmem:[%s1394] sm:$0xf]
  %v1397 = vlaneseq
  %v1398 = vshrl.u32 %v1397, 7
  %v1399 = vsub.s32 0, %v1398
  %v1400 = vrot.slane %v1395, %v1399
  %v1401 = vlaneseq
  %v1402 = vshrl.u32 %v1401, 7
  %v1403 = vsub.s32 1, %v1402
  %v1404 = vrot.slane %v1395, %v1403
  %v1405 = vlaneseq
  %v1406 = vshrl.u32 %v1405, 7
  %v1407 = vsub.s32 2, %v1406
  %v1408 = vrot.slane %v1395, %v1407
  %v1409 = vlaneseq
  %v1410 = vshrl.u32 %v1409, 7
  %v1411 = vsub.s32 3, %v1410
  %v1412 = vrot.slane %v1395, %v1411
  %1413 = vrot.lane.b32.xlu0 %v1400, 127
  %v1414 = vpop.permute.xlu0 %1413
  %1415 = vrot.lane.b32.xlu0 %v1404, 127
  %v1416 = vpop.permute.xlu0 %1415
  %1417 = vrot.lane.b32.xlu0 %v1408, 127
  %v1418 = vpop.permute.xlu0 %1417
  %1419 = vrot.lane.b32.xlu0 %v1412, 127
  %v1420 = vpop.permute.xlu0 %1419
  %v1421 = vsel %vm68, %v1414, %v1416
  %v1422 = vsel %vm68, %v1416, %v1418
  %v1423 = vsel %vm68, %v1418, %v1420
  %v1429 = vmul.f32 %v753, %v1414
  %v1430 = vmul.f32 %v754, %v1421
  %v1431 = vmul.f32 %v755, %v1422
  %v1432 = vmul.f32 %v756, %v1423
  %v1433 = vmul.f32 %v757, %v1420
  %s1434 = scalar_lea.vmem %s4, 24
  %v1435 = vld [vmem:[%s1434] sm:$0xff]
  %1441 = vrot.lane.b32.xlu0 %v1429, 1
  %v1442 = vpop.permute.xlu0 %1441
  %1443 = vrot.lane.b32.xlu0 %v1430, 1
  %v1444 = vpop.permute.xlu0 %1443
  %1445 = vrot.lane.b32.xlu0 %v1431, 1
  %v1446 = vpop.permute.xlu0 %1445
  %1447 = vrot.lane.b32.xlu0 %v1432, 1
  %v1448 = vpop.permute.xlu0 %1447
  %1449 = vrot.lane.b32.xlu0 %v1433, 1
  %v1450 = vpop.permute.xlu0 %1449
  %vm1451 = vcmask 7168
  %v1452 = vsel %vm1451, %v1442, %v1444
  %v1453 = vsel %vm1451, %v1444, %v1446
  %v1454 = vsel %vm1451, %v1446, %v1448
  %v1455 = vsel %vm1451, %v1448, %v1450
  %v1461 = vsel %vm77, %v1435, 0
  %1463 = vmatprep.subr.mxu0 %v1453
  %1464 = vmatpush1.msra.mxu0 %v1452
  %1465 = vmatprep.subr.mxu0 0.0
  %1466 = vmatpush1.msra.mxu0 0.0
  %1467 = vmatprep.subr.mxu0 0.0
  %1468 = vmatpush1.msra.mxu0 0.0
  %1469 = vmatprep.subr.mxu0 0.0
  %1470 = vmatpush1.msra.mxu0 0.0
  %1471 = vmatprep.subr.mxu0 0.0
  %1472 = vmatpush1.msra.mxu0 0.0
  %1473 = vmatprep.subr.mxu0 0.0
  %1474 = vmatpush1.msra.mxu0 0.0
  %1475 = vmatprep.subr.mxu0 0.0
  %1476 = vmatpush1.msra.mxu0 0.0
  %1477 = vmatprep.subr.mxu0 0.0
  %1478 = vmatpush1.msra.mxu0 0.0
  %1479 = vmatprep.subr.mxu0 0.0
  %1480 = vmatpush1.msra.mxu0 0.0
  %1481 = vmatprep.subr.mxu0 0.0
  %1482 = vmatpush1.msra.mxu0 0.0
  %1483 = vmatprep.subr.mxu0 0.0
  %1484 = vmatpush1.msra.mxu0 0.0
  %1485 = vmatprep.subr.mxu0 0.0
  %1486 = vmatpush1.msra.mxu0 0.0
  %1487 = vmatprep.subr.mxu0 0.0
  %1488 = vmatpush1.msra.mxu0 0.0
  %1489 = vmatprep.subr.mxu0 0.0
  %1490 = vmatpush1.msra.mxu0 0.0
  %1491 = vmatprep.subr.mxu0 0.0
  %1492 = vmatpush1.msra.mxu0 0.0
  %1493 = vmatprep.subr.mxu0 0.0
  %1494 = vmatpush1.msra.mxu0 0.0
  %1495 = vmatprep.subr.mxu0 0.0
  %1496 = vmatpush1.msra.mxu0 0.0
  %1497 = vmatprep.subr.mxu0 0.0
  %1498 = vmatpush1.msra.mxu0 0.0
  %1499 = vmatprep.subr.mxu0 0.0
  %1500 = vmatpush1.msra.mxu0 0.0
  %1501 = vmatprep.subr.mxu0 0.0
  %1502 = vmatpush1.msra.mxu0 0.0
  %1503 = vmatprep.subr.mxu0 0.0
  %1504 = vmatpush1.msra.mxu0 0.0
  %1505 = vmatprep.subr.mxu0 0.0
  %1506 = vmatpush1.msra.mxu0 0.0
  %1507 = vmatprep.subr.mxu0 0.0
  %1508 = vmatpush1.msra.mxu0 0.0
  %1509 = vmatprep.subr.mxu0 0.0
  %1510 = vmatpush1.msra.mxu0 0.0
  %1511 = vmatprep.subr.mxu0 0.0
  %1512 = vmatpush1.msra.mxu0 0.0
  %1513 = vmatprep.subr.mxu0 0.0
  %1514 = vmatpush1.msra.mxu0 0.0
  %1515 = vmatprep.subr.mxu0 0.0
  %1516 = vmatpush1.msra.mxu0 0.0
  %1517 = vmatprep.subr.mxu0 0.0
  %1518 = vmatpush1.msra.mxu0 0.0
  %1519 = vmatprep.subr.mxu0 0.0
  %1520 = vmatpush1.msra.mxu0 0.0
  %1521 = vmatprep.subr.mxu0 0.0
  %1522 = vmatpush1.msra.mxu0 0.0
  %1523 = vmatprep.subr.mxu0 0.0
  %1524 = vmatpush1.msra.mxu0 0.0
  %1525 = vmatprep.subr.mxu0 0.0
  %1526 = vmatpush1.msra.mxu0 0.0
  %1527 = vmatprep.mubr.f32.mxu0 0.0
  %1528 = vmatmul.mubr.f32.gmra.mrb[0].mxu0 %v1461
  %v1529 = vpop.f32.mrb[0].mxu0
  %v1530 = vadd.f32 0.0, %v1529
  %v1531 = vpop.f32.mrb[0].mxu0
  %v1532 = vadd.f32 0.0, %v1531
  %1533 = vdwg.mxu0
  %1534 = vmatprep.subr.mxu0 %v1455
  %1535 = vmatpush1.msra.mxu0 %v1454
  %1536 = vmatprep.subr.mxu0 0.0
  %1537 = vmatpush1.msra.mxu0 0.0
  %1538 = vmatprep.subr.mxu0 0.0
  %1539 = vmatpush1.msra.mxu0 0.0
  %1540 = vmatprep.subr.mxu0 0.0
  %1541 = vmatpush1.msra.mxu0 0.0
  %1542 = vmatprep.subr.mxu0 0.0
  %1543 = vmatpush1.msra.mxu0 0.0
  %1544 = vmatprep.subr.mxu0 0.0
  %1545 = vmatpush1.msra.mxu0 0.0
  %1546 = vmatprep.subr.mxu0 0.0
  %1547 = vmatpush1.msra.mxu0 0.0
  %1548 = vmatprep.subr.mxu0 0.0
  %1549 = vmatpush1.msra.mxu0 0.0
  %1550 = vmatprep.subr.mxu0 0.0
  %1551 = vmatpush1.msra.mxu0 0.0
  %1552 = vmatprep.subr.mxu0 0.0
  %1553 = vmatpush1.msra.mxu0 0.0
  %1554 = vmatprep.subr.mxu0 0.0
  %1555 = vmatpush1.msra.mxu0 0.0
  %1556 = vmatprep.subr.mxu0 0.0
  %1557 = vmatpush1.msra.mxu0 0.0
  %1558 = vmatprep.subr.mxu0 0.0
  %1559 = vmatpush1.msra.mxu0 0.0
  %1560 = vmatprep.subr.mxu0 0.0
  %1561 = vmatpush1.msra.mxu0 0.0
  %1562 = vmatprep.subr.mxu0 0.0
  %1563 = vmatpush1.msra.mxu0 0.0
  %1564 = vmatprep.subr.mxu0 0.0
  %1565 = vmatpush1.msra.mxu0 0.0
  %1566 = vmatprep.subr.mxu0 0.0
  %1567 = vmatpush1.msra.mxu0 0.0
  %1568 = vmatprep.subr.mxu0 0.0
  %1569 = vmatpush1.msra.mxu0 0.0
  %1570 = vmatprep.subr.mxu0 0.0
  %1571 = vmatpush1.msra.mxu0 0.0
  %1572 = vmatprep.subr.mxu0 0.0
  %1573 = vmatpush1.msra.mxu0 0.0
  %1574 = vmatprep.subr.mxu0 0.0
  %1575 = vmatpush1.msra.mxu0 0.0
  %1576 = vmatprep.subr.mxu0 0.0
  %1577 = vmatpush1.msra.mxu0 0.0
  %1578 = vmatprep.subr.mxu0 0.0
  %1579 = vmatpush1.msra.mxu0 0.0
  %1580 = vmatprep.subr.mxu0 0.0
  %1581 = vmatpush1.msra.mxu0 0.0
  %1582 = vmatprep.subr.mxu0 0.0
  %1583 = vmatpush1.msra.mxu0 0.0
  %1584 = vmatprep.subr.mxu0 0.0
  %1585 = vmatpush1.msra.mxu0 0.0
  %1586 = vmatprep.subr.mxu0 0.0
  %1587 = vmatpush1.msra.mxu0 0.0
  %1588 = vmatprep.subr.mxu0 0.0
  %1589 = vmatpush1.msra.mxu0 0.0
  %1590 = vmatprep.subr.mxu0 0.0
  %1591 = vmatpush1.msra.mxu0 0.0
  %1592 = vmatprep.subr.mxu0 0.0
  %1593 = vmatpush1.msra.mxu0 0.0
  %1594 = vmatprep.subr.mxu0 0.0
  %1595 = vmatpush1.msra.mxu0 0.0
  %1596 = vmatprep.subr.mxu0 0.0
  %1597 = vmatpush1.msra.mxu0 0.0
  %1598 = vmatprep.mubr.f32.mxu0 0.0
  %1599 = vmatmul.mubr.f32.gmra.mrb[0].mxu0 %v1461
  %v1600 = vpop.f32.mrb[0].mxu0
  %v1601 = vadd.f32 0.0, %v1600
  %v1602 = vpop.f32.mrb[0].mxu0
  %v1603 = vadd.f32 0.0, %v1602
  %1604 = vdwg.mxu0
  %v1605 = vadd.f32 %v1390, %v1530
  %v1606 = vadd.f32 %v1391, %v1532
  %v1607 = vadd.f32 %v1392, %v1601
  %v1608 = vadd.f32 %v1393, %v1603
  %s1609 = scalar_lea.vmem %s1, 16
  %v1610 = vld [vmem:[%s1609] sm:$0xf]
  %v1612 = vlaneseq
  %v1613 = vshrl.u32 %v1612, 7
  %v1614 = vsub.s32 0, %v1613
  %v1615 = vrot.slane %v1610, %v1614
  %v1616 = vlaneseq
  %v1617 = vshrl.u32 %v1616, 7
  %v1618 = vsub.s32 1, %v1617
  %v1619 = vrot.slane %v1610, %v1618
  %v1620 = vlaneseq
  %v1621 = vshrl.u32 %v1620, 7
  %v1622 = vsub.s32 2, %v1621
  %v1623 = vrot.slane %v1610, %v1622
  %v1624 = vlaneseq
  %v1625 = vshrl.u32 %v1624, 7
  %v1626 = vsub.s32 3, %v1625
  %v1627 = vrot.slane %v1610, %v1626
  %v1632 = vmul.f32 %v754, %v1615
  %v1633 = vmul.f32 %v755, %v1619
  %v1634 = vmul.f32 %v756, %v1623
  %v1635 = vmul.f32 %v757, %v1627
  %s1636 = scalar_lea.vmem %s4, 32
  %v1637 = vld [vmem:[%s1636] sm:$0xff]
  %v1639 = vsel %vm77, %v1637, 0
  %1641 = vmatprep.subr.mxu0 %v1633
  %1642 = vmatpush1.msra.mxu0 %v1632
  %1643 = vmatprep.subr.mxu0 0.0
  %1644 = vmatpush1.msra.mxu0 0.0
  %1645 = vmatprep.subr.mxu0 0.0
  %1646 = vmatpush1.msra.mxu0 0.0
  %1647 = vmatprep.subr.mxu0 0.0
  %1648 = vmatpush1.msra.mxu0 0.0
  %1649 = vmatprep.subr.mxu0 0.0
  %1650 = vmatpush1.msra.mxu0 0.0
  %1651 = vmatprep.subr.mxu0 0.0
  %1652 = vmatpush1.msra.mxu0 0.0
  %1653 = vmatprep.subr.mxu0 0.0
  %1654 = vmatpush1.msra.mxu0 0.0
  %1655 = vmatprep.subr.mxu0 0.0
  %1656 = vmatpush1.msra.mxu0 0.0
  %1657 = vmatprep.subr.mxu0 0.0
  %1658 = vmatpush1.msra.mxu0 0.0
  %1659 = vmatprep.subr.mxu0 0.0
  %1660 = vmatpush1.msra.mxu0 0.0
  %1661 = vmatprep.subr.mxu0 0.0
  %1662 = vmatpush1.msra.mxu0 0.0
  %1663 = vmatprep.subr.mxu0 0.0
  %1664 = vmatpush1.msra.mxu0 0.0
  %1665 = vmatprep.subr.mxu0 0.0
  %1666 = vmatpush1.msra.mxu0 0.0
  %1667 = vmatprep.subr.mxu0 0.0
  %1668 = vmatpush1.msra.mxu0 0.0
  %1669 = vmatprep.subr.mxu0 0.0
  %1670 = vmatpush1.msra.mxu0 0.0
  %1671 = vmatprep.subr.mxu0 0.0
  %1672 = vmatpush1.msra.mxu0 0.0
  %1673 = vmatprep.subr.mxu0 0.0
  %1674 = vmatpush1.msra.mxu0 0.0
  %1675 = vmatprep.subr.mxu0 0.0
  %1676 = vmatpush1.msra.mxu0 0.0
  %1677 = vmatprep.subr.mxu0 0.0
  %1678 = vmatpush1.msra.mxu0 0.0
  %1679 = vmatprep.subr.mxu0 0.0
  %1680 = vmatpush1.msra.mxu0 0.0
  %1681 = vmatprep.subr.mxu0 0.0
  %1682 = vmatpush1.msra.mxu0 0.0
  %1683 = vmatprep.subr.mxu0 0.0
  %1684 = vmatpush1.msra.mxu0 0.0
  %1685 = vmatprep.subr.mxu0 0.0
  %1686 = vmatpush1.msra.mxu0 0.0
  %1687 = vmatprep.subr.mxu0 0.0
  %1688 = vmatpush1.msra.mxu0 0.0
  %1689 = vmatprep.subr.mxu0 0.0
  %1690 = vmatpush1.msra.mxu0 0.0
  %1691 = vmatprep.subr.mxu0 0.0
  %1692 = vmatpush1.msra.mxu0 0.0
  %1693 = vmatprep.subr.mxu0 0.0
  %1694 = vmatpush1.msra.mxu0 0.0
  %1695 = vmatprep.subr.mxu0 0.0
  %1696 = vmatpush1.msra.mxu0 0.0
  %1697 = vmatprep.subr.mxu0 0.0
  %1698 = vmatpush1.msra.mxu0 0.0
  %1699 = vmatprep.subr.mxu0 0.0
  %1700 = vmatpush1.msra.mxu0 0.0
  %1701 = vmatprep.subr.mxu0 0.0
  %1702 = vmatpush1.msra.mxu0 0.0
  %1703 = vmatprep.subr.mxu0 0.0
  %1704 = vmatpush1.msra.mxu0 0.0
  %1705 = vmatprep.mubr.f32.mxu0 0.0
  %1706 = vmatmul.mubr.f32.gmra.mrb[0].mxu0 %v1639
  %v1707 = vpop.f32.mrb[0].mxu0
  %v1708 = vadd.f32 0.0, %v1707
  %v1709 = vpop.f32.mrb[0].mxu0
  %v1710 = vadd.f32 0.0, %v1709
  %1711 = vdwg.mxu0
  %1712 = vmatprep.subr.mxu0 %v1635
  %1713 = vmatpush1.msra.mxu0 %v1634
  %1714 = vmatprep.subr.mxu0 0.0
  %1715 = vmatpush1.msra.mxu0 0.0
  %1716 = vmatprep.subr.mxu0 0.0
  %1717 = vmatpush1.msra.mxu0 0.0
  %1718 = vmatprep.subr.mxu0 0.0
  %1719 = vmatpush1.msra.mxu0 0.0
  %1720 = vmatprep.subr.mxu0 0.0
  %1721 = vmatpush1.msra.mxu0 0.0
  %1722 = vmatprep.subr.mxu0 0.0
  %1723 = vmatpush1.msra.mxu0 0.0
  %1724 = vmatprep.subr.mxu0 0.0
  %1725 = vmatpush1.msra.mxu0 0.0
  %1726 = vmatprep.subr.mxu0 0.0
  %1727 = vmatpush1.msra.mxu0 0.0
  %1728 = vmatprep.subr.mxu0 0.0
  %1729 = vmatpush1.msra.mxu0 0.0
  %1730 = vmatprep.subr.mxu0 0.0
  %1731 = vmatpush1.msra.mxu0 0.0
  %1732 = vmatprep.subr.mxu0 0.0
  %1733 = vmatpush1.msra.mxu0 0.0
  %1734 = vmatprep.subr.mxu0 0.0
  %1735 = vmatpush1.msra.mxu0 0.0
  %1736 = vmatprep.subr.mxu0 0.0
  %1737 = vmatpush1.msra.mxu0 0.0
  %1738 = vmatprep.subr.mxu0 0.0
  %1739 = vmatpush1.msra.mxu0 0.0
  %1740 = vmatprep.subr.mxu0 0.0
  %1741 = vmatpush1.msra.mxu0 0.0
  %1742 = vmatprep.subr.mxu0 0.0
  %1743 = vmatpush1.msra.mxu0 0.0
  %1744 = vmatprep.subr.mxu0 0.0
  %1745 = vmatpush1.msra.mxu0 0.0
  %1746 = vmatprep.subr.mxu0 0.0
  %1747 = vmatpush1.msra.mxu0 0.0
  %1748 = vmatprep.subr.mxu0 0.0
  %1749 = vmatpush1.msra.mxu0 0.0
  %1750 = vmatprep.subr.mxu0 0.0
  %1751 = vmatpush1.msra.mxu0 0.0
  %1752 = vmatprep.subr.mxu0 0.0
  %1753 = vmatpush1.msra.mxu0 0.0
  %1754 = vmatprep.subr.mxu0 0.0
  %1755 = vmatpush1.msra.mxu0 0.0
  %1756 = vmatprep.subr.mxu0 0.0
  %1757 = vmatpush1.msra.mxu0 0.0
  %1758 = vmatprep.subr.mxu0 0.0
  %1759 = vmatpush1.msra.mxu0 0.0
  %1760 = vmatprep.subr.mxu0 0.0
  %1761 = vmatpush1.msra.mxu0 0.0
  %1762 = vmatprep.subr.mxu0 0.0
  %1763 = vmatpush1.msra.mxu0 0.0
  %1764 = vmatprep.subr.mxu0 0.0
  %1765 = vmatpush1.msra.mxu0 0.0
  %1766 = vmatprep.subr.mxu0 0.0
  %1767 = vmatpush1.msra.mxu0 0.0
  %1768 = vmatprep.subr.mxu0 0.0
  %1769 = vmatpush1.msra.mxu0 0.0
  %1770 = vmatprep.subr.mxu0 0.0
  %1771 = vmatpush1.msra.mxu0 0.0
  %1772 = vmatprep.subr.mxu0 0.0
  %1773 = vmatpush1.msra.mxu0 0.0
  %1774 = vmatprep.subr.mxu0 0.0
  %1775 = vmatpush1.msra.mxu0 0.0
  %1776 = vmatprep.mubr.f32.mxu0 0.0
  %1777 = vmatmul.mubr.f32.gmra.mrb[0].mxu0 %v1639
  %v1778 = vpop.f32.mrb[0].mxu0
  %v1779 = vadd.f32 0.0, %v1778
  %v1780 = vpop.f32.mrb[0].mxu0
  %v1781 = vadd.f32 0.0, %v1780
  %1782 = vdwg.mxu0
  %v1783 = vadd.f32 %v1605, %v1708
  %v1784 = vadd.f32 %v1606, %v1710
  %v1785 = vadd.f32 %v1607, %v1779
  %v1786 = vadd.f32 %v1608, %v1781
  %v1787 = vld [vmem:[#allocation2 + $0x8] sm:$0xff]
  %v1788 = vld [vmem:[#allocation2 + $0x10] sm:$0xff]
  %v1789 = vld [vmem:[#allocation2 + $0x18] sm:$0xff]
  %v1790 = vld [vmem:[#allocation2 + $0x20] sm:$0xff]
  %v1791 = vld [vmem:[#allocation2 + $0x28] sm:$0xff]
  %s1792 = scalar_lea.vmem %s1, 20
  %v1793 = vld [vmem:[%s1792] sm:$0xf]
  %v1795 = vlaneseq
  %v1796 = vshrl.u32 %v1795, 7
  %v1797 = vsub.s32 0, %v1796
  %v1798 = vrot.slane %v1793, %v1797
  %v1799 = vlaneseq
  %v1800 = vshrl.u32 %v1799, 7
  %v1801 = vsub.s32 1, %v1800
  %v1802 = vrot.slane %v1793, %v1801
  %v1803 = vlaneseq
  %v1804 = vshrl.u32 %v1803, 7
  %v1805 = vsub.s32 2, %v1804
  %v1806 = vrot.slane %v1793, %v1805
  %v1807 = vlaneseq
  %v1808 = vshrl.u32 %v1807, 7
  %v1809 = vsub.s32 3, %v1808
  %v1810 = vrot.slane %v1793, %v1809
  %1811 = vrot.lane.b32.xlu0 %v1798, 1
  %v1812 = vpop.permute.xlu0 %1811
  %1813 = vrot.lane.b32.xlu0 %v1802, 1
  %v1814 = vpop.permute.xlu0 %1813
  %1815 = vrot.lane.b32.xlu0 %v1806, 1
  %v1816 = vpop.permute.xlu0 %1815
  %1817 = vrot.lane.b32.xlu0 %v1810, 1
  %v1818 = vpop.permute.xlu0 %1817
  %v1819 = vsel %vm1451, %v1812, %v1814
  %v1820 = vsel %vm1451, %v1814, %v1816
  %v1821 = vsel %vm1451, %v1816, %v1818
  %v1827 = vmul.f32 %v1787, %v1812
  %v1828 = vmul.f32 %v1788, %v1819
  %v1829 = vmul.f32 %v1789, %v1820
  %v1830 = vmul.f32 %v1790, %v1821
  %v1831 = vmul.f32 %v1791, %v1818
  %s1832 = scalar_lea.vmem %s4, 40
  %v1833 = vld [vmem:[%s1832] sm:$0xff]
  %1839 = vrot.lane.b32.xlu0 %v1827, 127
  %v1840 = vpop.permute.xlu0 %1839
  %1841 = vrot.lane.b32.xlu0 %v1828, 127
  %v1842 = vpop.permute.xlu0 %1841
  %1843 = vrot.lane.b32.xlu0 %v1829, 127
  %v1844 = vpop.permute.xlu0 %1843
  %1845 = vrot.lane.b32.xlu0 %v1830, 127
  %v1846 = vpop.permute.xlu0 %1845
  %1847 = vrot.lane.b32.xlu0 %v1831, 127
  %v1848 = vpop.permute.xlu0 %1847
  %v1849 = vsel %vm68, %v1840, %v1842
  %v1850 = vsel %vm68, %v1842, %v1844
  %v1851 = vsel %vm68, %v1844, %v1846
  %v1852 = vsel %vm68, %v1846, %v1848
  %v1858 = vsel %vm77, %v1833, 0
  %1860 = vmatprep.subr.mxu0 %v1850
  %1861 = vmatpush1.msra.mxu0 %v1849
  %1862 = vmatprep.subr.mxu0 0.0
  %1863 = vmatpush1.msra.mxu0 0.0
  %1864 = vmatprep.subr.mxu0 0.0
  %1865 = vmatpush1.msra.mxu0 0.0
  %1866 = vmatprep.subr.mxu0 0.0
  %1867 = vmatpush1.msra.mxu0 0.0
  %1868 = vmatprep.subr.mxu0 0.0
  %1869 = vmatpush1.msra.mxu0 0.0
  %1870 = vmatprep.subr.mxu0 0.0
  %1871 = vmatpush1.msra.mxu0 0.0
  %1872 = vmatprep.subr.mxu0 0.0
  %1873 = vmatpush1.msra.mxu0 0.0
  %1874 = vmatprep.subr.mxu0 0.0
  %1875 = vmatpush1.msra.mxu0 0.0
  %1876 = vmatprep.subr.mxu0 0.0
  %1877 = vmatpush1.msra.mxu0 0.0
  %1878 = vmatprep.subr.mxu0 0.0
  %1879 = vmatpush1.msra.mxu0 0.0
  %1880 = vmatprep.subr.mxu0 0.0
  %1881 = vmatpush1.msra.mxu0 0.0
  %1882 = vmatprep.subr.mxu0 0.0
  %1883 = vmatpush1.msra.mxu0 0.0
  %1884 = vmatprep.subr.mxu0 0.0
  %1885 = vmatpush1.msra.mxu0 0.0
  %1886 = vmatprep.subr.mxu0 0.0
  %1887 = vmatpush1.msra.mxu0 0.0
  %1888 = vmatprep.subr.mxu0 0.0
  %1889 = vmatpush1.msra.mxu0 0.0
  %1890 = vmatprep.subr.mxu0 0.0
  %1891 = vmatpush1.msra.mxu0 0.0
  %1892 = vmatprep.subr.mxu0 0.0
  %1893 = vmatpush1.msra.mxu0 0.0
  %1894 = vmatprep.subr.mxu0 0.0
  %1895 = vmatpush1.msra.mxu0 0.0
  %1896 = vmatprep.subr.mxu0 0.0
  %1897 = vmatpush1.msra.mxu0 0.0
  %1898 = vmatprep.subr.mxu0 0.0
  %1899 = vmatpush1.msra.mxu0 0.0
  %1900 = vmatprep.subr.mxu0 0.0
  %1901 = vmatpush1.msra.mxu0 0.0
  %1902 = vmatprep.subr.mxu0 0.0
  %1903 = vmatpush1.msra.mxu0 0.0
  %1904 = vmatprep.subr.mxu0 0.0
  %1905 = vmatpush1.msra.mxu0 0.0
  %1906 = vmatprep.subr.mxu0 0.0
  %1907 = vmatpush1.msra.mxu0 0.0
  %1908 = vmatprep.subr.mxu0 0.0
  %1909 = vmatpush1.msra.mxu0 0.0
  %1910 = vmatprep.subr.mxu0 0.0
  %1911 = vmatpush1.msra.mxu0 0.0
  %1912 = vmatprep.subr.mxu0 0.0
  %1913 = vmatpush1.msra.mxu0 0.0
  %1914 = vmatprep.subr.mxu0 0.0
  %1915 = vmatpush1.msra.mxu0 0.0
  %1916 = vmatprep.subr.mxu0 0.0
  %1917 = vmatpush1.msra.mxu0 0.0
  %1918 = vmatprep.subr.mxu0 0.0
  %1919 = vmatpush1.msra.mxu0 0.0
  %1920 = vmatprep.subr.mxu0 0.0
  %1921 = vmatpush1.msra.mxu0 0.0
  %1922 = vmatprep.subr.mxu0 0.0
  %1923 = vmatpush1.msra.mxu0 0.0
  %1924 = vmatprep.mubr.f32.mxu0 0.0
  %1925 = vmatmul.mubr.f32.gmra.mrb[0].mxu0 %v1858
  %v1926 = vpop.f32.mrb[0].mxu0
  %v1927 = vadd.f32 0.0, %v1926
  %v1928 = vpop.f32.mrb[0].mxu0
  %v1929 = vadd.f32 0.0, %v1928
  %1930 = vdwg.mxu0
  %1931 = vmatprep.subr.mxu0 %v1852
  %1932 = vmatpush1.msra.mxu0 %v1851
  %1933 = vmatprep.subr.mxu0 0.0
  %1934 = vmatpush1.msra.mxu0 0.0
  %1935 = vmatprep.subr.mxu0 0.0
  %1936 = vmatpush1.msra.mxu0 0.0
  %1937 = vmatprep.subr.mxu0 0.0
  %1938 = vmatpush1.msra.mxu0 0.0
  %1939 = vmatprep.subr.mxu0 0.0
  %1940 = vmatpush1.msra.mxu0 0.0
  %1941 = vmatprep.subr.mxu0 0.0
  %1942 = vmatpush1.msra.mxu0 0.0
  %1943 = vmatprep.subr.mxu0 0.0
  %1944 = vmatpush1.msra.mxu0 0.0
  %1945 = vmatprep.subr.mxu0 0.0
  %1946 = vmatpush1.msra.mxu0 0.0
  %1947 = vmatprep.subr.mxu0 0.0
  %1948 = vmatpush1.msra.mxu0 0.0
  %1949 = vmatprep.subr.mxu0 0.0
  %1950 = vmatpush1.msra.mxu0 0.0
  %1951 = vmatprep.subr.mxu0 0.0
  %1952 = vmatpush1.msra.mxu0 0.0
  %1953 = vmatprep.subr.mxu0 0.0
  %1954 = vmatpush1.msra.mxu0 0.0
  %1955 = vmatprep.subr.mxu0 0.0
  %1956 = vmatpush1.msra.mxu0 0.0
  %1957 = vmatprep.subr.mxu0 0.0
  %1958 = vmatpush1.msra.mxu0 0.0
  %1959 = vmatprep.subr.mxu0 0.0
  %1960 = vmatpush1.msra.mxu0 0.0
  %1961 = vmatprep.subr.mxu0 0.0
  %1962 = vmatpush1.msra.mxu0 0.0
  %1963 = vmatprep.subr.mxu0 0.0
  %1964 = vmatpush1.msra.mxu0 0.0
  %1965 = vmatprep.subr.mxu0 0.0
  %1966 = vmatpush1.msra.mxu0 0.0
  %1967 = vmatprep.subr.mxu0 0.0
  %1968 = vmatpush1.msra.mxu0 0.0
  %1969 = vmatprep.subr.mxu0 0.0
  %1970 = vmatpush1.msra.mxu0 0.0
  %1971 = vmatprep.subr.mxu0 0.0
  %1972 = vmatpush1.msra.mxu0 0.0
  %1973 = vmatprep.subr.mxu0 0.0
  %1974 = vmatpush1.msra.mxu0 0.0
  %1975 = vmatprep.subr.mxu0 0.0
  %1976 = vmatpush1.msra.mxu0 0.0
  %1977 = vmatprep.subr.mxu0 0.0
  %1978 = vmatpush1.msra.mxu0 0.0
  %1979 = vmatprep.subr.mxu0 0.0
  %1980 = vmatpush1.msra.mxu0 0.0
  %1981 = vmatprep.subr.mxu0 0.0
  %1982 = vmatpush1.msra.mxu0 0.0
  %1983 = vmatprep.subr.mxu0 0.0
  %1984 = vmatpush1.msra.mxu0 0.0
  %1985 = vmatprep.subr.mxu0 0.0
  %1986 = vmatpush1.msra.mxu0 0.0
  %1987 = vmatprep.subr.mxu0 0.0
  %1988 = vmatpush1.msra.mxu0 0.0
  %1989 = vmatprep.subr.mxu0 0.0
  %1990 = vmatpush1.msra.mxu0 0.0
  %1991 = vmatprep.subr.mxu0 0.0
  %1992 = vmatpush1.msra.mxu0 0.0
  %1993 = vmatprep.subr.mxu0 0.0
  %1994 = vmatpush1.msra.mxu0 0.0
  %1995 = vmatprep.mubr.f32.mxu0 0.0
  %1996 = vmatmul.mubr.f32.gmra.mrb[0].mxu0 %v1858
  %v1997 = vpop.f32.mrb[0].mxu0
  %v1998 = vadd.f32 0.0, %v1997
  %v1999 = vpop.f32.mrb[0].mxu0
  %v2000 = vadd.f32 0.0, %v1999
  %2001 = vdwg.mxu0
  %v2002 = vadd.f32 %v1783, %v1927
  %v2003 = vadd.f32 %v1784, %v1929
  %v2004 = vadd.f32 %v1785, %v1998
  %v2005 = vadd.f32 %v1786, %v2000
  %s2006 = scalar_lea.vmem %s1, 24
  %v2007 = vld [vmem:[%s2006] sm:$0xf]
  %v2009 = vlaneseq
  %v2010 = vshrl.u32 %v2009, 7
  %v2011 = vsub.s32 0, %v2010
  %v2012 = vrot.slane %v2007, %v2011
  %v2013 = vlaneseq
  %v2014 = vshrl.u32 %v2013, 7
  %v2015 = vsub.s32 1, %v2014
  %v2016 = vrot.slane %v2007, %v2015
  %v2017 = vlaneseq
  %v2018 = vshrl.u32 %v2017, 7
  %v2019 = vsub.s32 2, %v2018
  %v2020 = vrot.slane %v2007, %v2019
  %v2021 = vlaneseq
  %v2022 = vshrl.u32 %v2021, 7
  %v2023 = vsub.s32 3, %v2022
  %v2024 = vrot.slane %v2007, %v2023
  %2025 = vrot.lane.b32.xlu0 %v2012, 15
  %v2026 = vpop.permute.xlu0 %2025
  %2027 = vrot.lane.b32.xlu0 %v2016, 15
  %v2028 = vpop.permute.xlu0 %2027
  %2029 = vrot.lane.b32.xlu0 %v2020, 15
  %v2030 = vpop.permute.xlu0 %2029
  %2031 = vrot.lane.b32.xlu0 %v2024, 15
  %v2032 = vpop.permute.xlu0 %2031
  %v2033 = vsel %vm1236, %v2026, %v2028
  %v2034 = vsel %vm1236, %v2028, %v2030
  %v2035 = vsel %vm1236, %v2030, %v2032
  %v2041 = vmul.f32 %v1787, %v2026
  %v2042 = vmul.f32 %v1788, %v2033
  %v2043 = vmul.f32 %v1789, %v2034
  %v2044 = vmul.f32 %v1790, %v2035
  %v2045 = vmul.f32 %v1791, %v2032
  %s2046 = scalar_lea.vmem %s4, 48
  %v2047 = vld [vmem:[%s2046] sm:$0xff]
  %2053 = vrot.lane.b32.xlu0 %v2041, 113
  %v2054 = vpop.permute.xlu0 %2053
  %2055 = vrot.lane.b32.xlu0 %v2042, 113
  %v2056 = vpop.permute.xlu0 %2055
  %2057 = vrot.lane.b32.xlu0 %v2043, 113
  %v2058 = vpop.permute.xlu0 %2057
  %2059 = vrot.lane.b32.xlu0 %v2044, 113
  %v2060 = vpop.permute.xlu0 %2059
  %2061 = vrot.lane.b32.xlu0 %v2045, 113
  %v2062 = vpop.permute.xlu0 %2061
  %v2063 = vsel %vm1205, %v2054, %v2056
  %v2064 = vsel %vm1205, %v2056, %v2058
  %v2065 = vsel %vm1205, %v2058, %v2060
  %v2066 = vsel %vm1205, %v2060, %v2062
  %v2072 = vsel %vm77, %v2047, 0
  %2074 = vmatprep.subr.mxu0 %v2064
  %2075 = vmatpush1.msra.mxu0 %v2063
  %2076 = vmatprep.subr.mxu0 0.0
  %2077 = vmatpush1.msra.mxu0 0.0
  %2078 = vmatprep.subr.mxu0 0.0
  %2079 = vmatpush1.msra.mxu0 0.0
  %2080 = vmatprep.subr.mxu0 0.0
  %2081 = vmatpush1.msra.mxu0 0.0
  %2082 = vmatprep.subr.mxu0 0.0
  %2083 = vmatpush1.msra.mxu0 0.0
  %2084 = vmatprep.subr.mxu0 0.0
  %2085 = vmatpush1.msra.mxu0 0.0
  %2086 = vmatprep.subr.mxu0 0.0
  %2087 = vmatpush1.msra.mxu0 0.0
  %2088 = vmatprep.subr.mxu0 0.0
  %2089 = vmatpush1.msra.mxu0 0.0
  %2090 = vmatprep.subr.mxu0 0.0
  %2091 = vmatpush1.msra.mxu0 0.0
  %2092 = vmatprep.subr.mxu0 0.0
  %2093 = vmatpush1.msra.mxu0 0.0
  %2094 = vmatprep.subr.mxu0 0.0
  %2095 = vmatpush1.msra.mxu0 0.0
  %2096 = vmatprep.subr.mxu0 0.0
  %2097 = vmatpush1.msra.mxu0 0.0
  %2098 = vmatprep.subr.mxu0 0.0
  %2099 = vmatpush1.msra.mxu0 0.0
  %2100 = vmatprep.subr.mxu0 0.0
  %2101 = vmatpush1.msra.mxu0 0.0
  %2102 = vmatprep.subr.mxu0 0.0
  %2103 = vmatpush1.msra.mxu0 0.0
  %2104 = vmatprep.subr.mxu0 0.0
  %2105 = vmatpush1.msra.mxu0 0.0
  %2106 = vmatprep.subr.mxu0 0.0
  %2107 = vmatpush1.msra.mxu0 0.0
  %2108 = vmatprep.subr.mxu0 0.0
  %2109 = vmatpush1.msra.mxu0 0.0
  %2110 = vmatprep.subr.mxu0 0.0
  %2111 = vmatpush1.msra.mxu0 0.0
  %2112 = vmatprep.subr.mxu0 0.0
  %2113 = vmatpush1.msra.mxu0 0.0
  %2114 = vmatprep.subr.mxu0 0.0
  %2115 = vmatpush1.msra.mxu0 0.0
  %2116 = vmatprep.subr.mxu0 0.0
  %2117 = vmatpush1.msra.mxu0 0.0
  %2118 = vmatprep.subr.mxu0 0.0
  %2119 = vmatpush1.msra.mxu0 0.0
  %2120 = vmatprep.subr.mxu0 0.0
  %2121 = vmatpush1.msra.mxu0 0.0
  %2122 = vmatprep.subr.mxu0 0.0
  %2123 = vmatpush1.msra.mxu0 0.0
  %2124 = vmatprep.subr.mxu0 0.0
  %2125 = vmatpush1.msra.mxu0 0.0
  %2126 = vmatprep.subr.mxu0 0.0
  %2127 = vmatpush1.msra.mxu0 0.0
  %2128 = vmatprep.subr.mxu0 0.0
  %2129 = vmatpush1.msra.mxu0 0.0
  %2130 = vmatprep.subr.mxu0 0.0
  %2131 = vmatpush1.msra.mxu0 0.0
  %2132 = vmatprep.subr.mxu0 0.0
  %2133 = vmatpush1.msra.mxu0 0.0
  %2134 = vmatprep.subr.mxu0 0.0
  %2135 = vmatpush1.msra.mxu0 0.0
  %2136 = vmatprep.subr.mxu0 0.0
  %2137 = vmatpush1.msra.mxu0 0.0
  %2138 = vmatprep.mubr.f32.mxu0 0.0
  %2139 = vmatmul.mubr.f32.gmra.mrb[0].mxu0 %v2072
  %v2140 = vpop.f32.mrb[0].mxu0
  %v2141 = vadd.f32 0.0, %v2140
  %v2142 = vpop.f32.mrb[0].mxu0
  %v2143 = vadd.f32 0.0, %v2142
  %2144 = vdwg.mxu0
  %2145 = vmatprep.subr.mxu0 %v2066
  %2146 = vmatpush1.msra.mxu0 %v2065
  %2147 = vmatprep.subr.mxu0 0.0
  %2148 = vmatpush1.msra.mxu0 0.0
  %2149 = vmatprep.subr.mxu0 0.0
  %2150 = vmatpush1.msra.mxu0 0.0
  %2151 = vmatprep.subr.mxu0 0.0
  %2152 = vmatpush1.msra.mxu0 0.0
  %2153 = vmatprep.subr.mxu0 0.0
  %2154 = vmatpush1.msra.mxu0 0.0
  %2155 = vmatprep.subr.mxu0 0.0
  %2156 = vmatpush1.msra.mxu0 0.0
  %2157 = vmatprep.subr.mxu0 0.0
  %2158 = vmatpush1.msra.mxu0 0.0
  %2159 = vmatprep.subr.mxu0 0.0
  %2160 = vmatpush1.msra.mxu0 0.0
  %2161 = vmatprep.subr.mxu0 0.0
  %2162 = vmatpush1.msra.mxu0 0.0
  %2163 = vmatprep.subr.mxu0 0.0
  %2164 = vmatpush1.msra.mxu0 0.0
  %2165 = vmatprep.subr.mxu0 0.0
  %2166 = vmatpush1.msra.mxu0 0.0
  %2167 = vmatprep.subr.mxu0 0.0
  %2168 = vmatpush1.msra.mxu0 0.0
  %2169 = vmatprep.subr.mxu0 0.0
  %2170 = vmatpush1.msra.mxu0 0.0
  %2171 = vmatprep.subr.mxu0 0.0
  %2172 = vmatpush1.msra.mxu0 0.0
  %2173 = vmatprep.subr.mxu0 0.0
  %2174 = vmatpush1.msra.mxu0 0.0
  %2175 = vmatprep.subr.mxu0 0.0
  %2176 = vmatpush1.msra.mxu0 0.0
  %2177 = vmatprep.subr.mxu0 0.0
  %2178 = vmatpush1.msra.mxu0 0.0
  %2179 = vmatprep.subr.mxu0 0.0
  %2180 = vmatpush1.msra.mxu0 0.0
  %2181 = vmatprep.subr.mxu0 0.0
  %2182 = vmatpush1.msra.mxu0 0.0
  %2183 = vmatprep.subr.mxu0 0.0
  %2184 = vmatpush1.msra.mxu0 0.0
  %2185 = vmatprep.subr.mxu0 0.0
  %2186 = vmatpush1.msra.mxu0 0.0
  %2187 = vmatprep.subr.mxu0 0.0
  %2188 = vmatpush1.msra.mxu0 0.0
  %2189 = vmatprep.subr.mxu0 0.0
  %2190 = vmatpush1.msra.mxu0 0.0
  %2191 = vmatprep.subr.mxu0 0.0
  %2192 = vmatpush1.msra.mxu0 0.0
  %2193 = vmatprep.subr.mxu0 0.0
  %2194 = vmatpush1.msra.mxu0 0.0
  %2195 = vmatprep.subr.mxu0 0.0
  %2196 = vmatpush1.msra.mxu0 0.0
  %2197 = vmatprep.subr.mxu0 0.0
  %2198 = vmatpush1.msra.mxu0 0.0
  %2199 = vmatprep.subr.mxu0 0.0
  %2200 = vmatpush1.msra.mxu0 0.0
  %2201 = vmatprep.subr.mxu0 0.0
  %2202 = vmatpush1.msra.mxu0 0.0
  %2203 = vmatprep.subr.mxu0 0.0
  %2204 = vmatpush1.msra.mxu0 0.0
  %2205 = vmatprep.subr.mxu0 0.0
  %2206 = vmatpush1.msra.mxu0 0.0
  %2207 = vmatprep.subr.mxu0 0.0
  %2208 = vmatpush1.msra.mxu0 0.0
  %2209 = vmatprep.mubr.f32.mxu0 0.0
  %2210 = vmatmul.mubr.f32.gmra.mrb[0].mxu0 %v2072
  %v2211 = vpop.f32.mrb[0].mxu0
  %v2212 = vadd.f32 0.0, %v2211
  %v2213 = vpop.f32.mrb[0].mxu0
  %v2214 = vadd.f32 0.0, %v2213
  %2215 = vdwg.mxu0
  %v2216 = vadd.f32 %v2002, %v2141
  %v2217 = vadd.f32 %v2003, %v2143
  %v2218 = vadd.f32 %v2004, %v2212
  %v2219 = vadd.f32 %v2005, %v2214
  %s2220 = scalar_lea.vmem %s1, 28
  %v2221 = vld [vmem:[%s2220] sm:$0xf]
  %v2223 = vlaneseq
  %v2224 = vshrl.u32 %v2223, 7
  %v2225 = vsub.s32 0, %v2224
  %v2226 = vrot.slane %v2221, %v2225
  %v2227 = vlaneseq
  %v2228 = vshrl.u32 %v2227, 7
  %v2229 = vsub.s32 1, %v2228
  %v2230 = vrot.slane %v2221, %v2229
  %v2231 = vlaneseq
  %v2232 = vshrl.u32 %v2231, 7
  %v2233 = vsub.s32 2, %v2232
  %v2234 = vrot.slane %v2221, %v2233
  %v2235 = vlaneseq
  %v2236 = vshrl.u32 %v2235, 7
  %v2237 = vsub.s32 3, %v2236
  %v2238 = vrot.slane %v2221, %v2237
  %2239 = vrot.lane.b32.xlu0 %v2226, 16
  %v2240 = vpop.permute.xlu0 %2239
  %2241 = vrot.lane.b32.xlu0 %v2230, 16
  %v2242 = vpop.permute.xlu0 %2241
  %2243 = vrot.lane.b32.xlu0 %v2234, 16
  %v2244 = vpop.permute.xlu0 %2243
  %2245 = vrot.lane.b32.xlu0 %v2238, 16
  %v2246 = vpop.permute.xlu0 %2245
  %v2247 = vsel %vm855, %v2240, %v2242
  %v2248 = vsel %vm855, %v2242, %v2244
  %v2249 = vsel %vm855, %v2244, %v2246
  %v2255 = vmul.f32 %v1787, %v2240
  %v2256 = vmul.f32 %v1788, %v2247
  %v2257 = vmul.f32 %v1789, %v2248
  %v2258 = vmul.f32 %v1790, %v2249
  %v2259 = vmul.f32 %v1791, %v2246
  %s2260 = scalar_lea.vmem %s4, 56
  %v2261 = vld [vmem:[%s2260] sm:$0xff]
  %2267 = vrot.lane.b32.xlu0 %v2255, 112
  %v2268 = vpop.permute.xlu0 %2267
  %2269 = vrot.lane.b32.xlu0 %v2256, 112
  %v2270 = vpop.permute.xlu0 %2269
  %2271 = vrot.lane.b32.xlu0 %v2257, 112
  %v2272 = vpop.permute.xlu0 %2271
  %2273 = vrot.lane.b32.xlu0 %v2258, 112
  %v2274 = vpop.permute.xlu0 %2273
  %2275 = vrot.lane.b32.xlu0 %v2259, 112
  %v2276 = vpop.permute.xlu0 %2275
  %v2277 = vsel %vm380, %v2268, %v2270
  %v2278 = vsel %vm380, %v2270, %v2272
  %v2279 = vsel %vm380, %v2272, %v2274
  %v2280 = vsel %vm380, %v2274, %v2276
  %v2286 = vsel %vm77, %v2261, 0
  %2288 = vmatprep.subr.mxu0 %v2278
  %2289 = vmatpush1.msra.mxu0 %v2277
  %2290 = vmatprep.subr.mxu0 0.0
  %2291 = vmatpush1.msra.mxu0 0.0
  %2292 = vmatprep.subr.mxu0 0.0
  %2293 = vmatpush1.msra.mxu0 0.0
  %2294 = vmatprep.subr.mxu0 0.0
  %2295 = vmatpush1.msra.mxu0 0.0
  %2296 = vmatprep.subr.mxu0 0.0
  %2297 = vmatpush1.msra.mxu0 0.0
  %2298 = vmatprep.subr.mxu0 0.0
  %2299 = vmatpush1.msra.mxu0 0.0
  %2300 = vmatprep.subr.mxu0 0.0
  %2301 = vmatpush1.msra.mxu0 0.0
  %2302 = vmatprep.subr.mxu0 0.0
  %2303 = vmatpush1.msra.mxu0 0.0
  %2304 = vmatprep.subr.mxu0 0.0
  %2305 = vmatpush1.msra.mxu0 0.0
  %2306 = vmatprep.subr.mxu0 0.0
  %2307 = vmatpush1.msra.mxu0 0.0
  %2308 = vmatprep.subr.mxu0 0.0
  %2309 = vmatpush1.msra.mxu0 0.0
  %2310 = vmatprep.subr.mxu0 0.0
  %2311 = vmatpush1.msra.mxu0 0.0
  %2312 = vmatprep.subr.mxu0 0.0
  %2313 = vmatpush1.msra.mxu0 0.0
  %2314 = vmatprep.subr.mxu0 0.0
  %2315 = vmatpush1.msra.mxu0 0.0
  %2316 = vmatprep.subr.mxu0 0.0
  %2317 = vmatpush1.msra.mxu0 0.0
  %2318 = vmatprep.subr.mxu0 0.0
  %2319 = vmatpush1.msra.mxu0 0.0
  %2320 = vmatprep.subr.mxu0 0.0
  %2321 = vmatpush1.msra.mxu0 0.0
  %2322 = vmatprep.subr.mxu0 0.0
  %2323 = vmatpush1.msra.mxu0 0.0
  %2324 = vmatprep.subr.mxu0 0.0
  %2325 = vmatpush1.msra.mxu0 0.0
  %2326 = vmatprep.subr.mxu0 0.0
  %2327 = vmatpush1.msra.mxu0 0.0
  %2328 = vmatprep.subr.mxu0 0.0
  %2329 = vmatpush1.msra.mxu0 0.0
  %2330 = vmatprep.subr.mxu0 0.0
  %2331 = vmatpush1.msra.mxu0 0.0
  %2332 = vmatprep.subr.mxu0 0.0
  %2333 = vmatpush1.msra.mxu0 0.0
  %2334 = vmatprep.subr.mxu0 0.0
  %2335 = vmatpush1.msra.mxu0 0.0
  %2336 = vmatprep.subr.mxu0 0.0
  %2337 = vmatpush1.msra.mxu0 0.0
  %2338 = vmatprep.subr.mxu0 0.0
  %2339 = vmatpush1.msra.mxu0 0.0
  %2340 = vmatprep.subr.mxu0 0.0
  %2341 = vmatpush1.msra.mxu0 0.0
  %2342 = vmatprep.subr.mxu0 0.0
  %2343 = vmatpush1.msra.mxu0 0.0
  %2344 = vmatprep.subr.mxu0 0.0
  %2345 = vmatpush1.msra.mxu0 0.0
  %2346 = vmatprep.subr.mxu0 0.0
  %2347 = vmatpush1.msra.mxu0 0.0
  %2348 = vmatprep.subr.mxu0 0.0
  %2349 = vmatpush1.msra.mxu0 0.0
  %2350 = vmatprep.subr.mxu0 0.0
  %2351 = vmatpush1.msra.mxu0 0.0
  %2352 = vmatprep.mubr.f32.mxu0 0.0
  %2353 = vmatmul.mubr.f32.gmra.mrb[0].mxu0 %v2286
  %v2354 = vpop.f32.mrb[0].mxu0
  %v2355 = vadd.f32 0.0, %v2354
  %v2356 = vpop.f32.mrb[0].mxu0
  %v2357 = vadd.f32 0.0, %v2356
  %2358 = vdwg.mxu0
  %2359 = vmatprep.subr.mxu0 %v2280
  %2360 = vmatpush1.msra.mxu0 %v2279
  %2361 = vmatprep.subr.mxu0 0.0
  %2362 = vmatpush1.msra.mxu0 0.0
  %2363 = vmatprep.subr.mxu0 0.0
  %2364 = vmatpush1.msra.mxu0 0.0
  %2365 = vmatprep.subr.mxu0 0.0
  %2366 = vmatpush1.msra.mxu0 0.0
  %2367 = vmatprep.subr.mxu0 0.0
  %2368 = vmatpush1.msra.mxu0 0.0
  %2369 = vmatprep.subr.mxu0 0.0
  %2370 = vmatpush1.msra.mxu0 0.0
  %2371 = vmatprep.subr.mxu0 0.0
  %2372 = vmatpush1.msra.mxu0 0.0
  %2373 = vmatprep.subr.mxu0 0.0
  %2374 = vmatpush1.msra.mxu0 0.0
  %2375 = vmatprep.subr.mxu0 0.0
  %2376 = vmatpush1.msra.mxu0 0.0
  %2377 = vmatprep.subr.mxu0 0.0
  %2378 = vmatpush1.msra.mxu0 0.0
  %2379 = vmatprep.subr.mxu0 0.0
  %2380 = vmatpush1.msra.mxu0 0.0
  %2381 = vmatprep.subr.mxu0 0.0
  %2382 = vmatpush1.msra.mxu0 0.0
  %2383 = vmatprep.subr.mxu0 0.0
  %2384 = vmatpush1.msra.mxu0 0.0
  %2385 = vmatprep.subr.mxu0 0.0
  %2386 = vmatpush1.msra.mxu0 0.0
  %2387 = vmatprep.subr.mxu0 0.0
  %2388 = vmatpush1.msra.mxu0 0.0
  %2389 = vmatprep.subr.mxu0 0.0
  %2390 = vmatpush1.msra.mxu0 0.0
  %2391 = vmatprep.subr.mxu0 0.0
  %2392 = vmatpush1.msra.mxu0 0.0
  %2393 = vmatprep.subr.mxu0 0.0
  %2394 = vmatpush1.msra.mxu0 0.0
  %2395 = vmatprep.subr.mxu0 0.0
  %2396 = vmatpush1.msra.mxu0 0.0
  %2397 = vmatprep.subr.mxu0 0.0
  %2398 = vmatpush1.msra.mxu0 0.0
  %2399 = vmatprep.subr.mxu0 0.0
  %2400 = vmatpush1.msra.mxu0 0.0
  %2401 = vmatprep.subr.mxu0 0.0
  %2402 = vmatpush1.msra.mxu0 0.0
  %2403 = vmatprep.subr.mxu0 0.0
  %2404 = vmatpush1.msra.mxu0 0.0
  %2405 = vmatprep.subr.mxu0 0.0
  %2406 = vmatpush1.msra.mxu0 0.0
  %2407 = vmatprep.subr.mxu0 0.0
  %2408 = vmatpush1.msra.mxu0 0.0
  %2409 = vmatprep.subr.mxu0 0.0
  %2410 = vmatpush1.msra.mxu0 0.0
  %2411 = vmatprep.subr.mxu0 0.0
  %2412 = vmatpush1.msra.mxu0 0.0
  %2413 = vmatprep.subr.mxu0 0.0
  %2414 = vmatpush1.msra.mxu0 0.0
  %2415 = vmatprep.subr.mxu0 0.0
  %2416 = vmatpush1.msra.mxu0 0.0
  %2417 = vmatprep.subr.mxu0 0.0
  %2418 = vmatpush1.msra.mxu0 0.0
  %2419 = vmatprep.subr.mxu0 0.0
  %2420 = vmatpush1.msra.mxu0 0.0
  %2421 = vmatprep.subr.mxu0 0.0
  %2422 = vmatpush1.msra.mxu0 0.0
  %2423 = vmatprep.mubr.f32.mxu0 0.0
  %2424 = vmatmul.mubr.f32.gmra.mrb[0].mxu0 %v2286
  %v2425 = vpop.f32.mrb[0].mxu0
  %v2426 = vadd.f32 0.0, %v2425
  %v2427 = vpop.f32.mrb[0].mxu0
  %v2428 = vadd.f32 0.0, %v2427
  %2429 = vdwg.mxu0
  %v2430 = vadd.f32 %v2216, %v2355
  %v2431 = vadd.f32 %v2217, %v2357
  %v2432 = vadd.f32 %v2218, %v2426
  %v2433 = vadd.f32 %v2219, %v2428
  %s2434 = scalar_lea.vmem %s1, 32
  %v2435 = vld [vmem:[%s2434] sm:$0xf]
  %v2437 = vlaneseq
  %v2438 = vshrl.u32 %v2437, 7
  %v2439 = vsub.s32 0, %v2438
  %v2440 = vrot.slane %v2435, %v2439
  %v2441 = vlaneseq
  %v2442 = vshrl.u32 %v2441, 7
  %v2443 = vsub.s32 1, %v2442
  %v2444 = vrot.slane %v2435, %v2443
  %v2445 = vlaneseq
  %v2446 = vshrl.u32 %v2445, 7
  %v2447 = vsub.s32 2, %v2446
  %v2448 = vrot.slane %v2435, %v2447
  %v2449 = vlaneseq
  %v2450 = vshrl.u32 %v2449, 7
  %v2451 = vsub.s32 3, %v2450
  %v2452 = vrot.slane %v2435, %v2451
  %2453 = vrot.lane.b32.xlu0 %v2440, 17
  %v2454 = vpop.permute.xlu0 %2453
  %2455 = vrot.lane.b32.xlu0 %v2444, 17
  %v2456 = vpop.permute.xlu0 %2455
  %2457 = vrot.lane.b32.xlu0 %v2448, 17
  %v2458 = vpop.permute.xlu0 %2457
  %2459 = vrot.lane.b32.xlu0 %v2452, 17
  %v2460 = vpop.permute.xlu0 %2459
  %v2461 = vsel %vm1024, %v2454, %v2456
  %v2462 = vsel %vm1024, %v2456, %v2458
  %v2463 = vsel %vm1024, %v2458, %v2460
  %v2469 = vmul.f32 %v1787, %v2454
  %v2470 = vmul.f32 %v1788, %v2461
  %v2471 = vmul.f32 %v1789, %v2462
  %v2472 = vmul.f32 %v1790, %v2463
  %v2473 = vmul.f32 %v1791, %v2460
  %s2474 = scalar_lea.vmem %s4, 64
  %v2475 = vld [vmem:[%s2474] sm:$0xff]
  %2481 = vrot.lane.b32.xlu0 %v2469, 111
  %v2482 = vpop.permute.xlu0 %2481
  %2483 = vrot.lane.b32.xlu0 %v2470, 111
  %v2484 = vpop.permute.xlu0 %2483
  %2485 = vrot.lane.b32.xlu0 %v2471, 111
  %v2486 = vpop.permute.xlu0 %2485
  %2487 = vrot.lane.b32.xlu0 %v2472, 111
  %v2488 = vpop.permute.xlu0 %2487
  %2489 = vrot.lane.b32.xlu0 %v2473, 111
  %v2490 = vpop.permute.xlu0 %2489
  %v2491 = vsel %vm550, %v2482, %v2484
  %v2492 = vsel %vm550, %v2484, %v2486
  %v2493 = vsel %vm550, %v2486, %v2488
  %v2494 = vsel %vm550, %v2488, %v2490
  %v2500 = vsel %vm77, %v2475, 0
  %2502 = vmatprep.subr.mxu0 %v2492
  %2503 = vmatpush1.msra.mxu0 %v2491
  %2504 = vmatprep.subr.mxu0 0.0
  %2505 = vmatpush1.msra.mxu0 0.0
  %2506 = vmatprep.subr.mxu0 0.0
  %2507 = vmatpush1.msra.mxu0 0.0
  %2508 = vmatprep.subr.mxu0 0.0
  %2509 = vmatpush1.msra.mxu0 0.0
  %2510 = vmatprep.subr.mxu0 0.0
  %2511 = vmatpush1.msra.mxu0 0.0
  %2512 = vmatprep.subr.mxu0 0.0
  %2513 = vmatpush1.msra.mxu0 0.0
  %2514 = vmatprep.subr.mxu0 0.0
  %2515 = vmatpush1.msra.mxu0 0.0
  %2516 = vmatprep.subr.mxu0 0.0
  %2517 = vmatpush1.msra.mxu0 0.0
  %2518 = vmatprep.subr.mxu0 0.0
  %2519 = vmatpush1.msra.mxu0 0.0
  %2520 = vmatprep.subr.mxu0 0.0
  %2521 = vmatpush1.msra.mxu0 0.0
  %2522 = vmatprep.subr.mxu0 0.0
  %2523 = vmatpush1.msra.mxu0 0.0
  %2524 = vmatprep.subr.mxu0 0.0
  %2525 = vmatpush1.msra.mxu0 0.0
  %2526 = vmatprep.subr.mxu0 0.0
  %2527 = vmatpush1.msra.mxu0 0.0
  %2528 = vmatprep.subr.mxu0 0.0
  %2529 = vmatpush1.msra.mxu0 0.0
  %2530 = vmatprep.subr.mxu0 0.0
  %2531 = vmatpush1.msra.mxu0 0.0
  %2532 = vmatprep.subr.mxu0 0.0
  %2533 = vmatpush1.msra.mxu0 0.0
  %2534 = vmatprep.subr.mxu0 0.0
  %2535 = vmatpush1.msra.mxu0 0.0
  %2536 = vmatprep.subr.mxu0 0.0
  %2537 = vmatpush1.msra.mxu0 0.0
  %2538 = vmatprep.subr.mxu0 0.0
  %2539 = vmatpush1.msra.mxu0 0.0
  %2540 = vmatprep.subr.mxu0 0.0
  %2541 = vmatpush1.msra.mxu0 0.0
  %2542 = vmatprep.subr.mxu0 0.0
  %2543 = vmatpush1.msra.mxu0 0.0
  %2544 = vmatprep.subr.mxu0 0.0
  %2545 = vmatpush1.msra.mxu0 0.0
  %2546 = vmatprep.subr.mxu0 0.0
  %2547 = vmatpush1.msra.mxu0 0.0
  %2548 = vmatprep.subr.mxu0 0.0
  %2549 = vmatpush1.msra.mxu0 0.0
  %2550 = vmatprep.subr.mxu0 0.0
  %2551 = vmatpush1.msra.mxu0 0.0
  %2552 = vmatprep.subr.mxu0 0.0
  %2553 = vmatpush1.msra.mxu0 0.0
  %2554 = vmatprep.subr.mxu0 0.0
  %2555 = vmatpush1.msra.mxu0 0.0
  %2556 = vmatprep.subr.mxu0 0.0
  %2557 = vmatpush1.msra.mxu0 0.0
  %2558 = vmatprep.subr.mxu0 0.0
  %2559 = vmatpush1.msra.mxu0 0.0
  %2560 = vmatprep.subr.mxu0 0.0
  %2561 = vmatpush1.msra.mxu0 0.0
  %2562 = vmatprep.subr.mxu0 0.0
  %2563 = vmatpush1.msra.mxu0 0.0
  %2564 = vmatprep.subr.mxu0 0.0
  %2565 = vmatpush1.msra.mxu0 0.0
  %2566 = vmatprep.mubr.f32.mxu0 0.0
  %2567 = vmatmul.mubr.f32.gmra.mrb[0].mxu0 %v2500
  %v2568 = vpop.f32.mrb[0].mxu0
  %v2569 = vadd.f32 0.0, %v2568
  %v2570 = vpop.f32.mrb[0].mxu0
  %v2571 = vadd.f32 0.0, %v2570
  %2572 = vdwg.mxu0
  %2573 = vmatprep.subr.mxu0 %v2494
  %2574 = vmatpush1.msra.mxu0 %v2493
  %2575 = vmatprep.subr.mxu0 0.0
  %2576 = vmatpush1.msra.mxu0 0.0
  %2577 = vmatprep.subr.mxu0 0.0
  %2578 = vmatpush1.msra.mxu0 0.0
  %2579 = vmatprep.subr.mxu0 0.0
  %2580 = vmatpush1.msra.mxu0 0.0
  %2581 = vmatprep.subr.mxu0 0.0
  %2582 = vmatpush1.msra.mxu0 0.0
  %2583 = vmatprep.subr.mxu0 0.0
  %2584 = vmatpush1.msra.mxu0 0.0
  %2585 = vmatprep.subr.mxu0 0.0
  %2586 = vmatpush1.msra.mxu0 0.0
  %2587 = vmatprep.subr.mxu0 0.0
  %2588 = vmatpush1.msra.mxu0 0.0
  %2589 = vmatprep.subr.mxu0 0.0
  %2590 = vmatpush1.msra.mxu0 0.0
  %2591 = vmatprep.subr.mxu0 0.0
  %2592 = vmatpush1.msra.mxu0 0.0
  %2593 = vmatprep.subr.mxu0 0.0
  %2594 = vmatpush1.msra.mxu0 0.0
  %2595 = vmatprep.subr.mxu0 0.0
  %2596 = vmatpush1.msra.mxu0 0.0
  %2597 = vmatprep.subr.mxu0 0.0
  %2598 = vmatpush1.msra.mxu0 0.0
  %2599 = vmatprep.subr.mxu0 0.0
  %2600 = vmatpush1.msra.mxu0 0.0
  %2601 = vmatprep.subr.mxu0 0.0
  %2602 = vmatpush1.msra.mxu0 0.0
  %2603 = vmatprep.subr.mxu0 0.0
  %2604 = vmatpush1.msra.mxu0 0.0
  %2605 = vmatprep.subr.mxu0 0.0
  %2606 = vmatpush1.msra.mxu0 0.0
  %2607 = vmatprep.subr.mxu0 0.0
  %2608 = vmatpush1.msra.mxu0 0.0
  %2609 = vmatprep.subr.mxu0 0.0
  %2610 = vmatpush1.msra.mxu0 0.0
  %2611 = vmatprep.subr.mxu0 0.0
  %2612 = vmatpush1.msra.mxu0 0.0
  %2613 = vmatprep.subr.mxu0 0.0
  %2614 = vmatpush1.msra.mxu0 0.0
  %2615 = vmatprep.subr.mxu0 0.0
  %2616 = vmatpush1.msra.mxu0 0.0
  %2617 = vmatprep.subr.mxu0 0.0
  %2618 = vmatpush1.msra.mxu0 0.0
  %2619 = vmatprep.subr.mxu0 0.0
  %2620 = vmatpush1.msra.mxu0 0.0
  %2621 = vmatprep.subr.mxu0 0.0
  %2622 = vmatpush1.msra.mxu0 0.0
  %2623 = vmatprep.subr.mxu0 0.0
  %2624 = vmatpush1.msra.mxu0 0.0
  %2625 = vmatprep.subr.mxu0 0.0
  %2626 = vmatpush1.msra.mxu0 0.0
  %2627 = vmatprep.subr.mxu0 0.0
  %2628 = vmatpush1.msra.mxu0 0.0
  %2629 = vmatprep.subr.mxu0 0.0
  %2630 = vmatpush1.msra.mxu0 0.0
  %2631 = vmatprep.subr.mxu0 0.0
  %2632 = vmatpush1.msra.mxu0 0.0
  %2633 = vmatprep.subr.mxu0 0.0
  %2634 = vmatpush1.msra.mxu0 0.0
  %2635 = vmatprep.subr.mxu0 0.0
  %2636 = vmatpush1.msra.mxu0 0.0
  %2637 = vmatprep.mubr.f32.mxu0 0.0
  %2638 = vmatmul.mubr.f32.gmra.mrb[0].mxu0 %v2500
  %v2639 = vpop.f32.mrb[0].mxu0
  %v2640 = vadd.f32 0.0, %v2639
  %v2641 = vpop.f32.mrb[0].mxu0
  %v2642 = vadd.f32 0.0, %v2641
  %2643 = vdwg.mxu0
  %v2644 = vadd.f32 %v2430, %v2569
  %v2645 = vadd.f32 %v2431, %v2571
  %v2646 = vadd.f32 %v2432, %v2640
  %v2647 = vadd.f32 %v2433, %v2642
  %v2648 = vadd.f32 %v2644, %v2645
  %v2649 = vadd.f32 %v2648, %v2646
  %v2650 = vadd.f32 %v2649, %v2647
  %2651 = vadd.xlane.f32.xlu0 %v2650
  %v2652 = vpop.xlane.xlu0 %2651
  %v2653 = vrcp.pop 512.0
  %v2654 = vmul.f32 %v2652, %v2653
  %v2655 = vsub.f32 %v2644, %v2654
  %v2656 = vsub.f32 %v2645, %v2654
  %v2657 = vsub.f32 %v2646, %v2654
  %v2658 = vsub.f32 %v2647, %v2654
  %v2659 = vmul.f32 %v2655, %v2655
  %v2660 = vmul.f32 %v2656, %v2656
  %v2661 = vmul.f32 %v2657, %v2657
  %v2662 = vmul.f32 %v2658, %v2658
  %v2663 = vadd.f32 %v2659, %v2660
  %v2664 = vadd.f32 %v2663, %v2661
  %v2665 = vadd.f32 %v2664, %v2662
  %2666 = vadd.xlane.f32.xlu0 %v2665
  %v2667 = vpop.xlane.xlu0 %2666
  %v2668 = vmul.f32 %v2667, %v2653
  %v2669 = vld [vmem:[%s6] sm:$0xff]
  %v2670 = vadd.f32 %v2668, 1e-05
  %v2671 = vrsqrt.pop %v2670
  %v2672 = vmul.f32 %v2669, %v2671
  %2674 = vset.pattern.permute.xlu0 0
  %2675 = vperm.xlu0 %2674, %v2672
  %v2676 = vpop.permute.xlu0 %2675
  %v2678 = vmul.f32 %v2655, %v2676
  %v2679 = vmul.f32 %v2656, %v2676
  %v2680 = vmul.f32 %v2657, %v2676
  %v2681 = vmul.f32 %v2658, %v2676
  %v2682 = vld [vmem:[%s7] sm:$0xff]
  %2684 = vset.pattern.permute.xlu0 0
  %2685 = vperm.xlu0 %2684, %v2682
  %v2686 = vpop.permute.xlu0 %2685
  %v2688 = vadd.f32 %v2678, %v2686
  %v2689 = vadd.f32 %v2679, %v2686
  %v2690 = vadd.f32 %v2680, %v2686
  %v2691 = vadd.f32 %v2681, %v2686
  %v2692 = vmax.f32 %v2688, 0.0
  %v2693 = vmax.f32 %v2689, 0.0
  %v2694 = vmax.f32 %v2690, 0.0
  %v2695 = vmax.f32 %v2691, 0.0
  %2696 = vst [vmem:[#allocation2 + $0x8] sm:$0xff] %v2692
  %2697 = vst [vmem:[#allocation2 + $0x10] sm:$0xff] %v2693
  %2698 = vst [vmem:[#allocation2 + $0x18] sm:$0xff] %v2694
  %2699 = vst [vmem:[#allocation2 + $0x20] sm:$0xff] %v2695
  %v2700 = vld [vmem:[#allocation2] sm:$0xff]
  %v2701 = vld [vmem:[#allocation2 + $0x8] sm:$0xff]
  %v2702 = vld [vmem:[#allocation2 + $0x10] sm:$0xff]
  %v2703 = vld [vmem:[#allocation2 + $0x18] sm:$0xff]
  %v2704 = vld [vmem:[#allocation2 + $0x20] sm:$0xff]
  %v2705 = vld [vmem:[%s1] sm:$0xf]
  %v2707 = vlaneseq
  %v2708 = vshrl.u32 %v2707, 7
  %v2709 = vsub.s32 0, %v2708
  %v2710 = vrot.slane %v2705, %v2709
  %v2711 = vlaneseq
  %v2712 = vshrl.u32 %v2711, 7
  %v2713 = vsub.s32 1, %v2712
  %v2714 = vrot.slane %v2705, %v2713
  %v2715 = vlaneseq
  %v2716 = vshrl.u32 %v2715, 7
  %v2717 = vsub.s32 2, %v2716
  %v2718 = vrot.slane %v2705, %v2717
  %v2719 = vlaneseq
  %v2720 = vshrl.u32 %v2719, 7
  %v2721 = vsub.s32 3, %v2720
  %v2722 = vrot.slane %v2705, %v2721
  %2723 = vrot.lane.b32.xlu0 %v2710, 111
  %v2724 = vpop.permute.xlu0 %2723
  %2725 = vrot.lane.b32.xlu0 %v2714, 111
  %v2726 = vpop.permute.xlu0 %2725
  %2727 = vrot.lane.b32.xlu0 %v2718, 111
  %v2728 = vpop.permute.xlu0 %2727
  %2729 = vrot.lane.b32.xlu0 %v2722, 111
  %v2730 = vpop.permute.xlu0 %2729
  %v2731 = vsel %vm550, %v2724, %v2726
  %v2732 = vsel %vm550, %v2726, %v2728
  %v2733 = vsel %vm550, %v2728, %v2730
  %v2739 = vmul.f32 %v2700, %v2724
  %v2740 = vmul.f32 %v2701, %v2731
  %v2741 = vmul.f32 %v2702, %v2732
  %v2742 = vmul.f32 %v2703, %v2733
  %v2743 = vmul.f32 %v2704, %v2730
  %v2744 = vld [vmem:[%s5] sm:$0xff]
  %v2745 = vld [vmem:[%s798] sm:$0xf]
  %v2747 = vlaneseq
  %v2748 = vshrl.u32 %v2747, 7
  %v2749 = vsub.s32 0, %v2748
  %v2750 = vrot.slane %v2745, %v2749
  %v2751 = vlaneseq
  %v2752 = vshrl.u32 %v2751, 7
  %v2753 = vsub.s32 1, %v2752
  %v2754 = vrot.slane %v2745, %v2753
  %v2755 = vlaneseq
  %v2756 = vshrl.u32 %v2755, 7
  %v2757 = vsub.s32 2, %v2756
  %v2758 = vrot.slane %v2745, %v2757
  %v2759 = vlaneseq
  %v2760 = vshrl.u32 %v2759, 7
  %v2761 = vsub.s32 3, %v2760
  %v2762 = vrot.slane %v2745, %v2761
  %2763 = vrot.lane.b32.xlu0 %v2750, 112
  %v2764 = vpop.permute.xlu0 %2763
  %2765 = vrot.lane.b32.xlu0 %v2754, 112
  %v2766 = vpop.permute.xlu0 %2765
  %2767 = vrot.lane.b32.xlu0 %v2758, 112
  %v2768 = vpop.permute.xlu0 %2767
  %2769 = vrot.lane.b32.xlu0 %v2762, 112
  %v2770 = vpop.permute.xlu0 %2769
  %v2771 = vsel %vm380, %v2764, %v2766
  %v2772 = vsel %vm380, %v2766, %v2768
  %v2773 = vsel %vm380, %v2768, %v2770
  %v2779 = vmul.f32 %v2700, %v2764
  %v2780 = vmul.f32 %v2701, %v2771
  %v2781 = vmul.f32 %v2702, %v2772
  %v2782 = vmul.f32 %v2703, %v2773
  %v2783 = vmul.f32 %v2704, %v2770
  %s2784 = scalar_lea.vmem %s5, 8
  %v2785 = vld [vmem:[%s2784] sm:$0xff]
  %2791 = vrot.lane.b32.xlu0 %v2779, 16
  %v2792 = vpop.permute.xlu0 %2791
  %2793 = vrot.lane.b32.xlu0 %v2780, 16
  %v2794 = vpop.permute.xlu0 %2793
  %2795 = vrot.lane.b32.xlu0 %v2781, 16
  %v2796 = vpop.permute.xlu0 %2795
  %2797 = vrot.lane.b32.xlu0 %v2782, 16
  %v2798 = vpop.permute.xlu0 %2797
  %2799 = vrot.lane.b32.xlu0 %v2783, 16
  %v2800 = vpop.permute.xlu0 %2799
  %v2801 = vsel %vm855, %v2792, %v2794
  %v2802 = vsel %vm855, %v2794, %v2796
  %v2803 = vsel %vm855, %v2796, %v2798
  %v2804 = vsel %vm855, %v2798, %v2800
  %v2810 = vsel %vm77, %v2785, 0
  %2812 = vmatprep.subr.mxu0 %v2802
  %2813 = vmatpush1.msra.mxu0 %v2801
  %2814 = vmatprep.subr.mxu0 0.0
  %2815 = vmatpush1.msra.mxu0 0.0
  %2816 = vmatprep.subr.mxu0 0.0
  %2817 = vmatpush1.msra.mxu0 0.0
  %2818 = vmatprep.subr.mxu0 0.0
  %2819 = vmatpush1.msra.mxu0 0.0
  %2820 = vmatprep.subr.mxu0 0.0
  %2821 = vmatpush1.msra.mxu0 0.0
  %2822 = vmatprep.subr.mxu0 0.0
  %2823 = vmatpush1.msra.mxu0 0.0
  %2824 = vmatprep.subr.mxu0 0.0
  %2825 = vmatpush1.msra.mxu0 0.0
  %2826 = vmatprep.subr.mxu0 0.0
  %2827 = vmatpush1.msra.mxu0 0.0
  %2828 = vmatprep.subr.mxu0 0.0
  %2829 = vmatpush1.msra.mxu0 0.0
  %2830 = vmatprep.subr.mxu0 0.0
  %2831 = vmatpush1.msra.mxu0 0.0
  %2832 = vmatprep.subr.mxu0 0.0
  %2833 = vmatpush1.msra.mxu0 0.0
  %2834 = vmatprep.subr.mxu0 0.0
  %2835 = vmatpush1.msra.mxu0 0.0
  %2836 = vmatprep.subr.mxu0 0.0
  %2837 = vmatpush1.msra.mxu0 0.0
  %2838 = vmatprep.subr.mxu0 0.0
  %2839 = vmatpush1.msra.mxu0 0.0
  %2840 = vmatprep.subr.mxu0 0.0
  %2841 = vmatpush1.msra.mxu0 0.0
  %2842 = vmatprep.subr.mxu0 0.0
  %2843 = vmatpush1.msra.mxu0 0.0
  %2844 = vmatprep.subr.mxu0 0.0
  %2845 = vmatpush1.msra.mxu0 0.0
  %2846 = vmatprep.subr.mxu0 0.0
  %2847 = vmatpush1.msra.mxu0 0.0
  %2848 = vmatprep.subr.mxu0 0.0
  %2849 = vmatpush1.msra.mxu0 0.0
  %2850 = vmatprep.subr.mxu0 0.0
  %2851 = vmatpush1.msra.mxu0 0.0
  %2852 = vmatprep.subr.mxu0 0.0
  %2853 = vmatpush1.msra.mxu0 0.0
  %2854 = vmatprep.subr.mxu0 0.0
  %2855 = vmatpush1.msra.mxu0 0.0
  %2856 = vmatprep.subr.mxu0 0.0
  %2857 = vmatpush1.msra.mxu0 0.0
  %2858 = vmatprep.subr.mxu0 0.0
  %2859 = vmatpush1.msra.mxu0 0.0
  %2860 = vmatprep.subr.mxu0 0.0
  %2861 = vmatpush1.msra.mxu0 0.0
  %2862 = vmatprep.subr.mxu0 0.0
  %2863 = vmatpush1.msra.mxu0 0.0
  %2864 = vmatprep.subr.mxu0 0.0
  %2865 = vmatpush1.msra.mxu0 0.0
  %2866 = vmatprep.subr.mxu0 0.0
  %2867 = vmatpush1.msra.mxu0 0.0
  %2868 = vmatprep.subr.mxu0 0.0
  %2869 = vmatpush1.msra.mxu0 0.0
  %2870 = vmatprep.subr.mxu0 0.0
  %2871 = vmatpush1.msra.mxu0 0.0
  %2872 = vmatprep.subr.mxu0 0.0
  %2873 = vmatpush1.msra.mxu0 0.0
  %2874 = vmatprep.subr.mxu0 0.0
  %2875 = vmatpush1.msra.mxu0 0.0
  %2876 = vmatprep.mubr.f32.mxu0 0.0
  %2877 = vmatmul.mubr.f32.gmra.mrb[0].mxu0 %v2810
  %v2878 = vpop.f32.mrb[0].mxu0
  %v2879 = vadd.f32 0.0, %v2878
  %v2880 = vpop.f32.mrb[0].mxu0
  %v2881 = vadd.f32 0.0, %v2880
  %2882 = vdwg.mxu0
  %2883 = vmatprep.subr.mxu0 %v2804
  %2884 = vmatpush1.msra.mxu0 %v2803
  %2885 = vmatprep.subr.mxu0 0.0
  %2886 = vmatpush1.msra.mxu0 0.0
  %2887 = vmatprep.subr.mxu0 0.0
  %2888 = vmatpush1.msra.mxu0 0.0
  %2889 = vmatprep.subr.mxu0 0.0
  %2890 = vmatpush1.msra.mxu0 0.0
  %2891 = vmatprep.subr.mxu0 0.0
  %2892 = vmatpush1.msra.mxu0 0.0
  %2893 = vmatprep.subr.mxu0 0.0
  %2894 = vmatpush1.msra.mxu0 0.0
  %2895 = vmatprep.subr.mxu0 0.0
  %2896 = vmatpush1.msra.mxu0 0.0
  %2897 = vmatprep.subr.mxu0 0.0
  %2898 = vmatpush1.msra.mxu0 0.0
  %2899 = vmatprep.subr.mxu0 0.0
  %2900 = vmatpush1.msra.mxu0 0.0
  %2901 = vmatprep.subr.mxu0 0.0
  %2902 = vmatpush1.msra.mxu0 0.0
  %2903 = vmatprep.subr.mxu0 0.0
  %2904 = vmatpush1.msra.mxu0 0.0
  %2905 = vmatprep.subr.mxu0 0.0
  %2906 = vmatpush1.msra.mxu0 0.0
  %2907 = vmatprep.subr.mxu0 0.0
  %2908 = vmatpush1.msra.mxu0 0.0
  %2909 = vmatprep.subr.mxu0 0.0
  %2910 = vmatpush1.msra.mxu0 0.0
  %2911 = vmatprep.subr.mxu0 0.0
  %2912 = vmatpush1.msra.mxu0 0.0
  %2913 = vmatprep.subr.mxu0 0.0
  %2914 = vmatpush1.msra.mxu0 0.0
  %2915 = vmatprep.subr.mxu0 0.0
  %2916 = vmatpush1.msra.mxu0 0.0
  %2917 = vmatprep.subr.mxu0 0.0
  %2918 = vmatpush1.msra.mxu0 0.0
  %2919 = vmatprep.subr.mxu0 0.0
  %2920 = vmatpush1.msra.mxu0 0.0
  %2921 = vmatprep.subr.mxu0 0.0
  %2922 = vmatpush1.msra.mxu0 0.0
  %2923 = vmatprep.subr.mxu0 0.0
  %2924 = vmatpush1.msra.mxu0 0.0
  %2925 = vmatprep.subr.mxu0 0.0
  %2926 = vmatpush1.msra.mxu0 0.0
  %2927 = vmatprep.subr.mxu0 0.0
  %2928 = vmatpush1.msra.mxu0 0.0
  %2929 = vmatprep.subr.mxu0 0.0
  %2930 = vmatpush1.msra.mxu0 0.0
  %2931 = vmatprep.subr.mxu0 0.0
  %2932 = vmatpush1.msra.mxu0 0.0
  %2933 = vmatprep.subr.mxu0 0.0
  %2934 = vmatpush1.msra.mxu0 0.0
  %2935 = vmatprep.subr.mxu0 0.0
  %2936 = vmatpush1.msra.mxu0 0.0
  %2937 = vmatprep.subr.mxu0 0.0
  %2938 = vmatpush1.msra.mxu0 0.0
  %2939 = vmatprep.subr.mxu0 0.0
  %2940 = vmatpush1.msra.mxu0 0.0
  %2941 = vmatprep.subr.mxu0 0.0
  %2942 = vmatpush1.msra.mxu0 0.0
  %2943 = vmatprep.subr.mxu0 0.0
  %2944 = vmatpush1.msra.mxu0 0.0
  %2945 = vmatprep.subr.mxu0 0.0
  %2946 = vmatpush1.msra.mxu0 0.0
  %2947 = vmatprep.mubr.f32.mxu0 0.0
  %2948 = vmatmul.mubr.f32.gmra.mrb[0].mxu0 %v2810
  %v2949 = vpop.f32.mrb[0].mxu0
  %v2950 = vadd.f32 0.0, %v2949
  %v2951 = vpop.f32.mrb[0].mxu0
  %v2952 = vadd.f32 0.0, %v2951
  %2953 = vdwg.mxu0
  %2959 = vrot.lane.b32.xlu0 %v2739, 17
  %v2960 = vpop.permute.xlu0 %2959
  %2961 = vrot.lane.b32.xlu0 %v2740, 17
  %v2962 = vpop.permute.xlu0 %2961
  %2963 = vrot.lane.b32.xlu0 %v2741, 17
  %v2964 = vpop.permute.xlu0 %2963
  %2965 = vrot.lane.b32.xlu0 %v2742, 17
  %v2966 = vpop.permute.xlu0 %2965
  %2967 = vrot.lane.b32.xlu0 %v2743, 17
  %v2968 = vpop.permute.xlu0 %2967
  %v2969 = vsel %vm1024, %v2960, %v2962
  %v2970 = vsel %vm1024, %v2962, %v2964
  %v2971 = vsel %vm1024, %v2964, %v2966
  %v2972 = vsel %vm1024, %v2966, %v2968
  %v2978 = vsel %vm77, %v2744, 0
  %2980 = vmatprep.subr.mxu0 %v2970
  %2981 = vmatpush1.msra.mxu0 %v2969
  %2982 = vmatprep.subr.mxu0 0.0
  %2983 = vmatpush1.msra.mxu0 0.0
  %2984 = vmatprep.subr.mxu0 0.0
  %2985 = vmatpush1.msra.mxu0 0.0
  %2986 = vmatprep.subr.mxu0 0.0
  %2987 = vmatpush1.msra.mxu0 0.0
  %2988 = vmatprep.subr.mxu0 0.0
  %2989 = vmatpush1.msra.mxu0 0.0
  %2990 = vmatprep.subr.mxu0 0.0
  %2991 = vmatpush1.msra.mxu0 0.0
  %2992 = vmatprep.subr.mxu0 0.0
  %2993 = vmatpush1.msra.mxu0 0.0
  %2994 = vmatprep.subr.mxu0 0.0
  %2995 = vmatpush1.msra.mxu0 0.0
  %2996 = vmatprep.subr.mxu0 0.0
  %2997 = vmatpush1.msra.mxu0 0.0
  %2998 = vmatprep.subr.mxu0 0.0
  %2999 = vmatpush1.msra.mxu0 0.0
  %3000 = vmatprep.subr.mxu0 0.0
  %3001 = vmatpush1.msra.mxu0 0.0
  %3002 = vmatprep.subr.mxu0 0.0
  %3003 = vmatpush1.msra.mxu0 0.0
  %3004 = vmatprep.subr.mxu0 0.0
  %3005 = vmatpush1.msra.mxu0 0.0
  %3006 = vmatprep.subr.mxu0 0.0
  %3007 = vmatpush1.msra.mxu0 0.0
  %3008 = vmatprep.subr.mxu0 0.0
  %3009 = vmatpush1.msra.mxu0 0.0
  %3010 = vmatprep.subr.mxu0 0.0
  %3011 = vmatpush1.msra.mxu0 0.0
  %3012 = vmatprep.subr.mxu0 0.0
  %3013 = vmatpush1.msra.mxu0 0.0
  %3014 = vmatprep.subr.mxu0 0.0
  %3015 = vmatpush1.msra.mxu0 0.0
  %3016 = vmatprep.subr.mxu0 0.0
  %3017 = vmatpush1.msra.mxu0 0.0
  %3018 = vmatprep.subr.mxu0 0.0
  %3019 = vmatpush1.msra.mxu0 0.0
  %3020 = vmatprep.subr.mxu0 0.0
  %3021 = vmatpush1.msra.mxu0 0.0
  %3022 = vmatprep.subr.mxu0 0.0
  %3023 = vmatpush1.msra.mxu0 0.0
  %3024 = vmatprep.subr.mxu0 0.0
  %3025 = vmatpush1.msra.mxu0 0.0
  %3026 = vmatprep.subr.mxu0 0.0
  %3027 = vmatpush1.msra.mxu0 0.0
  %3028 = vmatprep.subr.mxu0 0.0
  %3029 = vmatpush1.msra.mxu0 0.0
  %3030 = vmatprep.subr.mxu0 0.0
  %3031 = vmatpush1.msra.mxu0 0.0
  %3032 = vmatprep.subr.mxu0 0.0
  %3033 = vmatpush1.msra.mxu0 0.0
  %3034 = vmatprep.subr.mxu0 0.0
  %3035 = vmatpush1.msra.mxu0 0.0
  %3036 = vmatprep.subr.mxu0 0.0
  %3037 = vmatpush1.msra.mxu0 0.0
  %3038 = vmatprep.subr.mxu0 0.0
  %3039 = vmatpush1.msra.mxu0 0.0
  %3040 = vmatprep.subr.mxu0 0.0
  %3041 = vmatpush1.msra.mxu0 0.0
  %3042 = vmatprep.subr.mxu0 0.0
  %3043 = vmatpush1.msra.mxu0 0.0
  %3044 = vmatprep.mubr.f32.mxu0 0.0
  %3045 = vmatmul.mubr.f32.gmra.mrb[0].mxu0 %v2978
  %v3046 = vpop.f32.mrb[0].mxu0
  %v3047 = vadd.f32 %v2879, %v3046
  %v3048 = vpop.f32.mrb[0].mxu0
  %v3049 = vadd.f32 %v2881, %v3048
  %3050 = vdwg.mxu0
  %3051 = vmatprep.subr.mxu0 %v2972
  %3052 = vmatpush1.msra.mxu0 %v2971
  %3053 = vmatprep.subr.mxu0 0.0
  %3054 = vmatpush1.msra.mxu0 0.0
  %3055 = vmatprep.subr.mxu0 0.0
  %3056 = vmatpush1.msra.mxu0 0.0
  %3057 = vmatprep.subr.mxu0 0.0
  %3058 = vmatpush1.msra.mxu0 0.0
  %3059 = vmatprep.subr.mxu0 0.0
  %3060 = vmatpush1.msra.mxu0 0.0
  %3061 = vmatprep.subr.mxu0 0.0
  %3062 = vmatpush1.msra.mxu0 0.0
  %3063 = vmatprep.subr.mxu0 0.0
  %3064 = vmatpush1.msra.mxu0 0.0
  %3065 = vmatprep.subr.mxu0 0.0
  %3066 = vmatpush1.msra.mxu0 0.0
  %3067 = vmatprep.subr.mxu0 0.0
  %3068 = vmatpush1.msra.mxu0 0.0
  %3069 = vmatprep.subr.mxu0 0.0
  %3070 = vmatpush1.msra.mxu0 0.0
  %3071 = vmatprep.subr.mxu0 0.0
  %3072 = vmatpush1.msra.mxu0 0.0
  %3073 = vmatprep.subr.mxu0 0.0
  %3074 = vmatpush1.msra.mxu0 0.0
  %3075 = vmatprep.subr.mxu0 0.0
  %3076 = vmatpush1.msra.mxu0 0.0
  %3077 = vmatprep.subr.mxu0 0.0
  %3078 = vmatpush1.msra.mxu0 0.0
  %3079 = vmatprep.subr.mxu0 0.0
  %3080 = vmatpush1.msra.mxu0 0.0
  %3081 = vmatprep.subr.mxu0 0.0
  %3082 = vmatpush1.msra.mxu0 0.0
  %3083 = vmatprep.subr.mxu0 0.0
  %3084 = vmatpush1.msra.mxu0 0.0
  %3085 = vmatprep.subr.mxu0 0.0
  %3086 = vmatpush1.msra.mxu0 0.0
  %3087 = vmatprep.subr.mxu0 0.0
  %3088 = vmatpush1.msra.mxu0 0.0
  %3089 = vmatprep.subr.mxu0 0.0
  %3090 = vmatpush1.msra.mxu0 0.0
  %3091 = vmatprep.subr.mxu0 0.0
  %3092 = vmatpush1.msra.mxu0 0.0
  %3093 = vmatprep.subr.mxu0 0.0
  %3094 = vmatpush1.msra.mxu0 0.0
  %3095 = vmatprep.subr.mxu0 0.0
  %3096 = vmatpush1.msra.mxu0 0.0
  %3097 = vmatprep.subr.mxu0 0.0
  %3098 = vmatpush1.msra.mxu0 0.0
  %3099 = vmatprep.subr.mxu0 0.0
  %3100 = vmatpush1.msra.mxu0 0.0
  %3101 = vmatprep.subr.mxu0 0.0
  %3102 = vmatpush1.msra.mxu0 0.0
  %3103 = vmatprep.subr.mxu0 0.0
  %3104 = vmatpush1.msra.mxu0 0.0
  %3105 = vmatprep.subr.mxu0 0.0
  %3106 = vmatpush1.msra.mxu0 0.0
  %3107 = vmatprep.subr.mxu0 0.0
  %3108 = vmatpush1.msra.mxu0 0.0
  %3109 = vmatprep.subr.mxu0 0.0
  %3110 = vmatpush1.msra.mxu0 0.0
  %3111 = vmatprep.subr.mxu0 0.0
  %3112 = vmatpush1.msra.mxu0 0.0
  %3113 = vmatprep.subr.mxu0 0.0
  %3114 = vmatpush1.msra.mxu0 0.0
  %3115 = vmatprep.mubr.f32.mxu0 0.0
  %3116 = vmatmul.mubr.f32.gmra.mrb[0].mxu0 %v2978
  %v3117 = vpop.f32.mrb[0].mxu0
  %v3118 = vadd.f32 %v2950, %v3117
  %v3119 = vpop.f32.mrb[0].mxu0
  %v3120 = vadd.f32 %v2952, %v3119
  %3121 = vdwg.mxu0
  %v3122 = vld [vmem:[%s1178] sm:$0xf]
  %v3124 = vlaneseq
  %v3125 = vshrl.u32 %v3124, 7
  %v3126 = vsub.s32 0, %v3125
  %v3127 = vrot.slane %v3122, %v3126
  %v3128 = vlaneseq
  %v3129 = vshrl.u32 %v3128, 7
  %v3130 = vsub.s32 1, %v3129
  %v3131 = vrot.slane %v3122, %v3130
  %v3132 = vlaneseq
  %v3133 = vshrl.u32 %v3132, 7
  %v3134 = vsub.s32 2, %v3133
  %v3135 = vrot.slane %v3122, %v3134
  %v3136 = vlaneseq
  %v3137 = vshrl.u32 %v3136, 7
  %v3138 = vsub.s32 3, %v3137
  %v3139 = vrot.slane %v3122, %v3138
  %3140 = vrot.lane.b32.xlu0 %v3127, 113
  %v3141 = vpop.permute.xlu0 %3140
  %3142 = vrot.lane.b32.xlu0 %v3131, 113
  %v3143 = vpop.permute.xlu0 %3142
  %3144 = vrot.lane.b32.xlu0 %v3135, 113
  %v3145 = vpop.permute.xlu0 %3144
  %3146 = vrot.lane.b32.xlu0 %v3139, 113
  %v3147 = vpop.permute.xlu0 %3146
  %v3148 = vsel %vm1205, %v3141, %v3143
  %v3149 = vsel %vm1205, %v3143, %v3145
  %v3150 = vsel %vm1205, %v3145, %v3147
  %v3156 = vmul.f32 %v2700, %v3141
  %v3157 = vmul.f32 %v2701, %v3148
  %v3158 = vmul.f32 %v2702, %v3149
  %v3159 = vmul.f32 %v2703, %v3150
  %v3160 = vmul.f32 %v2704, %v3147
  %s3161 = scalar_lea.vmem %s5, 16
  %v3162 = vld [vmem:[%s3161] sm:$0xff]
  %3168 = vrot.lane.b32.xlu0 %v3156, 15
  %v3169 = vpop.permute.xlu0 %3168
  %3170 = vrot.lane.b32.xlu0 %v3157, 15
  %v3171 = vpop.permute.xlu0 %3170
  %3172 = vrot.lane.b32.xlu0 %v3158, 15
  %v3173 = vpop.permute.xlu0 %3172
  %3174 = vrot.lane.b32.xlu0 %v3159, 15
  %v3175 = vpop.permute.xlu0 %3174
  %3176 = vrot.lane.b32.xlu0 %v3160, 15
  %v3177 = vpop.permute.xlu0 %3176
  %v3178 = vsel %vm1236, %v3169, %v3171
  %v3179 = vsel %vm1236, %v3171, %v3173
  %v3180 = vsel %vm1236, %v3173, %v3175
  %v3181 = vsel %vm1236, %v3175, %v3177
  %v3187 = vsel %vm77, %v3162, 0
  %3189 = vmatprep.subr.mxu0 %v3179
  %3190 = vmatpush1.msra.mxu0 %v3178
  %3191 = vmatprep.subr.mxu0 0.0
  %3192 = vmatpush1.msra.mxu0 0.0
  %3193 = vmatprep.subr.mxu0 0.0
  %3194 = vmatpush1.msra.mxu0 0.0
  %3195 = vmatprep.subr.mxu0 0.0
  %3196 = vmatpush1.msra.mxu0 0.0
  %3197 = vmatprep.subr.mxu0 0.0
  %3198 = vmatpush1.msra.mxu0 0.0
  %3199 = vmatprep.subr.mxu0 0.0
  %3200 = vmatpush1.msra.mxu0 0.0
  %3201 = vmatprep.subr.mxu0 0.0
  %3202 = vmatpush1.msra.mxu0 0.0
  %3203 = vmatprep.subr.mxu0 0.0
  %3204 = vmatpush1.msra.mxu0 0.0
  %3205 = vmatprep.subr.mxu0 0.0
  %3206 = vmatpush1.msra.mxu0 0.0
  %3207 = vmatprep.subr.mxu0 0.0
  %3208 = vmatpush1.msra.mxu0 0.0
  %3209 = vmatprep.subr.mxu0 0.0
  %3210 = vmatpush1.msra.mxu0 0.0
  %3211 = vmatprep.subr.mxu0 0.0
  %3212 = vmatpush1.msra.mxu0 0.0
  %3213 = vmatprep.subr.mxu0 0.0
  %3214 = vmatpush1.msra.mxu0 0.0
  %3215 = vmatprep.subr.mxu0 0.0
  %3216 = vmatpush1.msra.mxu0 0.0
  %3217 = vmatprep.subr.mxu0 0.0
  %3218 = vmatpush1.msra.mxu0 0.0
  %3219 = vmatprep.subr.mxu0 0.0
  %3220 = vmatpush1.msra.mxu0 0.0
  %3221 = vmatprep.subr.mxu0 0.0
  %3222 = vmatpush1.msra.mxu0 0.0
  %3223 = vmatprep.subr.mxu0 0.0
  %3224 = vmatpush1.msra.mxu0 0.0
  %3225 = vmatprep.subr.mxu0 0.0
  %3226 = vmatpush1.msra.mxu0 0.0
  %3227 = vmatprep.subr.mxu0 0.0
  %3228 = vmatpush1.msra.mxu0 0.0
  %3229 = vmatprep.subr.mxu0 0.0
  %3230 = vmatpush1.msra.mxu0 0.0
  %3231 = vmatprep.subr.mxu0 0.0
  %3232 = vmatpush1.msra.mxu0 0.0
  %3233 = vmatprep.subr.mxu0 0.0
  %3234 = vmatpush1.msra.mxu0 0.0
  %3235 = vmatprep.subr.mxu0 0.0
  %3236 = vmatpush1.msra.mxu0 0.0
  %3237 = vmatprep.subr.mxu0 0.0
  %3238 = vmatpush1.msra.mxu0 0.0
  %3239 = vmatprep.subr.mxu0 0.0
  %3240 = vmatpush1.msra.mxu0 0.0
  %3241 = vmatprep.subr.mxu0 0.0
  %3242 = vmatpush1.msra.mxu0 0.0
  %3243 = vmatprep.subr.mxu0 0.0
  %3244 = vmatpush1.msra.mxu0 0.0
  %3245 = vmatprep.subr.mxu0 0.0
  %3246 = vmatpush1.msra.mxu0 0.0
  %3247 = vmatprep.subr.mxu0 0.0
  %3248 = vmatpush1.msra.mxu0 0.0
  %3249 = vmatprep.subr.mxu0 0.0
  %3250 = vmatpush1.msra.mxu0 0.0
  %3251 = vmatprep.subr.mxu0 0.0
  %3252 = vmatpush1.msra.mxu0 0.0
  %3253 = vmatprep.mubr.f32.mxu0 0.0
  %3254 = vmatmul.mubr.f32.gmra.mrb[0].mxu0 %v3187
  %v3255 = vpop.f32.mrb[0].mxu0
  %v3256 = vadd.f32 0.0, %v3255
  %v3257 = vpop.f32.mrb[0].mxu0
  %v3258 = vadd.f32 0.0, %v3257
  %3259 = vdwg.mxu0
  %3260 = vmatprep.subr.mxu0 %v3181
  %3261 = vmatpush1.msra.mxu0 %v3180
  %3262 = vmatprep.subr.mxu0 0.0
  %3263 = vmatpush1.msra.mxu0 0.0
  %3264 = vmatprep.subr.mxu0 0.0
  %3265 = vmatpush1.msra.mxu0 0.0
  %3266 = vmatprep.subr.mxu0 0.0
  %3267 = vmatpush1.msra.mxu0 0.0
  %3268 = vmatprep.subr.mxu0 0.0
  %3269 = vmatpush1.msra.mxu0 0.0
  %3270 = vmatprep.subr.mxu0 0.0
  %3271 = vmatpush1.msra.mxu0 0.0
  %3272 = vmatprep.subr.mxu0 0.0
  %3273 = vmatpush1.msra.mxu0 0.0
  %3274 = vmatprep.subr.mxu0 0.0
  %3275 = vmatpush1.msra.mxu0 0.0
  %3276 = vmatprep.subr.mxu0 0.0
  %3277 = vmatpush1.msra.mxu0 0.0
  %3278 = vmatprep.subr.mxu0 0.0
  %3279 = vmatpush1.msra.mxu0 0.0
  %3280 = vmatprep.subr.mxu0 0.0
  %3281 = vmatpush1.msra.mxu0 0.0
  %3282 = vmatprep.subr.mxu0 0.0
  %3283 = vmatpush1.msra.mxu0 0.0
  %3284 = vmatprep.subr.mxu0 0.0
  %3285 = vmatpush1.msra.mxu0 0.0
  %3286 = vmatprep.subr.mxu0 0.0
  %3287 = vmatpush1.msra.mxu0 0.0
  %3288 = vmatprep.subr.mxu0 0.0
  %3289 = vmatpush1.msra.mxu0 0.0
  %3290 = vmatprep.subr.mxu0 0.0
  %3291 = vmatpush1.msra.mxu0 0.0
  %3292 = vmatprep.subr.mxu0 0.0
  %3293 = vmatpush1.msra.mxu0 0.0
  %3294 = vmatprep.subr.mxu0 0.0
  %3295 = vmatpush1.msra.mxu0 0.0
  %3296 = vmatprep.subr.mxu0 0.0
  %3297 = vmatpush1.msra.mxu0 0.0
  %3298 = vmatprep.subr.mxu0 0.0
  %3299 = vmatpush1.msra.mxu0 0.0
  %3300 = vmatprep.subr.mxu0 0.0
  %3301 = vmatpush1.msra.mxu0 0.0
  %3302 = vmatprep.subr.mxu0 0.0
  %3303 = vmatpush1.msra.mxu0 0.0
  %3304 = vmatprep.subr.mxu0 0.0
  %3305 = vmatpush1.msra.mxu0 0.0
  %3306 = vmatprep.subr.mxu0 0.0
  %3307 = vmatpush1.msra.mxu0 0.0
  %3308 = vmatprep.subr.mxu0 0.0
  %3309 = vmatpush1.msra.mxu0 0.0
  %3310 = vmatprep.subr.mxu0 0.0
  %3311 = vmatpush1.msra.mxu0 0.0
  %3312 = vmatprep.subr.mxu0 0.0
  %3313 = vmatpush1.msra.mxu0 0.0
  %3314 = vmatprep.subr.mxu0 0.0
  %3315 = vmatpush1.msra.mxu0 0.0
  %3316 = vmatprep.subr.mxu0 0.0
  %3317 = vmatpush1.msra.mxu0 0.0
  %3318 = vmatprep.subr.mxu0 0.0
  %3319 = vmatpush1.msra.mxu0 0.0
  %3320 = vmatprep.subr.mxu0 0.0
  %3321 = vmatpush1.msra.mxu0 0.0
  %3322 = vmatprep.subr.mxu0 0.0
  %3323 = vmatpush1.msra.mxu0 0.0
  %3324 = vmatprep.mubr.f32.mxu0 0.0
  %3325 = vmatmul.mubr.f32.gmra.mrb[0].mxu0 %v3187
  %v3326 = vpop.f32.mrb[0].mxu0
  %v3327 = vadd.f32 0.0, %v3326
  %v3328 = vpop.f32.mrb[0].mxu0
  %v3329 = vadd.f32 0.0, %v3328
  %3330 = vdwg.mxu0
  %v3331 = vadd.f32 %v3047, %v3256
  %v3332 = vadd.f32 %v3049, %v3258
  %v3333 = vadd.f32 %v3118, %v3327
  %v3334 = vadd.f32 %v3120, %v3329
  %v3335 = vld [vmem:[%s1394] sm:$0xf]
  %v3337 = vlaneseq
  %v3338 = vshrl.u32 %v3337, 7
  %v3339 = vsub.s32 0, %v3338
  %v3340 = vrot.slane %v3335, %v3339
  %v3341 = vlaneseq
  %v3342 = vshrl.u32 %v3341, 7
  %v3343 = vsub.s32 1, %v3342
  %v3344 = vrot.slane %v3335, %v3343
  %v3345 = vlaneseq
  %v3346 = vshrl.u32 %v3345, 7
  %v3347 = vsub.s32 2, %v3346
  %v3348 = vrot.slane %v3335, %v3347
  %v3349 = vlaneseq
  %v3350 = vshrl.u32 %v3349, 7
  %v3351 = vsub.s32 3, %v3350
  %v3352 = vrot.slane %v3335, %v3351
  %3353 = vrot.lane.b32.xlu0 %v3340, 127
  %v3354 = vpop.permute.xlu0 %3353
  %3355 = vrot.lane.b32.xlu0 %v3344, 127
  %v3356 = vpop.permute.xlu0 %3355
  %3357 = vrot.lane.b32.xlu0 %v3348, 127
  %v3358 = vpop.permute.xlu0 %3357
  %3359 = vrot.lane.b32.xlu0 %v3352, 127
  %v3360 = vpop.permute.xlu0 %3359
  %v3361 = vsel %vm68, %v3354, %v3356
  %v3362 = vsel %vm68, %v3356, %v3358
  %v3363 = vsel %vm68, %v3358, %v3360
  %v3369 = vmul.f32 %v2700, %v3354
  %v3370 = vmul.f32 %v2701, %v3361
  %v3371 = vmul.f32 %v2702, %v3362
  %v3372 = vmul.f32 %v2703, %v3363
  %v3373 = vmul.f32 %v2704, %v3360
  %s3374 = scalar_lea.vmem %s5, 24
  %v3375 = vld [vmem:[%s3374] sm:$0xff]
  %3381 = vrot.lane.b32.xlu0 %v3369, 1
  %v3382 = vpop.permute.xlu0 %3381
  %3383 = vrot.lane.b32.xlu0 %v3370, 1
  %v3384 = vpop.permute.xlu0 %3383
  %3385 = vrot.lane.b32.xlu0 %v3371, 1
  %v3386 = vpop.permute.xlu0 %3385
  %3387 = vrot.lane.b32.xlu0 %v3372, 1
  %v3388 = vpop.permute.xlu0 %3387
  %3389 = vrot.lane.b32.xlu0 %v3373, 1
  %v3390 = vpop.permute.xlu0 %3389
  %v3391 = vsel %vm1451, %v3382, %v3384
  %v3392 = vsel %vm1451, %v3384, %v3386
  %v3393 = vsel %vm1451, %v3386, %v3388
  %v3394 = vsel %vm1451, %v3388, %v3390
  %v3400 = vsel %vm77, %v3375, 0
  %3402 = vmatprep.subr.mxu0 %v3392
  %3403 = vmatpush1.msra.mxu0 %v3391
  %3404 = vmatprep.subr.mxu0 0.0
  %3405 = vmatpush1.msra.mxu0 0.0
  %3406 = vmatprep.subr.mxu0 0.0
  %3407 = vmatpush1.msra.mxu0 0.0
  %3408 = vmatprep.subr.mxu0 0.0
  %3409 = vmatpush1.msra.mxu0 0.0
  %3410 = vmatprep.subr.mxu0 0.0
  %3411 = vmatpush1.msra.mxu0 0.0
  %3412 = vmatprep.subr.mxu0 0.0
  %3413 = vmatpush1.msra.mxu0 0.0
  %3414 = vmatprep.subr.mxu0 0.0
  %3415 = vmatpush1.msra.mxu0 0.0
  %3416 = vmatprep.subr.mxu0 0.0
  %3417 = vmatpush1.msra.mxu0 0.0
  %3418 = vmatprep.subr.mxu0 0.0
  %3419 = vmatpush1.msra.mxu0 0.0
  %3420 = vmatprep.subr.mxu0 0.0
  %3421 = vmatpush1.msra.mxu0 0.0
  %3422 = vmatprep.subr.mxu0 0.0
  %3423 = vmatpush1.msra.mxu0 0.0
  %3424 = vmatprep.subr.mxu0 0.0
  %3425 = vmatpush1.msra.mxu0 0.0
  %3426 = vmatprep.subr.mxu0 0.0
  %3427 = vmatpush1.msra.mxu0 0.0
  %3428 = vmatprep.subr.mxu0 0.0
  %3429 = vmatpush1.msra.mxu0 0.0
  %3430 = vmatprep.subr.mxu0 0.0
  %3431 = vmatpush1.msra.mxu0 0.0
  %3432 = vmatprep.subr.mxu0 0.0
  %3433 = vmatpush1.msra.mxu0 0.0
  %3434 = vmatprep.subr.mxu0 0.0
  %3435 = vmatpush1.msra.mxu0 0.0
  %3436 = vmatprep.subr.mxu0 0.0
  %3437 = vmatpush1.msra.mxu0 0.0
  %3438 = vmatprep.subr.mxu0 0.0
  %3439 = vmatpush1.msra.mxu0 0.0
  %3440 = vmatprep.subr.mxu0 0.0
  %3441 = vmatpush1.msra.mxu0 0.0
  %3442 = vmatprep.subr.mxu0 0.0
  %3443 = vmatpush1.msra.mxu0 0.0
  %3444 = vmatprep.subr.mxu0 0.0
  %3445 = vmatpush1.msra.mxu0 0.0
  %3446 = vmatprep.subr.mxu0 0.0
  %3447 = vmatpush1.msra.mxu0 0.0
  %3448 = vmatprep.subr.mxu0 0.0
  %3449 = vmatpush1.msra.mxu0 0.0
  %3450 = vmatprep.subr.mxu0 0.0
  %3451 = vmatpush1.msra.mxu0 0.0
  %3452 = vmatprep.subr.mxu0 0.0
  %3453 = vmatpush1.msra.mxu0 0.0
  %3454 = vmatprep.subr.mxu0 0.0
  %3455 = vmatpush1.msra.mxu0 0.0
  %3456 = vmatprep.subr.mxu0 0.0
  %3457 = vmatpush1.msra.mxu0 0.0
  %3458 = vmatprep.subr.mxu0 0.0
  %3459 = vmatpush1.msra.mxu0 0.0
  %3460 = vmatprep.subr.mxu0 0.0
  %3461 = vmatpush1.msra.mxu0 0.0
  %3462 = vmatprep.subr.mxu0 0.0
  %3463 = vmatpush1.msra.mxu0 0.0
  %3464 = vmatprep.subr.mxu0 0.0
  %3465 = vmatpush1.msra.mxu0 0.0
  %3466 = vmatprep.mubr.f32.mxu0 0.0
  %3467 = vmatmul.mubr.f32.gmra.mrb[0].mxu0 %v3400
  %v3468 = vpop.f32.mrb[0].mxu0
  %v3469 = vadd.f32 0.0, %v3468
  %v3470 = vpop.f32.mrb[0].mxu0
  %v3471 = vadd.f32 0.0, %v3470
  %3472 = vdwg.mxu0
  %3473 = vmatprep.subr.mxu0 %v3394
  %3474 = vmatpush1.msra.mxu0 %v3393
  %3475 = vmatprep.subr.mxu0 0.0
  %3476 = vmatpush1.msra.mxu0 0.0
  %3477 = vmatprep.subr.mxu0 0.0
  %3478 = vmatpush1.msra.mxu0 0.0
  %3479 = vmatprep.subr.mxu0 0.0
  %3480 = vmatpush1.msra.mxu0 0.0
  %3481 = vmatprep.subr.mxu0 0.0
  %3482 = vmatpush1.msra.mxu0 0.0
  %3483 = vmatprep.subr.mxu0 0.0
  %3484 = vmatpush1.msra.mxu0 0.0
  %3485 = vmatprep.subr.mxu0 0.0
  %3486 = vmatpush1.msra.mxu0 0.0
  %3487 = vmatprep.subr.mxu0 0.0
  %3488 = vmatpush1.msra.mxu0 0.0
  %3489 = vmatprep.subr.mxu0 0.0
  %3490 = vmatpush1.msra.mxu0 0.0
  %3491 = vmatprep.subr.mxu0 0.0
  %3492 = vmatpush1.msra.mxu0 0.0
  %3493 = vmatprep.subr.mxu0 0.0
  %3494 = vmatpush1.msra.mxu0 0.0
  %3495 = vmatprep.subr.mxu0 0.0
  %3496 = vmatpush1.msra.mxu0 0.0
  %3497 = vmatprep.subr.mxu0 0.0
  %3498 = vmatpush1.msra.mxu0 0.0
  %3499 = vmatprep.subr.mxu0 0.0
  %3500 = vmatpush1.msra.mxu0 0.0
  %3501 = vmatprep.subr.mxu0 0.0
  %3502 = vmatpush1.msra.mxu0 0.0
  %3503 = vmatprep.subr.mxu0 0.0
  %3504 = vmatpush1.msra.mxu0 0.0
  %3505 = vmatprep.subr.mxu0 0.0
  %3506 = vmatpush1.msra.mxu0 0.0
  %3507 = vmatprep.subr.mxu0 0.0
  %3508 = vmatpush1.msra.mxu0 0.0
  %3509 = vmatprep.subr.mxu0 0.0
  %3510 = vmatpush1.msra.mxu0 0.0
  %3511 = vmatprep.subr.mxu0 0.0
  %3512 = vmatpush1.msra.mxu0 0.0
  %3513 = vmatprep.subr.mxu0 0.0
  %3514 = vmatpush1.msra.mxu0 0.0
  %3515 = vmatprep.subr.mxu0 0.0
  %3516 = vmatpush1.msra.mxu0 0.0
  %3517 = vmatprep.subr.mxu0 0.0
  %3518 = vmatpush1.msra.mxu0 0.0
  %3519 = vmatprep.subr.mxu0 0.0
  %3520 = vmatpush1.msra.mxu0 0.0
  %3521 = vmatprep.subr.mxu0 0.0
  %3522 = vmatpush1.msra.mxu0 0.0
  %3523 = vmatprep.subr.mxu0 0.0
  %3524 = vmatpush1.msra.mxu0 0.0
  %3525 = vmatprep.subr.mxu0 0.0
  %3526 = vmatpush1.msra.mxu0 0.0
  %3527 = vmatprep.subr.mxu0 0.0
  %3528 = vmatpush1.msra.mxu0 0.0
  %3529 = vmatprep.subr.mxu0 0.0
  %3530 = vmatpush1.msra.mxu0 0.0
  %3531 = vmatprep.subr.mxu0 0.0
  %3532 = vmatpush1.msra.mxu0 0.0
  %3533 = vmatprep.subr.mxu0 0.0
  %3534 = vmatpush1.msra.mxu0 0.0
  %3535 = vmatprep.subr.mxu0 0.0
  %3536 = vmatpush1.msra.mxu0 0.0
  %3537 = vmatprep.mubr.f32.mxu0 0.0
  %3538 = vmatmul.mubr.f32.gmra.mrb[0].mxu0 %v3400
  %v3539 = vpop.f32.mrb[0].mxu0
  %v3540 = vadd.f32 0.0, %v3539
  %v3541 = vpop.f32.mrb[0].mxu0
  %v3542 = vadd.f32 0.0, %v3541
  %3543 = vdwg.mxu0
  %v3544 = vadd.f32 %v3331, %v3469
  %v3545 = vadd.f32 %v3332, %v3471
  %v3546 = vadd.f32 %v3333, %v3540
  %v3547 = vadd.f32 %v3334, %v3542
  %v3548 = vld [vmem:[%s1609] sm:$0xf]
  %v3550 = vlaneseq
  %v3551 = vshrl.u32 %v3550, 7
  %v3552 = vsub.s32 0, %v3551
  %v3553 = vrot.slane %v3548, %v3552
  %v3554 = vlaneseq
  %v3555 = vshrl.u32 %v3554, 7
  %v3556 = vsub.s32 1, %v3555
  %v3557 = vrot.slane %v3548, %v3556
  %v3558 = vlaneseq
  %v3559 = vshrl.u32 %v3558, 7
  %v3560 = vsub.s32 2, %v3559
  %v3561 = vrot.slane %v3548, %v3560
  %v3562 = vlaneseq
  %v3563 = vshrl.u32 %v3562, 7
  %v3564 = vsub.s32 3, %v3563
  %v3565 = vrot.slane %v3548, %v3564
  %v3570 = vmul.f32 %v2701, %v3553
  %v3571 = vmul.f32 %v2702, %v3557
  %v3572 = vmul.f32 %v2703, %v3561
  %v3573 = vmul.f32 %v2704, %v3565
  %s3574 = scalar_lea.vmem %s5, 32
  %v3575 = vld [vmem:[%s3574] sm:$0xff]
  %v3577 = vsel %vm77, %v3575, 0
  %3579 = vmatprep.subr.mxu0 %v3571
  %3580 = vmatpush1.msra.mxu0 %v3570
  %3581 = vmatprep.subr.mxu0 0.0
  %3582 = vmatpush1.msra.mxu0 0.0
  %3583 = vmatprep.subr.mxu0 0.0
  %3584 = vmatpush1.msra.mxu0 0.0
  %3585 = vmatprep.subr.mxu0 0.0
  %3586 = vmatpush1.msra.mxu0 0.0
  %3587 = vmatprep.subr.mxu0 0.0
  %3588 = vmatpush1.msra.mxu0 0.0
  %3589 = vmatprep.subr.mxu0 0.0
  %3590 = vmatpush1.msra.mxu0 0.0
  %3591 = vmatprep.subr.mxu0 0.0
  %3592 = vmatpush1.msra.mxu0 0.0
  %3593 = vmatprep.subr.mxu0 0.0
  %3594 = vmatpush1.msra.mxu0 0.0
  %3595 = vmatprep.subr.mxu0 0.0
  %3596 = vmatpush1.msra.mxu0 0.0
  %3597 = vmatprep.subr.mxu0 0.0
  %3598 = vmatpush1.msra.mxu0 0.0
  %3599 = vmatprep.subr.mxu0 0.0
  %3600 = vmatpush1.msra.mxu0 0.0
  %3601 = vmatprep.subr.mxu0 0.0
  %3602 = vmatpush1.msra.mxu0 0.0
  %3603 = vmatprep.subr.mxu0 0.0
  %3604 = vmatpush1.msra.mxu0 0.0
  %3605 = vmatprep.subr.mxu0 0.0
  %3606 = vmatpush1.msra.mxu0 0.0
  %3607 = vmatprep.subr.mxu0 0.0
  %3608 = vmatpush1.msra.mxu0 0.0
  %3609 = vmatprep.subr.mxu0 0.0
  %3610 = vmatpush1.msra.mxu0 0.0
  %3611 = vmatprep.subr.mxu0 0.0
  %3612 = vmatpush1.msra.mxu0 0.0
  %3613 = vmatprep.subr.mxu0 0.0
  %3614 = vmatpush1.msra.mxu0 0.0
  %3615 = vmatprep.subr.mxu0 0.0
  %3616 = vmatpush1.msra.mxu0 0.0
  %3617 = vmatprep.subr.mxu0 0.0
  %3618 = vmatpush1.msra.mxu0 0.0
  %3619 = vmatprep.subr.mxu0 0.0
  %3620 = vmatpush1.msra.mxu0 0.0
  %3621 = vmatprep.subr.mxu0 0.0
  %3622 = vmatpush1.msra.mxu0 0.0
  %3623 = vmatprep.subr.mxu0 0.0
  %3624 = vmatpush1.msra.mxu0 0.0
  %3625 = vmatprep.subr.mxu0 0.0
  %3626 = vmatpush1.msra.mxu0 0.0
  %3627 = vmatprep.subr.mxu0 0.0
  %3628 = vmatpush1.msra.mxu0 0.0
  %3629 = vmatprep.subr.mxu0 0.0
  %3630 = vmatpush1.msra.mxu0 0.0
  %3631 = vmatprep.subr.mxu0 0.0
  %3632 = vmatpush1.msra.mxu0 0.0
  %3633 = vmatprep.subr.mxu0 0.0
  %3634 = vmatpush1.msra.mxu0 0.0
  %3635 = vmatprep.subr.mxu0 0.0
  %3636 = vmatpush1.msra.mxu0 0.0
  %3637 = vmatprep.subr.mxu0 0.0
  %3638 = vmatpush1.msra.mxu0 0.0
  %3639 = vmatprep.subr.mxu0 0.0
  %3640 = vmatpush1.msra.mxu0 0.0
  %3641 = vmatprep.subr.mxu0 0.0
  %3642 = vmatpush1.msra.mxu0 0.0
  %3643 = vmatprep.mubr.f32.mxu0 0.0
  %3644 = vmatmul.mubr.f32.gmra.mrb[0].mxu0 %v3577
  %v3645 = vpop.f32.mrb[0].mxu0
  %v3646 = vadd.f32 0.0, %v3645
  %v3647 = vpop.f32.mrb[0].mxu0
  %v3648 = vadd.f32 0.0, %v3647
  %3649 = vdwg.mxu0
  %3650 = vmatprep.subr.mxu0 %v3573
  %3651 = vmatpush1.msra.mxu0 %v3572
  %3652 = vmatprep.subr.mxu0 0.0
  %3653 = vmatpush1.msra.mxu0 0.0
  %3654 = vmatprep.subr.mxu0 0.0
  %3655 = vmatpush1.msra.mxu0 0.0
  %3656 = vmatprep.subr.mxu0 0.0
  %3657 = vmatpush1.msra.mxu0 0.0
  %3658 = vmatprep.subr.mxu0 0.0
  %3659 = vmatpush1.msra.mxu0 0.0
  %3660 = vmatprep.subr.mxu0 0.0
  %3661 = vmatpush1.msra.mxu0 0.0
  %3662 = vmatprep.subr.mxu0 0.0
  %3663 = vmatpush1.msra.mxu0 0.0
  %3664 = vmatprep.subr.mxu0 0.0
  %3665 = vmatpush1.msra.mxu0 0.0
  %3666 = vmatprep.subr.mxu0 0.0
  %3667 = vmatpush1.msra.mxu0 0.0
  %3668 = vmatprep.subr.mxu0 0.0
  %3669 = vmatpush1.msra.mxu0 0.0
  %3670 = vmatprep.subr.mxu0 0.0
  %3671 = vmatpush1.msra.mxu0 0.0
  %3672 = vmatprep.subr.mxu0 0.0
  %3673 = vmatpush1.msra.mxu0 0.0
  %3674 = vmatprep.subr.mxu0 0.0
  %3675 = vmatpush1.msra.mxu0 0.0
  %3676 = vmatprep.subr.mxu0 0.0
  %3677 = vmatpush1.msra.mxu0 0.0
  %3678 = vmatprep.subr.mxu0 0.0
  %3679 = vmatpush1.msra.mxu0 0.0
  %3680 = vmatprep.subr.mxu0 0.0
  %3681 = vmatpush1.msra.mxu0 0.0
  %3682 = vmatprep.subr.mxu0 0.0
  %3683 = vmatpush1.msra.mxu0 0.0
  %3684 = vmatprep.subr.mxu0 0.0
  %3685 = vmatpush1.msra.mxu0 0.0
  %3686 = vmatprep.subr.mxu0 0.0
  %3687 = vmatpush1.msra.mxu0 0.0
  %3688 = vmatprep.subr.mxu0 0.0
  %3689 = vmatpush1.msra.mxu0 0.0
  %3690 = vmatprep.subr.mxu0 0.0
  %3691 = vmatpush1.msra.mxu0 0.0
  %3692 = vmatprep.subr.mxu0 0.0
  %3693 = vmatpush1.msra.mxu0 0.0
  %3694 = vmatprep.subr.mxu0 0.0
  %3695 = vmatpush1.msra.mxu0 0.0
  %3696 = vmatprep.subr.mxu0 0.0
  %3697 = vmatpush1.msra.mxu0 0.0
  %3698 = vmatprep.subr.mxu0 0.0
  %3699 = vmatpush1.msra.mxu0 0.0
  %3700 = vmatprep.subr.mxu0 0.0
  %3701 = vmatpush1.msra.mxu0 0.0
  %3702 = vmatprep.subr.mxu0 0.0
  %3703 = vmatpush1.msra.mxu0 0.0
  %3704 = vmatprep.subr.mxu0 0.0
  %3705 = vmatpush1.msra.mxu0 0.0
  %3706 = vmatprep.subr.mxu0 0.0
  %3707 = vmatpush1.msra.mxu0 0.0
  %3708 = vmatprep.subr.mxu0 0.0
  %3709 = vmatpush1.msra.mxu0 0.0
  %3710 = vmatprep.subr.mxu0 0.0
  %3711 = vmatpush1.msra.mxu0 0.0
  %3712 = vmatprep.subr.mxu0 0.0
  %3713 = vmatpush1.msra.mxu0 0.0
  %3714 = vmatprep.mubr.f32.mxu0 0.0
  %3715 = vmatmul.mubr.f32.gmra.mrb[0].mxu0 %v3577
  %v3716 = vpop.f32.mrb[0].mxu0
  %v3717 = vadd.f32 0.0, %v3716
  %v3718 = vpop.f32.mrb[0].mxu0
  %v3719 = vadd.f32 0.0, %v3718
  %3720 = vdwg.mxu0
  %v3721 = vadd.f32 %v3544, %v3646
  %v3722 = vadd.f32 %v3545, %v3648
  %v3723 = vadd.f32 %v3546, %v3717
  %v3724 = vadd.f32 %v3547, %v3719
  %v3725 = vld [vmem:[#allocation2 + $0x8] sm:$0xff]
  %v3726 = vld [vmem:[#allocation2 + $0x10] sm:$0xff]
  %v3727 = vld [vmem:[#allocation2 + $0x18] sm:$0xff]
  %v3728 = vld [vmem:[#allocation2 + $0x20] sm:$0xff]
  %v3729 = vld [vmem:[#allocation2 + $0x28] sm:$0xff]
  %v3730 = vld [vmem:[%s1792] sm:$0xf]
  %v3732 = vlaneseq
  %v3733 = vshrl.u32 %v3732, 7
  %v3734 = vsub.s32 0, %v3733
  %v3735 = vrot.slane %v3730, %v3734
  %v3736 = vlaneseq
  %v3737 = vshrl.u32 %v3736, 7
  %v3738 = vsub.s32 1, %v3737
  %v3739 = vrot.slane %v3730, %v3738
  %v3740 = vlaneseq
  %v3741 = vshrl.u32 %v3740, 7
  %v3742 = vsub.s32 2, %v3741
  %v3743 = vrot.slane %v3730, %v3742
  %v3744 = vlaneseq
  %v3745 = vshrl.u32 %v3744, 7
  %v3746 = vsub.s32 3, %v3745
  %v3747 = vrot.slane %v3730, %v3746
  %3748 = vrot.lane.b32.xlu0 %v3735, 1
  %v3749 = vpop.permute.xlu0 %3748
  %3750 = vrot.lane.b32.xlu0 %v3739, 1
  %v3751 = vpop.permute.xlu0 %3750
  %3752 = vrot.lane.b32.xlu0 %v3743, 1
  %v3753 = vpop.permute.xlu0 %3752
  %3754 = vrot.lane.b32.xlu0 %v3747, 1
  %v3755 = vpop.permute.xlu0 %3754
  %v3756 = vsel %vm1451, %v3749, %v3751
  %v3757 = vsel %vm1451, %v3751, %v3753
  %v3758 = vsel %vm1451, %v3753, %v3755
  %v3764 = vmul.f32 %v3725, %v3749
  %v3765 = vmul.f32 %v3726, %v3756
  %v3766 = vmul.f32 %v3727, %v3757
  %v3767 = vmul.f32 %v3728, %v3758
  %v3768 = vmul.f32 %v3729, %v3755
  %s3769 = scalar_lea.vmem %s5, 40
  %v3770 = vld [vmem:[%s3769] sm:$0xff]
  %3776 = vrot.lane.b32.xlu0 %v3764, 127
  %v3777 = vpop.permute.xlu0 %3776
  %3778 = vrot.lane.b32.xlu0 %v3765, 127
  %v3779 = vpop.permute.xlu0 %3778
  %3780 = vrot.lane.b32.xlu0 %v3766, 127
  %v3781 = vpop.permute.xlu0 %3780
  %3782 = vrot.lane.b32.xlu0 %v3767, 127
  %v3783 = vpop.permute.xlu0 %3782
  %3784 = vrot.lane.b32.xlu0 %v3768, 127
  %v3785 = vpop.permute.xlu0 %3784
  %v3786 = vsel %vm68, %v3777, %v3779
  %v3787 = vsel %vm68, %v3779, %v3781
  %v3788 = vsel %vm68, %v3781, %v3783
  %v3789 = vsel %vm68, %v3783, %v3785
  %v3795 = vsel %vm77, %v3770, 0
  %3797 = vmatprep.subr.mxu0 %v3787
  %3798 = vmatpush1.msra.mxu0 %v3786
  %3799 = vmatprep.subr.mxu0 0.0
  %3800 = vmatpush1.msra.mxu0 0.0
  %3801 = vmatprep.subr.mxu0 0.0
  %3802 = vmatpush1.msra.mxu0 0.0
  %3803 = vmatprep.subr.mxu0 0.0
  %3804 = vmatpush1.msra.mxu0 0.0
  %3805 = vmatprep.subr.mxu0 0.0
  %3806 = vmatpush1.msra.mxu0 0.0
  %3807 = vmatprep.subr.mxu0 0.0
  %3808 = vmatpush1.msra.mxu0 0.0
  %3809 = vmatprep.subr.mxu0 0.0
  %3810 = vmatpush1.msra.mxu0 0.0
  %3811 = vmatprep.subr.mxu0 0.0
  %3812 = vmatpush1.msra.mxu0 0.0
  %3813 = vmatprep.subr.mxu0 0.0
  %3814 = vmatpush1.msra.mxu0 0.0
  %3815 = vmatprep.subr.mxu0 0.0
  %3816 = vmatpush1.msra.mxu0 0.0
  %3817 = vmatprep.subr.mxu0 0.0
  %3818 = vmatpush1.msra.mxu0 0.0
  %3819 = vmatprep.subr.mxu0 0.0
  %3820 = vmatpush1.msra.mxu0 0.0
  %3821 = vmatprep.subr.mxu0 0.0
  %3822 = vmatpush1.msra.mxu0 0.0
  %3823 = vmatprep.subr.mxu0 0.0
  %3824 = vmatpush1.msra.mxu0 0.0
  %3825 = vmatprep.subr.mxu0 0.0
  %3826 = vmatpush1.msra.mxu0 0.0
  %3827 = vmatprep.subr.mxu0 0.0
  %3828 = vmatpush1.msra.mxu0 0.0
  %3829 = vmatprep.subr.mxu0 0.0
  %3830 = vmatpush1.msra.mxu0 0.0
  %3831 = vmatprep.subr.mxu0 0.0
  %3832 = vmatpush1.msra.mxu0 0.0
  %3833 = vmatprep.subr.mxu0 0.0
  %3834 = vmatpush1.msra.mxu0 0.0
  %3835 = vmatprep.subr.mxu0 0.0
  %3836 = vmatpush1.msra.mxu0 0.0
  %3837 = vmatprep.subr.mxu0 0.0
  %3838 = vmatpush1.msra.mxu0 0.0
  %3839 = vmatprep.subr.mxu0 0.0
  %3840 = vmatpush1.msra.mxu0 0.0
  %3841 = vmatprep.subr.mxu0 0.0
  %3842 = vmatpush1.msra.mxu0 0.0
  %3843 = vmatprep.subr.mxu0 0.0
  %3844 = vmatpush1.msra.mxu0 0.0
  %3845 = vmatprep.subr.mxu0 0.0
  %3846 = vmatpush1.msra.mxu0 0.0
  %3847 = vmatprep.subr.mxu0 0.0
  %3848 = vmatpush1.msra.mxu0 0.0
  %3849 = vmatprep.subr.mxu0 0.0
  %3850 = vmatpush1.msra.mxu0 0.0
  %3851 = vmatprep.subr.mxu0 0.0
  %3852 = vmatpush1.msra.mxu0 0.0
  %3853 = vmatprep.subr.mxu0 0.0
  %3854 = vmatpush1.msra.mxu0 0.0
  %3855 = vmatprep.subr.mxu0 0.0
  %3856 = vmatpush1.msra.mxu0 0.0
  %3857 = vmatprep.subr.mxu0 0.0
  %3858 = vmatpush1.msra.mxu0 0.0
  %3859 = vmatprep.subr.mxu0 0.0
  %3860 = vmatpush1.msra.mxu0 0.0
  %3861 = vmatprep.mubr.f32.mxu0 0.0
  %3862 = vmatmul.mubr.f32.gmra.mrb[0].mxu0 %v3795
  %v3863 = vpop.f32.mrb[0].mxu0
  %v3864 = vadd.f32 0.0, %v3863
  %v3865 = vpop.f32.mrb[0].mxu0
  %v3866 = vadd.f32 0.0, %v3865
  %3867 = vdwg.mxu0
  %3868 = vmatprep.subr.mxu0 %v3789
  %3869 = vmatpush1.msra.mxu0 %v3788
  %3870 = vmatprep.subr.mxu0 0.0
  %3871 = vmatpush1.msra.mxu0 0.0
  %3872 = vmatprep.subr.mxu0 0.0
  %3873 = vmatpush1.msra.mxu0 0.0
  %3874 = vmatprep.subr.mxu0 0.0
  %3875 = vmatpush1.msra.mxu0 0.0
  %3876 = vmatprep.subr.mxu0 0.0
  %3877 = vmatpush1.msra.mxu0 0.0
  %3878 = vmatprep.subr.mxu0 0.0
  %3879 = vmatpush1.msra.mxu0 0.0
  %3880 = vmatprep.subr.mxu0 0.0
  %3881 = vmatpush1.msra.mxu0 0.0
  %3882 = vmatprep.subr.mxu0 0.0
  %3883 = vmatpush1.msra.mxu0 0.0
  %3884 = vmatprep.subr.mxu0 0.0
  %3885 = vmatpush1.msra.mxu0 0.0
  %3886 = vmatprep.subr.mxu0 0.0
  %3887 = vmatpush1.msra.mxu0 0.0
  %3888 = vmatprep.subr.mxu0 0.0
  %3889 = vmatpush1.msra.mxu0 0.0
  %3890 = vmatprep.subr.mxu0 0.0
  %3891 = vmatpush1.msra.mxu0 0.0
  %3892 = vmatprep.subr.mxu0 0.0
  %3893 = vmatpush1.msra.mxu0 0.0
  %3894 = vmatprep.subr.mxu0 0.0
  %3895 = vmatpush1.msra.mxu0 0.0
  %3896 = vmatprep.subr.mxu0 0.0
  %3897 = vmatpush1.msra.mxu0 0.0
  %3898 = vmatprep.subr.mxu0 0.0
  %3899 = vmatpush1.msra.mxu0 0.0
  %3900 = vmatprep.subr.mxu0 0.0
  %3901 = vmatpush1.msra.mxu0 0.0
  %3902 = vmatprep.subr.mxu0 0.0
  %3903 = vmatpush1.msra.mxu0 0.0
  %3904 = vmatprep.subr.mxu0 0.0
  %3905 = vmatpush1.msra.mxu0 0.0
  %3906 = vmatprep.subr.mxu0 0.0
  %3907 = vmatpush1.msra.mxu0 0.0
  %3908 = vmatprep.subr.mxu0 0.0
  %3909 = vmatpush1.msra.mxu0 0.0
  %3910 = vmatprep.subr.mxu0 0.0
  %3911 = vmatpush1.msra.mxu0 0.0
  %3912 = vmatprep.subr.mxu0 0.0
  %3913 = vmatpush1.msra.mxu0 0.0
  %3914 = vmatprep.subr.mxu0 0.0
  %3915 = vmatpush1.msra.mxu0 0.0
  %3916 = vmatprep.subr.mxu0 0.0
  %3917 = vmatpush1.msra.mxu0 0.0
  %3918 = vmatprep.subr.mxu0 0.0
  %3919 = vmatpush1.msra.mxu0 0.0
  %3920 = vmatprep.subr.mxu0 0.0
  %3921 = vmatpush1.msra.mxu0 0.0
  %3922 = vmatprep.subr.mxu0 0.0
  %3923 = vmatpush1.msra.mxu0 0.0
  %3924 = vmatprep.subr.mxu0 0.0
  %3925 = vmatpush1.msra.mxu0 0.0
  %3926 = vmatprep.subr.mxu0 0.0
  %3927 = vmatpush1.msra.mxu0 0.0
  %3928 = vmatprep.subr.mxu0 0.0
  %3929 = vmatpush1.msra.mxu0 0.0
  %3930 = vmatprep.subr.mxu0 0.0
  %3931 = vmatpush1.msra.mxu0 0.0
  %3932 = vmatprep.mubr.f32.mxu0 0.0
  %3933 = vmatmul.mubr.f32.gmra.mrb[0].mxu0 %v3795
  %v3934 = vpop.f32.mrb[0].mxu0
  %v3935 = vadd.f32 0.0, %v3934
  %v3936 = vpop.f32.mrb[0].mxu0
  %v3937 = vadd.f32 0.0, %v3936
  %3938 = vdwg.mxu0
  %v3939 = vadd.f32 %v3721, %v3864
  %v3940 = vadd.f32 %v3722, %v3866
  %v3941 = vadd.f32 %v3723, %v3935
  %v3942 = vadd.f32 %v3724, %v3937
  %v3943 = vld [vmem:[%s2006] sm:$0xf]
  %v3945 = vlaneseq
  %v3946 = vshrl.u32 %v3945, 7
  %v3947 = vsub.s32 0, %v3946
  %v3948 = vrot.slane %v3943, %v3947
  %v3949 = vlaneseq
  %v3950 = vshrl.u32 %v3949, 7
  %v3951 = vsub.s32 1, %v3950
  %v3952 = vrot.slane %v3943, %v3951
  %v3953 = vlaneseq
  %v3954 = vshrl.u32 %v3953, 7
  %v3955 = vsub.s32 2, %v3954
  %v3956 = vrot.slane %v3943, %v3955
  %v3957 = vlaneseq
  %v3958 = vshrl.u32 %v3957, 7
  %v3959 = vsub.s32 3, %v3958
  %v3960 = vrot.slane %v3943, %v3959
  %3961 = vrot.lane.b32.xlu0 %v3948, 15
  %v3962 = vpop.permute.xlu0 %3961
  %3963 = vrot.lane.b32.xlu0 %v3952, 15
  %v3964 = vpop.permute.xlu0 %3963
  %3965 = vrot.lane.b32.xlu0 %v3956, 15
  %v3966 = vpop.permute.xlu0 %3965
  %3967 = vrot.lane.b32.xlu0 %v3960, 15
  %v3968 = vpop.permute.xlu0 %3967
  %v3969 = vsel %vm1236, %v3962, %v3964
  %v3970 = vsel %vm1236, %v3964, %v3966
  %v3971 = vsel %vm1236, %v3966, %v3968
  %v3977 = vmul.f32 %v3725, %v3962
  %v3978 = vmul.f32 %v3726, %v3969
  %v3979 = vmul.f32 %v3727, %v3970
  %v3980 = vmul.f32 %v3728, %v3971
  %v3981 = vmul.f32 %v3729, %v3968
  %s3982 = scalar_lea.vmem %s5, 48
  %v3983 = vld [vmem:[%s3982] sm:$0xff]
  %3989 = vrot.lane.b32.xlu0 %v3977, 113
  %v3990 = vpop.permute.xlu0 %3989
  %3991 = vrot.lane.b32.xlu0 %v3978, 113
  %v3992 = vpop.permute.xlu0 %3991
  %3993 = vrot.lane.b32.xlu0 %v3979, 113
  %v3994 = vpop.permute.xlu0 %3993
  %3995 = vrot.lane.b32.xlu0 %v3980, 113
  %v3996 = vpop.permute.xlu0 %3995
  %3997 = vrot.lane.b32.xlu0 %v3981, 113
  %v3998 = vpop.permute.xlu0 %3997
  %v3999 = vsel %vm1205, %v3990, %v3992
  %v4000 = vsel %vm1205, %v3992, %v3994
  %v4001 = vsel %vm1205, %v3994, %v3996
  %v4002 = vsel %vm1205, %v3996, %v3998
  %v4008 = vsel %vm77, %v3983, 0
  %4010 = vmatprep.subr.mxu0 %v4000
  %4011 = vmatpush1.msra.mxu0 %v3999
  %4012 = vmatprep.subr.mxu0 0.0
  %4013 = vmatpush1.msra.mxu0 0.0
  %4014 = vmatprep.subr.mxu0 0.0
  %4015 = vmatpush1.msra.mxu0 0.0
  %4016 = vmatprep.subr.mxu0 0.0
  %4017 = vmatpush1.msra.mxu0 0.0
  %4018 = vmatprep.subr.mxu0 0.0
  %4019 = vmatpush1.msra.mxu0 0.0
  %4020 = vmatprep.subr.mxu0 0.0
  %4021 = vmatpush1.msra.mxu0 0.0
  %4022 = vmatprep.subr.mxu0 0.0
  %4023 = vmatpush1.msra.mxu0 0.0
  %4024 = vmatprep.subr.mxu0 0.0
  %4025 = vmatpush1.msra.mxu0 0.0
  %4026 = vmatprep.subr.mxu0 0.0
  %4027 = vmatpush1.msra.mxu0 0.0
  %4028 = vmatprep.subr.mxu0 0.0
  %4029 = vmatpush1.msra.mxu0 0.0
  %4030 = vmatprep.subr.mxu0 0.0
  %4031 = vmatpush1.msra.mxu0 0.0
  %4032 = vmatprep.subr.mxu0 0.0
  %4033 = vmatpush1.msra.mxu0 0.0
  %4034 = vmatprep.subr.mxu0 0.0
  %4035 = vmatpush1.msra.mxu0 0.0
  %4036 = vmatprep.subr.mxu0 0.0
  %4037 = vmatpush1.msra.mxu0 0.0
  %4038 = vmatprep.subr.mxu0 0.0
  %4039 = vmatpush1.msra.mxu0 0.0
  %4040 = vmatprep.subr.mxu0 0.0
  %4041 = vmatpush1.msra.mxu0 0.0
  %4042 = vmatprep.subr.mxu0 0.0
  %4043 = vmatpush1.msra.mxu0 0.0
  %4044 = vmatprep.subr.mxu0 0.0
  %4045 = vmatpush1.msra.mxu0 0.0
  %4046 = vmatprep.subr.mxu0 0.0
  %4047 = vmatpush1.msra.mxu0 0.0
  %4048 = vmatprep.subr.mxu0 0.0
  %4049 = vmatpush1.msra.mxu0 0.0
  %4050 = vmatprep.subr.mxu0 0.0
  %4051 = vmatpush1.msra.mxu0 0.0
  %4052 = vmatprep.subr.mxu0 0.0
  %4053 = vmatpush1.msra.mxu0 0.0
  %4054 = vmatprep.subr.mxu0 0.0
  %4055 = vmatpush1.msra.mxu0 0.0
  %4056 = vmatprep.subr.mxu0 0.0
  %4057 = vmatpush1.msra.mxu0 0.0
  %4058 = vmatprep.subr.mxu0 0.0
  %4059 = vmatpush1.msra.mxu0 0.0
  %4060 = vmatprep.subr.mxu0 0.0
  %4061 = vmatpush1.msra.mxu0 0.0
  %4062 = vmatprep.subr.mxu0 0.0
  %4063 = vmatpush1.msra.mxu0 0.0
  %4064 = vmatprep.subr.mxu0 0.0
  %4065 = vmatpush1.msra.mxu0 0.0
  %4066 = vmatprep.subr.mxu0 0.0
  %4067 = vmatpush1.msra.mxu0 0.0
  %4068 = vmatprep.subr.mxu0 0.0
  %4069 = vmatpush1.msra.mxu0 0.0
  %4070 = vmatprep.subr.mxu0 0.0
  %4071 = vmatpush1.msra.mxu0 0.0
  %4072 = vmatprep.subr.mxu0 0.0
  %4073 = vmatpush1.msra.mxu0 0.0
  %4074 = vmatprep.mubr.f32.mxu0 0.0
  %4075 = vmatmul.mubr.f32.gmra.mrb[0].mxu0 %v4008
  %v4076 = vpop.f32.mrb[0].mxu0
  %v4077 = vadd.f32 0.0, %v4076
  %v4078 = vpop.f32.mrb[0].mxu0
  %v4079 = vadd.f32 0.0, %v4078
  %4080 = vdwg.mxu0
  %4081 = vmatprep.subr.mxu0 %v4002
  %4082 = vmatpush1.msra.mxu0 %v4001
  %4083 = vmatprep.subr.mxu0 0.0
  %4084 = vmatpush1.msra.mxu0 0.0
  %4085 = vmatprep.subr.mxu0 0.0
  %4086 = vmatpush1.msra.mxu0 0.0
  %4087 = vmatprep.subr.mxu0 0.0
  %4088 = vmatpush1.msra.mxu0 0.0
  %4089 = vmatprep.subr.mxu0 0.0
  %4090 = vmatpush1.msra.mxu0 0.0
  %4091 = vmatprep.subr.mxu0 0.0
  %4092 = vmatpush1.msra.mxu0 0.0
  %4093 = vmatprep.subr.mxu0 0.0
  %4094 = vmatpush1.msra.mxu0 0.0
  %4095 = vmatprep.subr.mxu0 0.0
  %4096 = vmatpush1.msra.mxu0 0.0
  %4097 = vmatprep.subr.mxu0 0.0
  %4098 = vmatpush1.msra.mxu0 0.0
  %4099 = vmatprep.subr.mxu0 0.0
  %4100 = vmatpush1.msra.mxu0 0.0
  %4101 = vmatprep.subr.mxu0 0.0
  %4102 = vmatpush1.msra.mxu0 0.0
  %4103 = vmatprep.subr.mxu0 0.0
  %4104 = vmatpush1.msra.mxu0 0.0
  %4105 = vmatprep.subr.mxu0 0.0
  %4106 = vmatpush1.msra.mxu0 0.0
  %4107 = vmatprep.subr.mxu0 0.0
  %4108 = vmatpush1.msra.mxu0 0.0
  %4109 = vmatprep.subr.mxu0 0.0
  %4110 = vmatpush1.msra.mxu0 0.0
  %4111 = vmatprep.subr.mxu0 0.0
  %4112 = vmatpush1.msra.mxu0 0.0
  %4113 = vmatprep.subr.mxu0 0.0
  %4114 = vmatpush1.msra.mxu0 0.0
  %4115 = vmatprep.subr.mxu0 0.0
  %4116 = vmatpush1.msra.mxu0 0.0
  %4117 = vmatprep.subr.mxu0 0.0
  %4118 = vmatpush1.msra.mxu0 0.0
  %4119 = vmatprep.subr.mxu0 0.0
  %4120 = vmatpush1.msra.mxu0 0.0
  %4121 = vmatprep.subr.mxu0 0.0
  %4122 = vmatpush1.msra.mxu0 0.0
  %4123 = vmatprep.subr.mxu0 0.0
  %4124 = vmatpush1.msra.mxu0 0.0
  %4125 = vmatprep.subr.mxu0 0.0
  %4126 = vmatpush1.msra.mxu0 0.0
  %4127 = vmatprep.subr.mxu0 0.0
  %4128 = vmatpush1.msra.mxu0 0.0
  %4129 = vmatprep.subr.mxu0 0.0
  %4130 = vmatpush1.msra.mxu0 0.0
  %4131 = vmatprep.subr.mxu0 0.0
  %4132 = vmatpush1.msra.mxu0 0.0
  %4133 = vmatprep.subr.mxu0 0.0
  %4134 = vmatpush1.msra.mxu0 0.0
  %4135 = vmatprep.subr.mxu0 0.0
  %4136 = vmatpush1.msra.mxu0 0.0
  %4137 = vmatprep.subr.mxu0 0.0
  %4138 = vmatpush1.msra.mxu0 0.0
  %4139 = vmatprep.subr.mxu0 0.0
  %4140 = vmatpush1.msra.mxu0 0.0
  %4141 = vmatprep.subr.mxu0 0.0
  %4142 = vmatpush1.msra.mxu0 0.0
  %4143 = vmatprep.subr.mxu0 0.0
  %4144 = vmatpush1.msra.mxu0 0.0
  %4145 = vmatprep.mubr.f32.mxu0 0.0
  %4146 = vmatmul.mubr.f32.gmra.mrb[0].mxu0 %v4008
  %v4147 = vpop.f32.mrb[0].mxu0
  %v4148 = vadd.f32 0.0, %v4147
  %v4149 = vpop.f32.mrb[0].mxu0
  %v4150 = vadd.f32 0.0, %v4149
  %4151 = vdwg.mxu0
  %v4152 = vadd.f32 %v3939, %v4077
  %v4153 = vadd.f32 %v3940, %v4079
  %v4154 = vadd.f32 %v3941, %v4148
  %v4155 = vadd.f32 %v3942, %v4150
  %v4156 = vld [vmem:[%s2220] sm:$0xf]
  %v4158 = vlaneseq
  %v4159 = vshrl.u32 %v4158, 7
  %v4160 = vsub.s32 0, %v4159
  %v4161 = vrot.slane %v4156, %v4160
  %v4162 = vlaneseq
  %v4163 = vshrl.u32 %v4162, 7
  %v4164 = vsub.s32 1, %v4163
  %v4165 = vrot.slane %v4156, %v4164
  %v4166 = vlaneseq
  %v4167 = vshrl.u32 %v4166, 7
  %v4168 = vsub.s32 2, %v4167
  %v4169 = vrot.slane %v4156, %v4168
  %v4170 = vlaneseq
  %v4171 = vshrl.u32 %v4170, 7
  %v4172 = vsub.s32 3, %v4171
  %v4173 = vrot.slane %v4156, %v4172
  %4174 = vrot.lane.b32.xlu0 %v4161, 16
  %v4175 = vpop.permute.xlu0 %4174
  %4176 = vrot.lane.b32.xlu0 %v4165, 16
  %v4177 = vpop.permute.xlu0 %4176
  %4178 = vrot.lane.b32.xlu0 %v4169, 16
  %v4179 = vpop.permute.xlu0 %4178
  %4180 = vrot.lane.b32.xlu0 %v4173, 16
  %v4181 = vpop.permute.xlu0 %4180
  %v4182 = vsel %vm855, %v4175, %v4177
  %v4183 = vsel %vm855, %v4177, %v4179
  %v4184 = vsel %vm855, %v4179, %v4181
  %v4190 = vmul.f32 %v3725, %v4175
  %v4191 = vmul.f32 %v3726, %v4182
  %v4192 = vmul.f32 %v3727, %v4183
  %v4193 = vmul.f32 %v3728, %v4184
  %v4194 = vmul.f32 %v3729, %v4181
  %s4195 = scalar_lea.vmem %s5, 56
  %v4196 = vld [vmem:[%s4195] sm:$0xff]
  %4202 = vrot.lane.b32.xlu0 %v4190, 112
  %v4203 = vpop.permute.xlu0 %4202
  %4204 = vrot.lane.b32.xlu0 %v4191, 112
  %v4205 = vpop.permute.xlu0 %4204
  %4206 = vrot.lane.b32.xlu0 %v4192, 112
  %v4207 = vpop.permute.xlu0 %4206
  %4208 = vrot.lane.b32.xlu0 %v4193, 112
  %v4209 = vpop.permute.xlu0 %4208
  %4210 = vrot.lane.b32.xlu0 %v4194, 112
  %v4211 = vpop.permute.xlu0 %4210
  %v4212 = vsel %vm380, %v4203, %v4205
  %v4213 = vsel %vm380, %v4205, %v4207
  %v4214 = vsel %vm380, %v4207, %v4209
  %v4215 = vsel %vm380, %v4209, %v4211
  %v4221 = vsel %vm77, %v4196, 0
  %4223 = vmatprep.subr.mxu0 %v4213
  %4224 = vmatpush1.msra.mxu0 %v4212
  %4225 = vmatprep.subr.mxu0 0.0
  %4226 = vmatpush1.msra.mxu0 0.0
  %4227 = vmatprep.subr.mxu0 0.0
  %4228 = vmatpush1.msra.mxu0 0.0
  %4229 = vmatprep.subr.mxu0 0.0
  %4230 = vmatpush1.msra.mxu0 0.0
  %4231 = vmatprep.subr.mxu0 0.0
  %4232 = vmatpush1.msra.mxu0 0.0
  %4233 = vmatprep.subr.mxu0 0.0
  %4234 = vmatpush1.msra.mxu0 0.0
  %4235 = vmatprep.subr.mxu0 0.0
  %4236 = vmatpush1.msra.mxu0 0.0
  %4237 = vmatprep.subr.mxu0 0.0
  %4238 = vmatpush1.msra.mxu0 0.0
  %4239 = vmatprep.subr.mxu0 0.0
  %4240 = vmatpush1.msra.mxu0 0.0
  %4241 = vmatprep.subr.mxu0 0.0
  %4242 = vmatpush1.msra.mxu0 0.0
  %4243 = vmatprep.subr.mxu0 0.0
  %4244 = vmatpush1.msra.mxu0 0.0
  %4245 = vmatprep.subr.mxu0 0.0
  %4246 = vmatpush1.msra.mxu0 0.0
  %4247 = vmatprep.subr.mxu0 0.0
  %4248 = vmatpush1.msra.mxu0 0.0
  %4249 = vmatprep.subr.mxu0 0.0
  %4250 = vmatpush1.msra.mxu0 0.0
  %4251 = vmatprep.subr.mxu0 0.0
  %4252 = vmatpush1.msra.mxu0 0.0
  %4253 = vmatprep.subr.mxu0 0.0
  %4254 = vmatpush1.msra.mxu0 0.0
  %4255 = vmatprep.subr.mxu0 0.0
  %4256 = vmatpush1.msra.mxu0 0.0
  %4257 = vmatprep.subr.mxu0 0.0
  %4258 = vmatpush1.msra.mxu0 0.0
  %4259 = vmatprep.subr.mxu0 0.0
  %4260 = vmatpush1.msra.mxu0 0.0
  %4261 = vmatprep.subr.mxu0 0.0
  %4262 = vmatpush1.msra.mxu0 0.0
  %4263 = vmatprep.subr.mxu0 0.0
  %4264 = vmatpush1.msra.mxu0 0.0
  %4265 = vmatprep.subr.mxu0 0.0
  %4266 = vmatpush1.msra.mxu0 0.0
  %4267 = vmatprep.subr.mxu0 0.0
  %4268 = vmatpush1.msra.mxu0 0.0
  %4269 = vmatprep.subr.mxu0 0.0
  %4270 = vmatpush1.msra.mxu0 0.0
  %4271 = vmatprep.subr.mxu0 0.0
  %4272 = vmatpush1.msra.mxu0 0.0
  %4273 = vmatprep.subr.mxu0 0.0
  %4274 = vmatpush1.msra.mxu0 0.0
  %4275 = vmatprep.subr.mxu0 0.0
  %4276 = vmatpush1.msra.mxu0 0.0
  %4277 = vmatprep.subr.mxu0 0.0
  %4278 = vmatpush1.msra.mxu0 0.0
  %4279 = vmatprep.subr.mxu0 0.0
  %4280 = vmatpush1.msra.mxu0 0.0
  %4281 = vmatprep.subr.mxu0 0.0
  %4282 = vmatpush1.msra.mxu0 0.0
  %4283 = vmatprep.subr.mxu0 0.0
  %4284 = vmatpush1.msra.mxu0 0.0
  %4285 = vmatprep.subr.mxu0 0.0
  %4286 = vmatpush1.msra.mxu0 0.0
  %4287 = vmatprep.mubr.f32.mxu0 0.0
  %4288 = vmatmul.mubr.f32.gmra.mrb[0].mxu0 %v4221
  %v4289 = vpop.f32.mrb[0].mxu0
  %v4290 = vadd.f32 0.0, %v4289
  %v4291 = vpop.f32.mrb[0].mxu0
  %v4292 = vadd.f32 0.0, %v4291
  %4293 = vdwg.mxu0
  %4294 = vmatprep.subr.mxu0 %v4215
  %4295 = vmatpush1.msra.mxu0 %v4214
  %4296 = vmatprep.subr.mxu0 0.0
  %4297 = vmatpush1.msra.mxu0 0.0
  %4298 = vmatprep.subr.mxu0 0.0
  %4299 = vmatpush1.msra.mxu0 0.0
  %4300 = vmatprep.subr.mxu0 0.0
  %4301 = vmatpush1.msra.mxu0 0.0
  %4302 = vmatprep.subr.mxu0 0.0
  %4303 = vmatpush1.msra.mxu0 0.0
  %4304 = vmatprep.subr.mxu0 0.0
  %4305 = vmatpush1.msra.mxu0 0.0
  %4306 = vmatprep.subr.mxu0 0.0
  %4307 = vmatpush1.msra.mxu0 0.0
  %4308 = vmatprep.subr.mxu0 0.0
  %4309 = vmatpush1.msra.mxu0 0.0
  %4310 = vmatprep.subr.mxu0 0.0
  %4311 = vmatpush1.msra.mxu0 0.0
  %4312 = vmatprep.subr.mxu0 0.0
  %4313 = vmatpush1.msra.mxu0 0.0
  %4314 = vmatprep.subr.mxu0 0.0
  %4315 = vmatpush1.msra.mxu0 0.0
  %4316 = vmatprep.subr.mxu0 0.0
  %4317 = vmatpush1.msra.mxu0 0.0
  %4318 = vmatprep.subr.mxu0 0.0
  %4319 = vmatpush1.msra.mxu0 0.0
  %4320 = vmatprep.subr.mxu0 0.0
  %4321 = vmatpush1.msra.mxu0 0.0
  %4322 = vmatprep.subr.mxu0 0.0
  %4323 = vmatpush1.msra.mxu0 0.0
  %4324 = vmatprep.subr.mxu0 0.0
  %4325 = vmatpush1.msra.mxu0 0.0
  %4326 = vmatprep.subr.mxu0 0.0
  %4327 = vmatpush1.msra.mxu0 0.0
  %4328 = vmatprep.subr.mxu0 0.0
  %4329 = vmatpush1.msra.mxu0 0.0
  %4330 = vmatprep.subr.mxu0 0.0
  %4331 = vmatpush1.msra.mxu0 0.0
  %4332 = vmatprep.subr.mxu0 0.0
  %4333 = vmatpush1.msra.mxu0 0.0
  %4334 = vmatprep.subr.mxu0 0.0
  %4335 = vmatpush1.msra.mxu0 0.0
  %4336 = vmatprep.subr.mxu0 0.0
  %4337 = vmatpush1.msra.mxu0 0.0
  %4338 = vmatprep.subr.mxu0 0.0
  %4339 = vmatpush1.msra.mxu0 0.0
  %4340 = vmatprep.subr.mxu0 0.0
  %4341 = vmatpush1.msra.mxu0 0.0
  %4342 = vmatprep.subr.mxu0 0.0
  %4343 = vmatpush1.msra.mxu0 0.0
  %4344 = vmatprep.subr.mxu0 0.0
  %4345 = vmatpush1.msra.mxu0 0.0
  %4346 = vmatprep.subr.mxu0 0.0
  %4347 = vmatpush1.msra.mxu0 0.0
  %4348 = vmatprep.subr.mxu0 0.0
  %4349 = vmatpush1.msra.mxu0 0.0
  %4350 = vmatprep.subr.mxu0 0.0
  %4351 = vmatpush1.msra.mxu0 0.0
  %4352 = vmatprep.subr.mxu0 0.0
  %4353 = vmatpush1.msra.mxu0 0.0
  %4354 = vmatprep.subr.mxu0 0.0
  %4355 = vmatpush1.msra.mxu0 0.0
  %4356 = vmatprep.subr.mxu0 0.0
  %4357 = vmatpush1.msra.mxu0 0.0
  %4358 = vmatprep.mubr.f32.mxu0 0.0
  %4359 = vmatmul.mubr.f32.gmra.mrb[0].mxu0 %v4221
  %v4360 = vpop.f32.mrb[0].mxu0
  %v4361 = vadd.f32 0.0, %v4360
  %v4362 = vpop.f32.mrb[0].mxu0
  %v4363 = vadd.f32 0.0, %v4362
  %4364 = vdwg.mxu0
  %v4365 = vadd.f32 %v4152, %v4290
  %v4366 = vadd.f32 %v4153, %v4292
  %v4367 = vadd.f32 %v4154, %v4361
  %v4368 = vadd.f32 %v4155, %v4363
  %v4369 = vld [vmem:[%s2434] sm:$0xf]
  %v4371 = vlaneseq
  %v4372 = vshrl.u32 %v4371, 7
  %v4373 = vsub.s32 0, %v4372
  %v4374 = vrot.slane %v4369, %v4373
  %v4375 = vlaneseq
  %v4376 = vshrl.u32 %v4375, 7
  %v4377 = vsub.s32 1, %v4376
  %v4378 = vrot.slane %v4369, %v4377
  %v4379 = vlaneseq
  %v4380 = vshrl.u32 %v4379, 7
  %v4381 = vsub.s32 2, %v4380
  %v4382 = vrot.slane %v4369, %v4381
  %v4383 = vlaneseq
  %v4384 = vshrl.u32 %v4383, 7
  %v4385 = vsub.s32 3, %v4384
  %v4386 = vrot.slane %v4369, %v4385
  %4387 = vrot.lane.b32.xlu0 %v4374, 17
  %v4388 = vpop.permute.xlu0 %4387
  %4389 = vrot.lane.b32.xlu0 %v4378, 17
  %v4390 = vpop.permute.xlu0 %4389
  %4391 = vrot.lane.b32.xlu0 %v4382, 17
  %v4392 = vpop.permute.xlu0 %4391
  %4393 = vrot.lane.b32.xlu0 %v4386, 17
  %v4394 = vpop.permute.xlu0 %4393
  %v4395 = vsel %vm1024, %v4388, %v4390
  %v4396 = vsel %vm1024, %v4390, %v4392
  %v4397 = vsel %vm1024, %v4392, %v4394
  %v4403 = vmul.f32 %v3725, %v4388
  %v4404 = vmul.f32 %v3726, %v4395
  %v4405 = vmul.f32 %v3727, %v4396
  %v4406 = vmul.f32 %v3728, %v4397
  %v4407 = vmul.f32 %v3729, %v4394
  %s4408 = scalar_lea.vmem %s5, 64
  %v4409 = vld [vmem:[%s4408] sm:$0xff]
  %4415 = vrot.lane.b32.xlu0 %v4403, 111
  %v4416 = vpop.permute.xlu0 %4415
  %4417 = vrot.lane.b32.xlu0 %v4404, 111
  %v4418 = vpop.permute.xlu0 %4417
  %4419 = vrot.lane.b32.xlu0 %v4405, 111
  %v4420 = vpop.permute.xlu0 %4419
  %4421 = vrot.lane.b32.xlu0 %v4406, 111
  %v4422 = vpop.permute.xlu0 %4421
  %4423 = vrot.lane.b32.xlu0 %v4407, 111
  %v4424 = vpop.permute.xlu0 %4423
  %v4425 = vsel %vm550, %v4416, %v4418
  %v4426 = vsel %vm550, %v4418, %v4420
  %v4427 = vsel %vm550, %v4420, %v4422
  %v4428 = vsel %vm550, %v4422, %v4424
  %v4434 = vsel %vm77, %v4409, 0
  %4436 = vmatprep.subr.mxu0 %v4426
  %4437 = vmatpush1.msra.mxu0 %v4425
  %4438 = vmatprep.subr.mxu0 0.0
  %4439 = vmatpush1.msra.mxu0 0.0
  %4440 = vmatprep.subr.mxu0 0.0
  %4441 = vmatpush1.msra.mxu0 0.0
  %4442 = vmatprep.subr.mxu0 0.0
  %4443 = vmatpush1.msra.mxu0 0.0
  %4444 = vmatprep.subr.mxu0 0.0
  %4445 = vmatpush1.msra.mxu0 0.0
  %4446 = vmatprep.subr.mxu0 0.0
  %4447 = vmatpush1.msra.mxu0 0.0
  %4448 = vmatprep.subr.mxu0 0.0
  %4449 = vmatpush1.msra.mxu0 0.0
  %4450 = vmatprep.subr.mxu0 0.0
  %4451 = vmatpush1.msra.mxu0 0.0
  %4452 = vmatprep.subr.mxu0 0.0
  %4453 = vmatpush1.msra.mxu0 0.0
  %4454 = vmatprep.subr.mxu0 0.0
  %4455 = vmatpush1.msra.mxu0 0.0
  %4456 = vmatprep.subr.mxu0 0.0
  %4457 = vmatpush1.msra.mxu0 0.0
  %4458 = vmatprep.subr.mxu0 0.0
  %4459 = vmatpush1.msra.mxu0 0.0
  %4460 = vmatprep.subr.mxu0 0.0
  %4461 = vmatpush1.msra.mxu0 0.0
  %4462 = vmatprep.subr.mxu0 0.0
  %4463 = vmatpush1.msra.mxu0 0.0
  %4464 = vmatprep.subr.mxu0 0.0
  %4465 = vmatpush1.msra.mxu0 0.0
  %4466 = vmatprep.subr.mxu0 0.0
  %4467 = vmatpush1.msra.mxu0 0.0
  %4468 = vmatprep.subr.mxu0 0.0
  %4469 = vmatpush1.msra.mxu0 0.0
  %4470 = vmatprep.subr.mxu0 0.0
  %4471 = vmatpush1.msra.mxu0 0.0
  %4472 = vmatprep.subr.mxu0 0.0
  %4473 = vmatpush1.msra.mxu0 0.0
  %4474 = vmatprep.subr.mxu0 0.0
  %4475 = vmatpush1.msra.mxu0 0.0
  %4476 = vmatprep.subr.mxu0 0.0
  %4477 = vmatpush1.msra.mxu0 0.0
  %4478 = vmatprep.subr.mxu0 0.0
  %4479 = vmatpush1.msra.mxu0 0.0
  %4480 = vmatprep.subr.mxu0 0.0
  %4481 = vmatpush1.msra.mxu0 0.0
  %4482 = vmatprep.subr.mxu0 0.0
  %4483 = vmatpush1.msra.mxu0 0.0
  %4484 = vmatprep.subr.mxu0 0.0
  %4485 = vmatpush1.msra.mxu0 0.0
  %4486 = vmatprep.subr.mxu0 0.0
  %4487 = vmatpush1.msra.mxu0 0.0
  %4488 = vmatprep.subr.mxu0 0.0
  %4489 = vmatpush1.msra.mxu0 0.0
  %4490 = vmatprep.subr.mxu0 0.0
  %4491 = vmatpush1.msra.mxu0 0.0
  %4492 = vmatprep.subr.mxu0 0.0
  %4493 = vmatpush1.msra.mxu0 0.0
  %4494 = vmatprep.subr.mxu0 0.0
  %4495 = vmatpush1.msra.mxu0 0.0
  %4496 = vmatprep.subr.mxu0 0.0
  %4497 = vmatpush1.msra.mxu0 0.0
  %4498 = vmatprep.subr.mxu0 0.0
  %4499 = vmatpush1.msra.mxu0 0.0
  %4500 = vmatprep.mubr.f32.mxu0 0.0
  %4501 = vmatmul.mubr.f32.gmra.mrb[0].mxu0 %v4434
  %v4502 = vpop.f32.mrb[0].mxu0
  %v4503 = vadd.f32 0.0, %v4502
  %v4504 = vpop.f32.mrb[0].mxu0
  %v4505 = vadd.f32 0.0, %v4504
  %4506 = vdwg.mxu0
  %4507 = vmatprep.subr.mxu0 %v4428
  %4508 = vmatpush1.msra.mxu0 %v4427
  %4509 = vmatprep.subr.mxu0 0.0
  %4510 = vmatpush1.msra.mxu0 0.0
  %4511 = vmatprep.subr.mxu0 0.0
  %4512 = vmatpush1.msra.mxu0 0.0
  %4513 = vmatprep.subr.mxu0 0.0
  %4514 = vmatpush1.msra.mxu0 0.0
  %4515 = vmatprep.subr.mxu0 0.0
  %4516 = vmatpush1.msra.mxu0 0.0
  %4517 = vmatprep.subr.mxu0 0.0
  %4518 = vmatpush1.msra.mxu0 0.0
  %4519 = vmatprep.subr.mxu0 0.0
  %4520 = vmatpush1.msra.mxu0 0.0
  %4521 = vmatprep.subr.mxu0 0.0
  %4522 = vmatpush1.msra.mxu0 0.0
  %4523 = vmatprep.subr.mxu0 0.0
  %4524 = vmatpush1.msra.mxu0 0.0
  %4525 = vmatprep.subr.mxu0 0.0
  %4526 = vmatpush1.msra.mxu0 0.0
  %4527 = vmatprep.subr.mxu0 0.0
  %4528 = vmatpush1.msra.mxu0 0.0
  %4529 = vmatprep.subr.mxu0 0.0
  %4530 = vmatpush1.msra.mxu0 0.0
  %4531 = vmatprep.subr.mxu0 0.0
  %4532 = vmatpush1.msra.mxu0 0.0
  %4533 = vmatprep.subr.mxu0 0.0
  %4534 = vmatpush1.msra.mxu0 0.0
  %4535 = vmatprep.subr.mxu0 0.0
  %4536 = vmatpush1.msra.mxu0 0.0
  %4537 = vmatprep.subr.mxu0 0.0
  %4538 = vmatpush1.msra.mxu0 0.0
  %4539 = vmatprep.subr.mxu0 0.0
  %4540 = vmatpush1.msra.mxu0 0.0
  %4541 = vmatprep.subr.mxu0 0.0
  %4542 = vmatpush1.msra.mxu0 0.0
  %4543 = vmatprep.subr.mxu0 0.0
  %4544 = vmatpush1.msra.mxu0 0.0
  %4545 = vmatprep.subr.mxu0 0.0
  %4546 = vmatpush1.msra.mxu0 0.0
  %4547 = vmatprep.subr.mxu0 0.0
  %4548 = vmatpush1.msra.mxu0 0.0
  %4549 = vmatprep.subr.mxu0 0.0
  %4550 = vmatpush1.msra.mxu0 0.0
  %4551 = vmatprep.subr.mxu0 0.0
  %4552 = vmatpush1.msra.mxu0 0.0
  %4553 = vmatprep.subr.mxu0 0.0
  %4554 = vmatpush1.msra.mxu0 0.0
  %4555 = vmatprep.subr.mxu0 0.0
  %4556 = vmatpush1.msra.mxu0 0.0
  %4557 = vmatprep.subr.mxu0 0.0
  %4558 = vmatpush1.msra.mxu0 0.0
  %4559 = vmatprep.subr.mxu0 0.0
  %4560 = vmatpush1.msra.mxu0 0.0
  %4561 = vmatprep.subr.mxu0 0.0
  %4562 = vmatpush1.msra.mxu0 0.0
  %4563 = vmatprep.subr.mxu0 0.0
  %4564 = vmatpush1.msra.mxu0 0.0
  %4565 = vmatprep.subr.mxu0 0.0
  %4566 = vmatpush1.msra.mxu0 0.0
  %4567 = vmatprep.subr.mxu0 0.0
  %4568 = vmatpush1.msra.mxu0 0.0
  %4569 = vmatprep.subr.mxu0 0.0
  %4570 = vmatpush1.msra.mxu0 0.0
  %4571 = vmatprep.mubr.f32.mxu0 0.0
  %4572 = vmatmul.mubr.f32.gmra.mrb[0].mxu0 %v4434
  %v4573 = vpop.f32.mrb[0].mxu0
  %v4574 = vadd.f32 0.0, %v4573
  %v4575 = vpop.f32.mrb[0].mxu0
  %v4576 = vadd.f32 0.0, %v4575
  %4577 = vdwg.mxu0
  %v4578 = vadd.f32 %v4365, %v4503
  %v4579 = vadd.f32 %v4366, %v4505
  %v4580 = vadd.f32 %v4367, %v4574
  %v4581 = vadd.f32 %v4368, %v4576
  %v4582 = vadd.f32 %v4578, %v4579
  %v4583 = vadd.f32 %v4582, %v4580
  %v4584 = vadd.f32 %v4583, %v4581
  %4585 = vadd.xlane.f32.xlu0 %v4584
  %v4586 = vpop.xlane.xlu0 %4585
  %v4587 = vmul.f32 %v4586, %v2653
  %v4588 = vsub.f32 %v4578, %v4587
  %v4589 = vsub.f32 %v4579, %v4587
  %v4590 = vsub.f32 %v4580, %v4587
  %v4591 = vsub.f32 %v4581, %v4587
  %v4592 = vmul.f32 %v4588, %v4588
  %v4593 = vmul.f32 %v4589, %v4589
  %v4594 = vmul.f32 %v4590, %v4590
  %v4595 = vmul.f32 %v4591, %v4591
  %v4596 = vadd.f32 %v4592, %v4593
  %v4597 = vadd.f32 %v4596, %v4594
  %v4598 = vadd.f32 %v4597, %v4595
  %4599 = vadd.xlane.f32.xlu0 %v4598
  %v4600 = vpop.xlane.xlu0 %4599
  %v4601 = vmul.f32 %v4600, %v2653
  %v4602 = vld [vmem:[%s8] sm:$0xff]
  %v4603 = vadd.f32 %v4601, 1e-05
  %v4604 = vrsqrt.pop %v4603
  %v4605 = vmul.f32 %v4602, %v4604
  %4607 = vset.pattern.permute.xlu0 0
  %4608 = vperm.xlu0 %4607, %v4605
  %v4609 = vpop.permute.xlu0 %4608
  %v4611 = vmul.f32 %v4588, %v4609
  %v4612 = vmul.f32 %v4589, %v4609
  %v4613 = vmul.f32 %v4590, %v4609
  %v4614 = vmul.f32 %v4591, %v4609
  %v4615 = vld [vmem:[%s9] sm:$0xff]
  %4617 = vset.pattern.permute.xlu0 0
  %4618 = vperm.xlu0 %4617, %v4615
  %v4619 = vpop.permute.xlu0 %4618
  %v4621 = vadd.f32 %v4611, %v4619
  %v4622 = vadd.f32 %v4612, %v4619
  %v4623 = vadd.f32 %v4613, %v4619
  %v4624 = vadd.f32 %v4614, %v4619
  %v4625 = vmax.f32 %v4621, 0.0
  %v4626 = vmax.f32 %v4622, 0.0
  %v4627 = vmax.f32 %v4623, 0.0
  %v4628 = vmax.f32 %v4624, 0.0
  %4629 = vst [vmem:[%s10] sm:$0xff] %v4625
  %4630 = vst [vmem:[%s10 + $0x8] sm:$0xff] %v4626
  %4631 = vst [vmem:[%s10 + $0x10] sm:$0xff] %v4627
  %4632 = vst [vmem:[%s10 + $0x18] sm:$0xff] %v4628
  // Predicated region
  $region42: #{up_forward.1} parent=0 // pred_check
    _
  $region43: #{up_forward.1} parent=0 // pred_check_branch
    %4634 = sbr.rel (0) target = $region45
  $region44: #{up_forward.1} parent=0 // pred_region
    _
  $region45: #{up_forward.1} parent=0 // pred_fallthru
    _
  // Predicated region
  $region46: #{up_forward.1} parent=0 // pred_check
    _
  $region47: #{up_forward.1} parent=0 // pred_check_branch
    %4636 = sbr.rel (0) target = $region49
  $region48: #{up_forward.1} parent=0 // pred_region
    _
  $region49: #{up_forward.1} parent=0 // pred_fallthru
    _

</llo_original>
